<compile_context>
chip_gen: v6e
topology: v6e:2x2x1
jax: 0.10.0
libtpu: 0.0.40
codegen_flags: <defaults>
</compile_context>

<pallas_src>
import functools

import jax
import jax.numpy as jnp
from jax.experimental import pallas as pl


# ----------------------------------------------------------------------------- helpers

def _full_spec(shape):
    # single-program grid, full array resident in VMEM
    return pl.BlockSpec(shape, lambda i: (0,) * len(shape))


def _im2col_cm(a_cm, k, s):
    """Channel-major im2col.

    a_cm: (C, N, H, W).  Returns (C*k*k, N*OH*OW) with feature order (c, kh, kw)
    (matching torch weight.reshape(Cout, Cin*k*k)) and column order (n, oh, ow).
    """
    C, N, H, W = a_cm.shape
    OH = (H - k) // s + 1
    OW = (W - k) // s + 1
    cols = []
    for kh in range(k):
        for kw in range(k):
            cols.append(a_cm[:, :, kh:kh + s * OH:s, kw:kw + s * OW:s])  # (C,N,OH,OW)
    p = jnp.stack(cols, axis=1)                      # (C, k*k, N, OH, OW)
    return p.reshape(C * k * k, N * OH * OW), OH, OW


# ----------------------------------------------------------------------------- kernels

def _conv_relu_kernel(w_ref, p_ref, b_ref, o_ref):
    # out = relu(W @ P + b)   -- lane-dense output (last dim = M)
    z = jnp.dot(w_ref[...], p_ref[...], preferred_element_type=jnp.float32) + b_ref[...]
    o_ref[...] = jnp.maximum(z, 0.0)


def _conv_relu_mask_kernel(w_ref, p_ref, b_ref, m_ref, o_ref):
    # out = relu((W @ P + b) * mask)   -- Dropout2d channel mask folded in
    z = jnp.dot(w_ref[...], p_ref[...], preferred_element_type=jnp.float32) + b_ref[...]
    o_ref[...] = jnp.maximum(z * m_ref[...], 0.0)


def conv_relu(w, p, b, mask=None):
    """Channel-major conv as matmul.  w:(Cout,K)  p:(K,M)  b:(Cout,1)  mask:(Cout,M)|None."""
    Cout, _ = w.shape
    M = p.shape[1]
    if mask is None:
        kern = _conv_relu_kernel
        in_specs = [_full_spec(w.shape), _full_spec(p.shape), _full_spec(b.shape)]
        args = (w, p, b)
    else:
        kern = _conv_relu_mask_kernel
        in_specs = [_full_spec(w.shape), _full_spec(p.shape), _full_spec(b.shape),
                    _full_spec(mask.shape)]
        args = (w, p, b, mask)
    return pl.pallas_call(
        kern,
        out_shape=jax.ShapeDtypeStruct((Cout, M), jnp.float32),
        grid=(1,),
        in_specs=in_specs,
        out_specs=_full_spec((Cout, M)),
    )(*args)


def _tail_kernel(feat_ref, w1_ref, b1_ref, w2_ref, b2_ref, w3_ref, b3_ref,
                 h0_ref, c0_ref, wih_ref, whh_ref, bl_ref, wh_ref, bh_ref,
                 out_ref, hn_ref, cn_ref, z_ref, p_ref, *, hidden, length):
    """Fused affine1/2/3 + ReLU -> LSTM(128,128) -> action/value heads + softmax(0.7*logits)."""
    H = hidden
    f32 = jnp.float32

    # --- affine stack (everything stays in registers) ---
    h1 = jnp.maximum(
        jnp.dot(feat_ref[...], w1_ref[...], preferred_element_type=f32) + b1_ref[...], 0.0)
    h2 = jnp.maximum(
        jnp.dot(h1, w2_ref[...], preferred_element_type=f32) + b2_ref[...], 0.0)
    h3 = jnp.maximum(
        jnp.dot(h2, w3_ref[...], preferred_element_type=f32) + b3_ref[...], 0.0)

    # --- LSTM input projection for the whole sequence, kept as a register value ---
    xproj = jnp.dot(h3, wih_ref[...], preferred_element_type=f32) + bl_ref[...]   # (L, 4H)

    whh = whh_ref[...]
    h = h0_ref[...]
    c = c0_ref[...]
    x0 = h
    for t in range(length):                       # static unroll, L is small
        g = xproj[t:t + 1, :] + jnp.dot(h, whh, preferred_element_type=f32)
        i = jax.nn.sigmoid(g[:, 0:H])
        f = jax.nn.sigmoid(g[:, H:2 * H])
        gg = jnp.tanh(g[:, 2 * H:3 * H])
        o = jax.nn.sigmoid(g[:, 3 * H:4 * H])
        c = f * c + i * gg
        h = o * jnp.tanh(c)
        out_ref[t:t + 1, :] = h
        if t == 0:
            x0 = h                                 # torch: x = hx[0] (first output step)
    hn_ref[...] = h
    cn_ref[...] = c

    # --- heads: packed 128-wide matmul; lanes 0..2 action logits, lane 3 value ---
    z = jnp.dot(x0, wh_ref[...], preferred_element_type=f32) + bh_ref[...]
    z_ref[...] = z
    lane = jax.lax.broadcasted_iota(jnp.int32, z.shape, 1)
    amask = lane < 3
    logits = z * 0.7
    masked = jnp.where(amask, logits, jnp.full_like(logits, -1e30))
    m = jnp.max(masked, axis=-1, keepdims=True)
    e = jnp.where(amask, jnp.exp(logits - m), jnp.zeros_like(logits))
    p_ref[...] = e / jnp.sum(e, axis=-1, keepdims=True)


def tail_forward(feat, prep, h0, c0):
    """feat: (L, 256).  Returns lstm_out (L,128), h_n, c_n, z (heads raw), probs (padded)."""
    L = feat.shape[0]
    H = 128
    kern = functools.partial(_tail_kernel, hidden=H, length=L)
    return pl.pallas_call(
        kern,
        out_shape=(jax.ShapeDtypeStruct((L, H), jnp.float32),   # lstm output
                   jax.ShapeDtypeStruct((1, H), jnp.float32),   # h_n
                   jax.ShapeDtypeStruct((1, H), jnp.float32),   # c_n
                   jax.ShapeDtypeStruct((1, H), jnp.float32),   # heads raw (lane3 = value)
                   jax.ShapeDtypeStruct((1, H), jnp.float32)),  # softmax probs (lanes 0..2)
        grid=(1,),
        in_specs=[_full_spec(feat.shape),
                  _full_spec((256, 256)), _full_spec((1, 256)),
                  _full_spec((256, 128)), _full_spec((1, 128)),
                  _full_spec((128, 128)), _full_spec((1, 128)),
                  _full_spec((1, 128)), _full_spec((1, 128)),
                  _full_spec((128, 512)), _full_spec((128, 512)), _full_spec((1, 512)),
                  _full_spec((128, 128)), _full_spec((1, 128))],
        out_specs=(_full_spec((L, H)), _full_spec((1, H)), _full_spec((1, H)),
                   _full_spec((1, H)), _full_spec((1, H))),
    )(feat, prep['a1_w'], prep['a1_b'], prep['a2_w'], prep['a2_b'],
      prep['a3_w'], prep['a3_b'], h0, c0,
      prep['l_wih'], prep['l_whh'], prep['l_b'], prep['h_w'], prep['h_b'])


# ----------------------------------------------------------------------------- params

def init_params(key):
    ks = jax.random.split(key, 20)

    def uni(k, shape, fan_in):
        bound = 1.0 / (float(fan_in) ** 0.5)
        return jax.random.uniform(k, shape, jnp.float32, minval=-bound, maxval=bound)

    p = {}
    p['conv1_w'] = uni(ks[0], (32, 1, 8, 8), 1 * 8 * 8)
    p['conv1_b'] = uni(ks[1], (32,), 1 * 8 * 8)
    p['conv2_w'] = uni(ks[2], (64, 32, 4, 4), 32 * 4 * 4)
    p['conv2_b'] = uni(ks[3], (64,), 32 * 4 * 4)
    p['conv3_w'] = uni(ks[4], (32, 64, 4, 4), 64 * 4 * 4)
    p['conv3_b'] = uni(ks[5], (32,), 64 * 4 * 4)
    p['aff1_w'] = uni(ks[6], (256, 256), 256)
    p['aff1_b'] = uni(ks[7], (256,), 256)
    p['aff2_w'] = uni(ks[8], (128, 256), 256)
    p['aff2_b'] = uni(ks[9], (128,), 256)
    p['aff3_w'] = uni(ks[10], (128, 128), 128)
    p['aff3_b'] = uni(ks[11], (128,), 128)
    p['lstm_wih'] = uni(ks[12], (4 * 128, 128), 128)
    p['lstm_whh'] = uni(ks[13], (4 * 128, 128), 128)
    p['lstm_bih'] = uni(ks[14], (4 * 128,), 128)
    p['lstm_bhh'] = uni(ks[15], (4 * 128,), 128)
    p['act_w'] = uni(ks[16], (3, 128), 128)
    p['act_b'] = uni(ks[17], (3,), 128)
    p['val_w'] = uni(ks[18], (1, 128), 128)
    p['val_b'] = uni(ks[19], (1,), 128)
    return p


def prepare_params(p):
    """One-time weight packing (hoisted out of the forward hot path)."""
    q = {}
    # convs: (Cout, Cin*k*k) so channel-major patches need no weight permutation
    q['c1_w'] = p['conv1_w'].reshape(32, 64)
    q['c1_b'] = p['conv1_b'].reshape(32, 1)
    q['c2_w'] = p['conv2_w'].reshape(64, 512)
    q['c2_b'] = p['conv2_b'].reshape(64, 1)
    q['c3_w'] = p['conv3_w'].reshape(32, 1024)
    q['c3_b'] = p['conv3_b'].reshape(32, 1)
    # affines: (in, out) layout + row-vector bias
    q['a1_w'] = p['aff1_w'].T
    q['a1_b'] = p['aff1_b'].reshape(1, 256)
    q['a2_w'] = p['aff2_w'].T
    q['a2_b'] = p['aff2_b'].reshape(1, 128)
    q['a3_w'] = p['aff3_w'].T
    q['a3_b'] = p['aff3_b'].reshape(1, 128)
    # LSTM: transposed weights, merged biases
    q['l_wih'] = p['lstm_wih'].T                       # (128, 512)
    q['l_whh'] = p['lstm_whh'].T                       # (128, 512)
    q['l_b'] = (p['lstm_bih'] + p['lstm_bhh']).reshape(1, 512)
    # heads packed into one 128-wide matmul (cols 0..2 action, col 3 value, rest zero)
    wh = jnp.zeros((128, 128), jnp.float32)
    wh = wh.at[:, :3].set(p['act_w'].T)
    wh = wh.at[:, 3:4].set(p['val_w'].T)
    bh = jnp.zeros((1, 128), jnp.float32)
    bh = bh.at[0, :3].set(p['act_b'])
    bh = bh.at[0, 3].set(p['val_b'][0])
    q['h_w'] = wh
    q['h_b'] = bh
    return jax.tree_util.tree_map(jax.device_put, q)


# ----------------------------------------------------------------------------- forward

@functools.partial(jax.jit, static_argnames=("train",))
def policy_forward(prep, img, hx, cx, dropout_key, *, train=True):
    """Mirrors Policy.forward on x = (image NCHW, (hx, cx))."""
    N = img.shape[0]

    # conv1 + relu   (channel-major: img -> (1, N, H, W))
    p1, oh1, ow1 = _im2col_cm(jnp.transpose(img, (1, 0, 2, 3)), 8, 4)
    a1 = conv_relu(prep['c1_w'], p1, prep['c1_b'])               # (32, N*oh1*ow1)

    # conv2 + relu
    p2, oh2, ow2 = _im2col_cm(a1.reshape(32, N, oh1, ow1), 4, 2)
    a2 = conv_relu(prep['c2_w'], p2, prep['c2_b'])               # (64, N*oh2*ow2)

    # conv3 + Dropout2d(p=0.5, training) + relu
    p3, oh3, ow3 = _im2col_cm(a2.reshape(64, N, oh2, ow2), 4, 2)
    if train:
        keep = jax.random.bernoulli(dropout_key, 0.5, (N, 32)).astype(jnp.float32) * 2.0
        mask = jnp.broadcast_to(keep.T[:, :, None], (32, N, oh3 * ow3))
        mask = mask.reshape(32, N * oh3 * ow3)                   # per-(channel, sample) {0,2}
        a3 = conv_relu(prep['c3_w'], p3, prep['c3_b'], mask)     # (32, N*oh3*ow3)
    else:
        a3 = conv_relu(prep['c3_w'], p3, prep['c3_b'])

    # .view(-1, 256) in torch NCHW order: (C, N, h, w) -> (N, C, h, w) -> (-1, 256)
    feat = a3.reshape(32, N, oh3, ow3).transpose(1, 0, 2, 3).reshape(-1, 256)

    # fused affine1..3 + LSTM + heads (single pallas_call, VMEM resident)
    lstm_out, h_n, c_n, z, probs_padded = tail_forward(feat, prep, hx, cx)

    probs = probs_padded[0, :3]      # softmax(action_scores * 0.7)
    value = z[0, 3:4]                # state value
    # torch returns (probs, state_values, (hx, cx)) with hx = lstm output, cx = (h_n, c_n)
    return probs, value, (lstm_out, (h_n, c_n))


# ----------------------------------------------------------------------------- main

if __name__ == "__main__":
    key = jax.random.PRNGKey(0)
    pkey, ikey, hkey, ckey, dkey = jax.random.split(key, 5)

    params = init_params(pkey)
    prep = prepare_params(params)

    # CarRacing-style grayscale frames: (2, 1, 96, 96) -> conv3 out (2,32,4,4) -> view(-1,256) = (4,256)
    img = jax.random.normal(ikey, (2, 1, 96, 96), jnp.float32)
    hx = 0.1 * jax.random.normal(hkey, (1, 128), jnp.float32)
    cx = 0.1 * jax.random.normal(ckey, (1, 128), jnp.float32)

    probs, value, (lstm_out, (h_n, c_n)) = policy_forward(prep, img, hx, cx, dkey, train=True)
    jax.block_until_ready((probs, value, lstm_out, h_n, c_n))

    assert probs.shape == (3,) and value.shape == (1,)
    assert lstm_out.shape == (4, 128) and h_n.shape == (1, 128) and c_n.shape == (1, 128)
    assert abs(float(jnp.sum(probs)) - 1.0) < 1e-4
    assert bool(jnp.all(jnp.isfinite(lstm_out))) and bool(jnp.all(jnp.isfinite(value)))

    print("KERNEL_OK")
</pallas_src>

<mosaic_0001>
module attributes {stable_mosaic.version = 11 : i64} {
  func.func @_conv_relu_kernel(%arg0: i32, %arg1: memref<32x64xf32, #tpu.memory_space<vmem>>, %arg2: memref<64x1058xf32, #tpu.memory_space<vmem>>, %arg3: memref<32x1xf32, #tpu.memory_space<vmem>>, %arg4: memref<32x1058xf32, #tpu.memory_space<vmem>>) attributes {dimension_semantics = [#tpu.dimension_semantics<arbitrary>], iteration_bounds = array<i64: 1>, scalar_prefetch = 0 : i64, scratch_operands = 0 : i64, tpu.core_type = #tpu.core_type<tc>, window_params = [{pipeline_mode = #tpu.pipeline_mode<synchronous>, transform_indices = @transform_0, window_bounds = array<i64: 32, 64>}, {pipeline_mode = #tpu.pipeline_mode<synchronous>, transform_indices = @transform_1, window_bounds = array<i64: 64, 1058>}, {pipeline_mode = #tpu.pipeline_mode<synchronous>, transform_indices = @transform_2, window_bounds = array<i64: 32, 1>}, {pipeline_mode = #tpu.pipeline_mode<synchronous>, transform_indices = @transform_3, window_bounds = array<i64: 32, 1058>}]} {
    %c0 = arith.constant 0 : index
    %c0_0 = arith.constant 0 : index
    %0 = vector.load %arg1[%c0, %c0_0] : memref<32x64xf32, #tpu.memory_space<vmem>>, vector<32x64xf32>
    %c0_1 = arith.constant 0 : index
    %c0_2 = arith.constant 0 : index
    %1 = vector.load %arg2[%c0_1, %c0_2] : memref<64x1058xf32, #tpu.memory_space<vmem>>, vector<64x1058xf32>
    %cst = arith.constant dense<0.000000e+00> : vector<32x1058xf32>
    %2 = tpu.matmul %0, %1, %cst {dimension_numbers = #tpu.dot_dimension_numbers<[1], [0], [0], [1], [0, 0, 1, 1], [], []>} : vector<32x64xf32>, vector<64x1058xf32>, vector<32x1058xf32> -> vector<32x1058xf32>
    %c0_3 = arith.constant 0 : index
    %c0_4 = arith.constant 0 : index
    %3 = vector.load %arg3[%c0_3, %c0_4] : memref<32x1xf32, #tpu.memory_space<vmem>>, vector<32x1xf32>
    %4 = vector.broadcast %3 : vector<32x1xf32> to vector<32x1058xf32>
    %5 = arith.addf %2, %4 : vector<32x1058xf32>
    %cst_5 = arith.constant 0.000000e+00 : f32
    %6 = vector.broadcast %cst_5 : f32 to vector<32x1058xf32>
    %7 = arith.maximumf %5, %6 : vector<32x1058xf32>
    %c0_6 = arith.constant 0 : index
    %c0_7 = arith.constant 0 : index
    %8 = vector.load %arg4[%c0_6, %c0_7] : memref<32x1058xf32, #tpu.memory_space<vmem>>, vector<32x1058xf32>
    tpu.vector_store %arg4[%c0_6, %c0_7], %7 {strides = array<i32>} : memref<32x1058xf32, #tpu.memory_space<vmem>>, vector<32x1058xf32>,
    return
  }
  func.func @transform_0(%arg0: i32) -> (i32, i32) {
    %c0_i32 = arith.constant 0 : i32
    %c0_i32_0 = arith.constant 0 : i32
    %c0_i32_1 = arith.constant 0 : i32
    return %c0_i32, %c0_i32_0 : i32, i32
  }
  func.func @transform_1(%arg0: i32) -> (i32, i32) {
    %c0_i32 = arith.constant 0 : i32
    %c0_i32_0 = arith.constant 0 : i32
    %c0_i32_1 = arith.constant 0 : i32
    return %c0_i32, %c0_i32_0 : i32, i32
  }
  func.func @transform_2(%arg0: i32) -> (i32, i32) {
    %c0_i32 = arith.constant 0 : i32
    %c0_i32_0 = arith.constant 0 : i32
    %c0_i32_1 = arith.constant 0 : i32
    return %c0_i32, %c0_i32_0 : i32, i32
  }
  func.func @transform_3(%arg0: i32) -> (i32, i32) {
    %c0_i32 = arith.constant 0 : i32
    %c0_i32_0 = arith.constant 0 : i32
    %c0_i32_1 = arith.constant 0 : i32
    return %c0_i32, %c0_i32_0 : i32, i32
  }
}

module attributes {stable_mosaic.version = 11 : i64} {
  func.func @_conv_relu_kernel(%arg0: i32, %arg1: memref<64x512xf32, #tpu.memory_space<vmem>>, %arg2: memref<512x200xf32, #tpu.memory_space<vmem>>, %arg3: memref<64x1xf32, #tpu.memory_space<vmem>>, %arg4: memref<64x200xf32, #tpu.memory_space<vmem>>) attributes {dimension_semantics = [#tpu.dimension_semantics<arbitrary>], iteration_bounds = array<i64: 1>, scalar_prefetch = 0 : i64, scratch_operands = 0 : i64, tpu.core_type = #tpu.core_type<tc>, window_params = [{pipeline_mode = #tpu.pipeline_mode<synchronous>, transform_indices = @transform_0, window_bounds = array<i64: 64, 512>}, {pipeline_mode = #tpu.pipeline_mode<synchronous>, transform_indices = @transform_1, window_bounds = array<i64: 512, 200>}, {pipeline_mode = #tpu.pipeline_mode<synchronous>, transform_indices = @transform_2, window_bounds = array<i64: 64, 1>}, {pipeline_mode = #tpu.pipeline_mode<synchronous>, transform_indices = @transform_3, window_bounds = array<i64: 64, 200>}]} {
    %c0 = arith.constant 0 : index
    %c0_0 = arith.constant 0 : index
    %0 = vector.load %arg1[%c0, %c0_0] : memref<64x512xf32, #tpu.memory_space<vmem>>, vector<64x512xf32>
    %c0_1 = arith.constant 0 : index
    %c0_2 = arith.constant 0 : index
    %1 = vector.load %arg2[%c0_1, %c0_2] : memref<512x200xf32, #tpu.memory_space<vmem>>, vector<512x200xf32>
    %cst = arith.constant dense<0.000000e+00> : vector<64x200xf32>
    %2 = tpu.matmul %0, %1, %cst {dimension_numbers = #tpu.dot_dimension_numbers<[1], [0], [0], [1], [0, 0, 1, 1], [], []>} : vector<64x512xf32>, vector<512x200xf32>, vector<64x200xf32> -> vector<64x200xf32>
    %c0_3 = arith.constant 0 : index
    %c0_4 = arith.constant 0 : index
    %3 = vector.load %arg3[%c0_3, %c0_4] : memref<64x1xf32, #tpu.memory_space<vmem>>, vector<64x1xf32>
    %4 = vector.broadcast %3 : vector<64x1xf32> to vector<64x200xf32>
    %5 = arith.addf %2, %4 : vector<64x200xf32>
    %cst_5 = arith.constant 0.000000e+00 : f32
    %6 = vector.broadcast %cst_5 : f32 to vector<64x200xf32>
    %7 = arith.maximumf %5, %6 : vector<64x200xf32>
    %c0_6 = arith.constant 0 : index
    %c0_7 = arith.constant 0 : index
    %8 = vector.load %arg4[%c0_6, %c0_7] : memref<64x200xf32, #tpu.memory_space<vmem>>, vector<64x200xf32>
    tpu.vector_store %arg4[%c0_6, %c0_7], %7 {strides = array<i32>} : memref<64x200xf32, #tpu.memory_space<vmem>>, vector<64x200xf32>,
    return
  }
  func.func @transform_0(%arg0: i32) -> (i32, i32) {
    %c0_i32 = arith.constant 0 : i32
    %c0_i32_0 = arith.constant 0 : i32
    %c0_i32_1 = arith.constant 0 : i32
    return %c0_i32, %c0_i32_0 : i32, i32
  }
  func.func @transform_1(%arg0: i32) -> (i32, i32) {
    %c0_i32 = arith.constant 0 : i32
    %c0_i32_0 = arith.constant 0 : i32
    %c0_i32_1 = arith.constant 0 : i32
    return %c0_i32, %c0_i32_0 : i32, i32
  }
  func.func @transform_2(%arg0: i32) -> (i32, i32) {
    %c0_i32 = arith.constant 0 : i32
    %c0_i32_0 = arith.constant 0 : i32
    %c0_i32_1 = arith.constant 0 : i32
    return %c0_i32, %c0_i32_0 : i32, i32
  }
  func.func @transform_3(%arg0: i32) -> (i32, i32) {
    %c0_i32 = arith.constant 0 : i32
    %c0_i32_0 = arith.constant 0 : i32
    %c0_i32_1 = arith.constant 0 : i32
    return %c0_i32, %c0_i32_0 : i32, i32
  }
}

module attributes {stable_mosaic.version = 11 : i64} {
  func.func @_conv_relu_mask_kernel(%arg0: i32, %arg1: memref<32x1024xf32, #tpu.memory_space<vmem>>, %arg2: memref<1024x32xf32, #tpu.memory_space<vmem>>, %arg3: memref<32x1xf32, #tpu.memory_space<vmem>>, %arg4: memref<32x32xf32, #tpu.memory_space<vmem>>, %arg5: memref<32x32xf32, #tpu.memory_space<vmem>>) attributes {dimension_semantics = [#tpu.dimension_semantics<arbitrary>], iteration_bounds = array<i64: 1>, scalar_prefetch = 0 : i64, scratch_operands = 0 : i64, tpu.core_type = #tpu.core_type<tc>, window_params = [{pipeline_mode = #tpu.pipeline_mode<synchronous>, transform_indices = @transform_0, window_bounds = array<i64: 32, 1024>}, {pipeline_mode = #tpu.pipeline_mode<synchronous>, transform_indices = @transform_1, window_bounds = array<i64: 1024, 32>}, {pipeline_mode = #tpu.pipeline_mode<synchronous>, transform_indices = @transform_2, window_bounds = array<i64: 32, 1>}, {pipeline_mode = #tpu.pipeline_mode<synchronous>, transform_indices = @transform_3, window_bounds = array<i64: 32, 32>}, {pipeline_mode = #tpu.pipeline_mode<synchronous>, transform_indices = @transform_4, window_bounds = array<i64: 32, 32>}]} {
    %c0 = arith.constant 0 : index
    %c0_0 = arith.constant 0 : index
    %0 = vector.load %arg1[%c0, %c0_0] : memref<32x1024xf32, #tpu.memory_space<vmem>>, vector<32x1024xf32>
    %c0_1 = arith.constant 0 : index
    %c0_2 = arith.constant 0 : index
    %1 = vector.load %arg2[%c0_1, %c0_2] : memref<1024x32xf32, #tpu.memory_space<vmem>>, vector<1024x32xf32>
    %cst = arith.constant dense<0.000000e+00> : vector<32x32xf32>
    %2 = tpu.matmul %0, %1, %cst {dimension_numbers = #tpu.dot_dimension_numbers<[1], [0], [0], [1], [0, 0, 1, 1], [], []>} : vector<32x1024xf32>, vector<1024x32xf32>, vector<32x32xf32> -> vector<32x32xf32>
    %c0_3 = arith.constant 0 : index
    %c0_4 = arith.constant 0 : index
    %3 = vector.load %arg3[%c0_3, %c0_4] : memref<32x1xf32, #tpu.memory_space<vmem>>, vector<32x1xf32>
    %4 = vector.broadcast %3 : vector<32x1xf32> to vector<32x32xf32>
    %5 = arith.addf %2, %4 : vector<32x32xf32>
    %c0_5 = arith.constant 0 : index
    %c0_6 = arith.constant 0 : index
    %6 = vector.load %arg4[%c0_5, %c0_6] : memref<32x32xf32, #tpu.memory_space<vmem>>, vector<32x32xf32>
    %7 = arith.mulf %5, %6 : vector<32x32xf32>
    %cst_7 = arith.constant 0.000000e+00 : f32
    %8 = vector.broadcast %cst_7 : f32 to vector<32x32xf32>
    %9 = arith.maximumf %7, %8 : vector<32x32xf32>
    %c0_8 = arith.constant 0 : index
    %c0_9 = arith.constant 0 : index
    %10 = vector.load %arg5[%c0_8, %c0_9] : memref<32x32xf32, #tpu.memory_space<vmem>>, vector<32x32xf32>
    tpu.vector_store %arg5[%c0_8, %c0_9], %9 {strides = array<i32>} : memref<32x32xf32, #tpu.memory_space<vmem>>, vector<32x32xf32>,
    return
  }
  func.func @transform_0(%arg0: i32) -> (i32, i32) {
    %c0_i32 = arith.constant 0 : i32
    %c0_i32_0 = arith.constant 0 : i32
    %c0_i32_1 = arith.constant 0 : i32
    return %c0_i32, %c0_i32_0 : i32, i32
  }
  func.func @transform_1(%arg0: i32) -> (i32, i32) {
    %c0_i32 = arith.constant 0 : i32
    %c0_i32_0 = arith.constant 0 : i32
    %c0_i32_1 = arith.constant 0 : i32
    return %c0_i32, %c0_i32_0 : i32, i32
  }
  func.func @transform_2(%arg0: i32) -> (i32, i32) {
    %c0_i32 = arith.constant 0 : i32
    %c0_i32_0 = arith.constant 0 : i32
    %c0_i32_1 = arith.constant 0 : i32
    return %c0_i32, %c0_i32_0 : i32, i32
  }
  func.func @transform_3(%arg0: i32) -> (i32, i32) {
    %c0_i32 = arith.constant 0 : i32
    %c0_i32_0 = arith.constant 0 : i32
    %c0_i32_1 = arith.constant 0 : i32
    return %c0_i32, %c0_i32_0 : i32, i32
  }
  func.func @transform_4(%arg0: i32) -> (i32, i32) {
    %c0_i32 = arith.constant 0 : i32
    %c0_i32_0 = arith.constant 0 : i32
    %c0_i32_1 = arith.constant 0 : i32
    return %c0_i32, %c0_i32_0 : i32, i32
  }
}

module attributes {stable_mosaic.version = 11 : i64} {
  func.func @_tail_kernel(%arg0: i32, %arg1: memref<4x256xf32, #tpu.memory_space<vmem>>, %arg2: memref<256x256xf32, #tpu.memory_space<vmem>>, %arg3: memref<1x256xf32, #tpu.memory_space<vmem>>, %arg4: memref<256x128xf32, #tpu.memory_space<vmem>>, %arg5: memref<1x128xf32, #tpu.memory_space<vmem>>, %arg6: memref<128x128xf32, #tpu.memory_space<vmem>>, %arg7: memref<1x128xf32, #tpu.memory_space<vmem>>, %arg8: memref<1x128xf32, #tpu.memory_space<vmem>>, %arg9: memref<1x128xf32, #tpu.memory_space<vmem>>, %arg10: memref<128x512xf32, #tpu.memory_space<vmem>>, %arg11: memref<128x512xf32, #tpu.memory_space<vmem>>, %arg12: memref<1x512xf32, #tpu.memory_space<vmem>>, %arg13: memref<128x128xf32, #tpu.memory_space<vmem>>, %arg14: memref<1x128xf32, #tpu.memory_space<vmem>>, %arg15: memref<4x128xf32, #tpu.memory_space<vmem>>, %arg16: memref<1x128xf32, #tpu.memory_space<vmem>>, %arg17: memref<1x128xf32, #tpu.memory_space<vmem>>, %arg18: memref<1x128xf32, #tpu.memory_space<vmem>>, %arg19: memref<1x128xf32, #tpu.memory_space<vmem>>) attributes {dimension_semantics = [#tpu.dimension_semantics<arbitrary>], iteration_bounds = array<i64: 1>, scalar_prefetch = 0 : i64, scratch_operands = 0 : i64, tpu.core_type = #tpu.core_type<tc>, window_params = [{pipeline_mode = #tpu.pipeline_mode<synchronous>, transform_indices = @transform_0, window_bounds = array<i64: 4, 256>}, {pipeline_mode = #tpu.pipeline_mode<synchronous>, transform_indices = @transform_1, window_bounds = array<i64: 256, 256>}, {pipeline_mode = #tpu.pipeline_mode<synchronous>, transform_indices = @transform_2, window_bounds = array<i64: 1, 256>}, {pipeline_mode = #tpu.pipeline_mode<synchronous>, transform_indices = @transform_3, window_bounds = array<i64: 256, 128>}, {pipeline_mode = #tpu.pipeline_mode<synchronous>, transform_indices = @transform_4, window_bounds = array<i64: 1, 128>}, {pipeline_mode = #tpu.pipeline_mode<synchronous>, transform_indices = @transform_5, window_bounds = array<i64: 128, 128>}, {pipeline_mode = #tpu.pipeline_mode<synchronous>, transform_indices = @transform_6, window_bounds = array<i64: 1, 128>}, {pipeline_mode = #tpu.pipeline_mode<synchronous>, transform_indices = @transform_7, window_bounds = array<i64: 1, 128>}, {pipeline_mode = #tpu.pipeline_mode<synchronous>, transform_indices = @transform_8, window_bounds = array<i64: 1, 128>}, {pipeline_mode = #tpu.pipeline_mode<synchronous>, transform_indices = @transform_9, window_bounds = array<i64: 128, 512>}, {pipeline_mode = #tpu.pipeline_mode<synchronous>, transform_indices = @transform_10, window_bounds = array<i64: 128, 512>}, {pipeline_mode = #tpu.pipeline_mode<synchronous>, transform_indices = @transform_11, window_bounds = array<i64: 1, 512>}, {pipeline_mode = #tpu.pipeline_mode<synchronous>, transform_indices = @transform_12, window_bounds = array<i64: 128, 128>}, {pipeline_mode = #tpu.pipeline_mode<synchronous>, transform_indices = @transform_13, window_bounds = array<i64: 1, 128>}, {pipeline_mode = #tpu.pipeline_mode<synchronous>, transform_indices = @transform_14, window_bounds = array<i64: 4, 128>}, {pipeline_mode = #tpu.pipeline_mode<synchronous>, transform_indices = @transform_15, window_bounds = array<i64: 1, 128>}, {pipeline_mode = #tpu.pipeline_mode<synchronous>, transform_indices = @transform_16, window_bounds = array<i64: 1, 128>}, {pipeline_mode = #tpu.pipeline_mode<synchronous>, transform_indices = @transform_17, window_bounds = array<i64: 1, 128>}, {pipeline_mode = #tpu.pipeline_mode<synchronous>, transform_indices = @transform_18, window_bounds = array<i64: 1, 128>}]} {
    %c0 = arith.constant 0 : index
    %c0_0 = arith.constant 0 : index
    %0 = vector.load %arg1[%c0, %c0_0] : memref<4x256xf32, #tpu.memory_space<vmem>>, vector<4x256xf32>
    %c0_1 = arith.constant 0 : index
    %c0_2 = arith.constant 0 : index
    %1 = vector.load %arg2[%c0_1, %c0_2] : memref<256x256xf32, #tpu.memory_space<vmem>>, vector<256x256xf32>
    %cst = arith.constant dense<0.000000e+00> : vector<4x256xf32>
    %2 = tpu.matmul %0, %1, %cst {dimension_numbers = #tpu.dot_dimension_numbers<[1], [0], [0], [1], [0, 0, 1, 1], [], []>} : vector<4x256xf32>, vector<256x256xf32>, vector<4x256xf32> -> vector<4x256xf32>
    %c0_3 = arith.constant 0 : index
    %c0_4 = arith.constant 0 : index
    %3 = vector.load %arg3[%c0_3, %c0_4] : memref<1x256xf32, #tpu.memory_space<vmem>>, vector<1x256xf32>
    %4 = vector.broadcast %3 : vector<1x256xf32> to vector<4x256xf32>
    %5 = arith.addf %2, %4 : vector<4x256xf32>
    %cst_5 = arith.constant 0.000000e+00 : f32
    %6 = vector.broadcast %cst_5 : f32 to vector<4x256xf32>
    %7 = arith.maximumf %5, %6 : vector<4x256xf32>
    %c0_6 = arith.constant 0 : index
    %c0_7 = arith.constant 0 : index
    %8 = vector.load %arg4[%c0_6, %c0_7] : memref<256x128xf32, #tpu.memory_space<vmem>>, vector<256x128xf32>
    %cst_8 = arith.constant dense<0.000000e+00> : vector<4x128xf32>
    %9 = tpu.matmul %7, %8, %cst_8 {dimension_numbers = #tpu.dot_dimension_numbers<[1], [0], [0], [1], [0, 0, 1, 1], [], []>} : vector<4x256xf32>, vector<256x128xf32>, vector<4x128xf32> -> vector<4x128xf32>
    %c0_9 = arith.constant 0 : index
    %c0_10 = arith.constant 0 : index
    %10 = vector.load %arg5[%c0_9, %c0_10] : memref<1x128xf32, #tpu.memory_space<vmem>>, vector<1x128xf32>
    %11 = vector.broadcast %10 : vector<1x128xf32> to vector<4x128xf32>
    %12 = arith.addf %9, %11 : vector<4x128xf32>
    %cst_11 = arith.constant 0.000000e+00 : f32
    %13 = vector.broadcast %cst_11 : f32 to vector<4x128xf32>
    %14 = arith.maximumf %12, %13 : vector<4x128xf32>
    %c0_12 = arith.constant 0 : index
    %c0_13 = arith.constant 0 : index
    %15 = vector.load %arg6[%c0_12, %c0_13] : memref<128x128xf32, #tpu.memory_space<vmem>>, vector<128x128xf32>
    %cst_14 = arith.constant dense<0.000000e+00> : vector<4x128xf32>
    %16 = tpu.matmul %14, %15, %cst_14 {dimension_numbers = #tpu.dot_dimension_numbers<[1], [0], [0], [1], [0, 0, 1, 1], [], []>} : vector<4x128xf32>, vector<128x128xf32>, vector<4x128xf32> -> vector<4x128xf32>
    %c0_15 = arith.constant 0 : index
    %c0_16 = arith.constant 0 : index
    %17 = vector.load %arg7[%c0_15, %c0_16] : memref<1x128xf32, #tpu.memory_space<vmem>>, vector<1x128xf32>
    %18 = vector.broadcast %17 : vector<1x128xf32> to vector<4x128xf32>
    %19 = arith.addf %16, %18 : vector<4x128xf32>
    %cst_17 = arith.constant 0.000000e+00 : f32
    %20 = vector.broadcast %cst_17 : f32 to vector<4x128xf32>
    %21 = arith.maximumf %19, %20 : vector<4x128xf32>
    %c0_18 = arith.constant 0 : index
    %c0_19 = arith.constant 0 : index
    %22 = vector.load %arg10[%c0_18, %c0_19] : memref<128x512xf32, #tpu.memory_space<vmem>>, vector<128x512xf32>
    %cst_20 = arith.constant dense<0.000000e+00> : vector<4x512xf32>
    %23 = tpu.matmul %21, %22, %cst_20 {dimension_numbers = #tpu.dot_dimension_numbers<[1], [0], [0], [1], [0, 0, 1, 1], [], []>} : vector<4x128xf32>, vector<128x512xf32>, vector<4x512xf32> -> vector<4x512xf32>
    %c0_21 = arith.constant 0 : index
    %c0_22 = arith.constant 0 : index
    %24 = vector.load %arg12[%c0_21, %c0_22] : memref<1x512xf32, #tpu.memory_space<vmem>>, vector<1x512xf32>
    %25 = vector.broadcast %24 : vector<1x512xf32> to vector<4x512xf32>
    %26 = arith.addf %23, %25 : vector<4x512xf32>
    %c0_23 = arith.constant 0 : index
    %c0_24 = arith.constant 0 : index
    %27 = vector.load %arg11[%c0_23, %c0_24] : memref<128x512xf32, #tpu.memory_space<vmem>>, vector<128x512xf32>
    %c0_25 = arith.constant 0 : index
    %c0_26 = arith.constant 0 : index
    %28 = vector.load %arg8[%c0_25, %c0_26] : memref<1x128xf32, #tpu.memory_space<vmem>>, vector<1x128xf32>
    %c0_27 = arith.constant 0 : index
    %c0_28 = arith.constant 0 : index
    %29 = vector.load %arg9[%c0_27, %c0_28] : memref<1x128xf32, #tpu.memory_space<vmem>>, vector<1x128xf32>
    %30 = vector.extract_strided_slice %26 {offsets = [0, 0], sizes = [1, 512], strides = [1, 1]} : vector<4x512xf32> to vector<1x512xf32>
    %cst_29 = arith.constant dense<0.000000e+00> : vector<1x512xf32>
    %31 = tpu.matmul %28, %27, %cst_29 {dimension_numbers = #tpu.dot_dimension_numbers<[1], [0], [0], [1], [0, 0, 1, 1], [], []>} : vector<1x128xf32>, vector<128x512xf32>, vector<1x512xf32> -> vector<1x512xf32>
    %32 = arith.addf %30, %31 : vector<1x512xf32>
    %33 = vector.extract_strided_slice %32 {offsets = [0, 0], sizes = [1, 128], strides = [1, 1]} : vector<1x512xf32> to vector<1x128xf32>
    %34 = arith.negf %33 : vector<1x128xf32>
    %35 = math.exp %34 : vector<1x128xf32>
    %cst_30 = arith.constant 1.000000e+00 : f32
    %36 = vector.broadcast %cst_30 : f32 to vector<1x128xf32>
    %37 = arith.addf %36, %35 : vector<1x128xf32>
    %38 = arith.divf %36, %37 : vector<1x128xf32>
    %39 = vector.extract_strided_slice %32 {offsets = [0, 128], sizes = [1, 128], strides = [1, 1]} : vector<1x512xf32> to vector<1x128xf32>
    %40 = arith.negf %39 : vector<1x128xf32>
    %41 = math.exp %40 : vector<1x128xf32>
    %cst_31 = arith.constant 1.000000e+00 : f32
    %42 = vector.broadcast %cst_31 : f32 to vector<1x128xf32>
    %43 = arith.addf %42, %41 : vector<1x128xf32>
    %44 = arith.divf %42, %43 : vector<1x128xf32>
    %45 = vector.extract_strided_slice %32 {offsets = [0, 256], sizes = [1, 128], strides = [1, 1]} : vector<1x512xf32> to vector<1x128xf32>
    %46 = math.tanh %45 : vector<1x128xf32>
    %47 = vector.extract_strided_slice %32 {offsets = [0, 384], sizes = [1, 128], strides = [1, 1]} : vector<1x512xf32> to vector<1x128xf32>
    %48 = arith.negf %47 : vector<1x128xf32>
    %49 = math.exp %48 : vector<1x128xf32>
    %cst_32 = arith.constant 1.000000e+00 : f32
    %50 = vector.broadcast %cst_32 : f32 to vector<1x128xf32>
    %51 = arith.addf %50, %49 : vector<1x128xf32>
    %52 = arith.divf %50, %51 : vector<1x128xf32>
    %53 = arith.mulf %44, %29 : vector<1x128xf32>
    %54 = arith.mulf %38, %46 : vector<1x128xf32>
    %55 = arith.addf %53, %54 : vector<1x128xf32>
    %56 = math.tanh %55 : vector<1x128xf32>
    %57 = arith.mulf %52, %56 : vector<1x128xf32>
    %c0_33 = arith.constant 0 : index
    %c0_34 = arith.constant 0 : index
    %58 = vector.load %arg15[%c0_33, %c0_34] : memref<4x128xf32, #tpu.memory_space<vmem>>, vector<1x128xf32>
    tpu.vector_store %arg15[%c0_33, %c0_34], %57 {strides = array<i32>} : memref<4x128xf32, #tpu.memory_space<vmem>>, vector<1x128xf32>,
    %59 = vector.extract_strided_slice %26 {offsets = [1, 0], sizes = [1, 512], strides = [1, 1]} : vector<4x512xf32> to vector<1x512xf32>
    %cst_35 = arith.constant dense<0.000000e+00> : vector<1x512xf32>
    %60 = tpu.matmul %57, %27, %cst_35 {dimension_numbers = #tpu.dot_dimension_numbers<[1], [0], [0], [1], [0, 0, 1, 1], [], []>} : vector<1x128xf32>, vector<128x512xf32>, vector<1x512xf32> -> vector<1x512xf32>
    %61 = arith.addf %59, %60 : vector<1x512xf32>
    %62 = vector.extract_strided_slice %61 {offsets = [0, 0], sizes = [1, 128], strides = [1, 1]} : vector<1x512xf32> to vector<1x128xf32>
    %63 = arith.negf %62 : vector<1x128xf32>
    %64 = math.exp %63 : vector<1x128xf32>
    %cst_36 = arith.constant 1.000000e+00 : f32
    %65 = vector.broadcast %cst_36 : f32 to vector<1x128xf32>
    %66 = arith.addf %65, %64 : vector<1x128xf32>
    %67 = arith.divf %65, %66 : vector<1x128xf32>
    %68 = vector.extract_strided_slice %61 {offsets = [0, 128], sizes = [1, 128], strides = [1, 1]} : vector<1x512xf32> to vector<1x128xf32>
    %69 = arith.negf %68 : vector<1x128xf32>
    %70 = math.exp %69 : vector<1x128xf32>
    %cst_37 = arith.constant 1.000000e+00 : f32
    %71 = vector.broadcast %cst_37 : f32 to vector<1x128xf32>
    %72 = arith.addf %71, %70 : vector<1x128xf32>
    %73 = arith.divf %71, %72 : vector<1x128xf32>
    %74 = vector.extract_strided_slice %61 {offsets = [0, 256], sizes = [1, 128], strides = [1, 1]} : vector<1x512xf32> to vector<1x128xf32>
    %75 = math.tanh %74 : vector<1x128xf32>
    %76 = vector.extract_strided_slice %61 {offsets = [0, 384], sizes = [1, 128], strides = [1, 1]} : vector<1x512xf32> to vector<1x128xf32>
    %77 = arith.negf %76 : vector<1x128xf32>
    %78 = math.exp %77 : vector<1x128xf32>
    %cst_38 = arith.constant 1.000000e+00 : f32
    %79 = vector.broadcast %cst_38 : f32 to vector<1x128xf32>
    %80 = arith.addf %79, %78 : vector<1x128xf32>
    %81 = arith.divf %79, %80 : vector<1x128xf32>
    %82 = arith.mulf %73, %55 : vector<1x128xf32>
    %83 = arith.mulf %67, %75 : vector<1x128xf32>
    %84 = arith.addf %82, %83 : vector<1x128xf32>
    %85 = math.tanh %84 : vector<1x128xf32>
    %86 = arith.mulf %81, %85 : vector<1x128xf32>
    %c1 = arith.constant 1 : index
    %c0_39 = arith.constant 0 : index
    %87 = vector.load %arg15[%c1, %c0_39] : memref<4x128xf32, #tpu.memory_space<vmem>>, vector<1x128xf32>
    tpu.vector_store %arg15[%c1, %c0_39], %86 {strides = array<i32>} : memref<4x128xf32, #tpu.memory_space<vmem>>, vector<1x128xf32>,
    %88 = vector.extract_strided_slice %26 {offsets = [2, 0], sizes = [1, 512], strides = [1, 1]} : vector<4x512xf32> to vector<1x512xf32>
    %cst_40 = arith.constant dense<0.000000e+00> : vector<1x512xf32>
    %89 = tpu.matmul %86, %27, %cst_40 {dimension_numbers = #tpu.dot_dimension_numbers<[1], [0], [0], [1], [0, 0, 1, 1], [], []>} : vector<1x128xf32>, vector<128x512xf32>, vector<1x512xf32> -> vector<1x512xf32>
    %90 = arith.addf %88, %89 : vector<1x512xf32>
    %91 = vector.extract_strided_slice %90 {offsets = [0, 0], sizes = [1, 128], strides = [1, 1]} : vector<1x512xf32> to vector<1x128xf32>
    %92 = arith.negf %91 : vector<1x128xf32>
    %93 = math.exp %92 : vector<1x128xf32>
    %cst_41 = arith.constant 1.000000e+00 : f32
    %94 = vector.broadcast %cst_41 : f32 to vector<1x128xf32>
    %95 = arith.addf %94, %93 : vector<1x128xf32>
    %96 = arith.divf %94, %95 : vector<1x128xf32>
    %97 = vector.extract_strided_slice %90 {offsets = [0, 128], sizes = [1, 128], strides = [1, 1]} : vector<1x512xf32> to vector<1x128xf32>
    %98 = arith.negf %97 : vector<1x128xf32>
    %99 = math.exp %98 : vector<1x128xf32>
    %cst_42 = arith.constant 1.000000e+00 : f32
    %100 = vector.broadcast %cst_42 : f32 to vector<1x128xf32>
    %101 = arith.addf %100, %99 : vector<1x128xf32>
    %102 = arith.divf %100, %101 : vector<1x128xf32>
    %103 = vector.extract_strided_slice %90 {offsets = [0, 256], sizes = [1, 128], strides = [1, 1]} : vector<1x512xf32> to vector<1x128xf32>
    %104 = math.tanh %103 : vector<1x128xf32>
    %105 = vector.extract_strided_slice %90 {offsets = [0, 384], sizes = [1, 128], strides = [1, 1]} : vector<1x512xf32> to vector<1x128xf32>
    %106 = arith.negf %105 : vector<1x128xf32>
    %107 = math.exp %106 : vector<1x128xf32>
    %cst_43 = arith.constant 1.000000e+00 : f32
    %108 = vector.broadcast %cst_43 : f32 to vector<1x128xf32>
    %109 = arith.addf %108, %107 : vector<1x128xf32>
    %110 = arith.divf %108, %109 : vector<1x128xf32>
    %111 = arith.mulf %102, %84 : vector<1x128xf32>
    %112 = arith.mulf %96, %104 : vector<1x128xf32>
    %113 = arith.addf %111, %112 : vector<1x128xf32>
    %114 = math.tanh %113 : vector<1x128xf32>
    %115 = arith.mulf %110, %114 : vector<1x128xf32>
    %c2 = arith.constant 2 : index
    %c0_44 = arith.constant 0 : index
    %116 = vector.load %arg15[%c2, %c0_44] : memref<4x128xf32, #tpu.memory_space<vmem>>, vector<1x128xf32>
    tpu.vector_store %arg15[%c2, %c0_44], %115 {strides = array<i32>} : memref<4x128xf32, #tpu.memory_space<vmem>>, vector<1x128xf32>,
    %117 = vector.extract_strided_slice %26 {offsets = [3, 0], sizes = [1, 512], strides = [1, 1]} : vector<4x512xf32> to vector<1x512xf32>
    %cst_45 = arith.constant dense<0.000000e+00> : vector<1x512xf32>
    %118 = tpu.matmul %115, %27, %cst_45 {dimension_numbers = #tpu.dot_dimension_numbers<[1], [0], [0], [1], [0, 0, 1, 1], [], []>} : vector<1x128xf32>, vector<128x512xf32>, vector<1x512xf32> -> vector<1x512xf32>
    %119 = arith.addf %117, %118 : vector<1x512xf32>
    %120 = vector.extract_strided_slice %119 {offsets = [0, 0], sizes = [1, 128], strides = [1, 1]} : vector<1x512xf32> to vector<1x128xf32>
    %121 = arith.negf %120 : vector<1x128xf32>
    %122 = math.exp %121 : vector<1x128xf32>
    %cst_46 = arith.constant 1.000000e+00 : f32
    %123 = vector.broadcast %cst_46 : f32 to vector<1x128xf32>
    %124 = arith.addf %123, %122 : vector<1x128xf32>
    %125 = arith.divf %123, %124 : vector<1x128xf32>
    %126 = vector.extract_strided_slice %119 {offsets = [0, 128], sizes = [1, 128], strides = [1, 1]} : vector<1x512xf32> to vector<1x128xf32>
    %127 = arith.negf %126 : vector<1x128xf32>
    %128 = math.exp %127 : vector<1x128xf32>
    %cst_47 = arith.constant 1.000000e+00 : f32
    %129 = vector.broadcast %cst_47 : f32 to vector<1x128xf32>
    %130 = arith.addf %129, %128 : vector<1x128xf32>
    %131 = arith.divf %129, %130 : vector<1x128xf32>
    %132 = vector.extract_strided_slice %119 {offsets = [0, 256], sizes = [1, 128], strides = [1, 1]} : vector<1x512xf32> to vector<1x128xf32>
    %133 = math.tanh %132 : vector<1x128xf32>
    %134 = vector.extract_strided_slice %119 {offsets = [0, 384], sizes = [1, 128], strides = [1, 1]} : vector<1x512xf32> to vector<1x128xf32>
    %135 = arith.negf %134 : vector<1x128xf32>
    %136 = math.exp %135 : vector<1x128xf32>
    %cst_48 = arith.constant 1.000000e+00 : f32
    %137 = vector.broadcast %cst_48 : f32 to vector<1x128xf32>
    %138 = arith.addf %137, %136 : vector<1x128xf32>
    %139 = arith.divf %137, %138 : vector<1x128xf32>
    %140 = arith.mulf %131, %113 : vector<1x128xf32>
    %141 = arith.mulf %125, %133 : vector<1x128xf32>
    %142 = arith.addf %140, %141 : vector<1x128xf32>
    %143 = math.tanh %142 : vector<1x128xf32>
    %144 = arith.mulf %139, %143 : vector<1x128xf32>
    %c3 = arith.constant 3 : index
    %c0_49 = arith.constant 0 : index
    %145 = vector.load %arg15[%c3, %c0_49] : memref<4x128xf32, #tpu.memory_space<vmem>>, vector<1x128xf32>
    tpu.vector_store %arg15[%c3, %c0_49], %144 {strides = array<i32>} : memref<4x128xf32, #tpu.memory_space<vmem>>, vector<1x128xf32>,
    %c0_50 = arith.constant 0 : index
    %c0_51 = arith.constant 0 : index
    %146 = vector.load %arg16[%c0_50, %c0_51] : memref<1x128xf32, #tpu.memory_space<vmem>>, vector<1x128xf32>
    tpu.vector_store %arg16[%c0_50, %c0_51], %144 {strides = array<i32>} : memref<1x128xf32, #tpu.memory_space<vmem>>, vector<1x128xf32>,
    %c0_52 = arith.constant 0 : index
    %c0_53 = arith.constant 0 : index
    %147 = vector.load %arg17[%c0_52, %c0_53] : memref<1x128xf32, #tpu.memory_space<vmem>>, vector<1x128xf32>
    tpu.vector_store %arg17[%c0_52, %c0_53], %142 {strides = array<i32>} : memref<1x128xf32, #tpu.memory_space<vmem>>, vector<1x128xf32>,
    %c0_54 = arith.constant 0 : index
    %c0_55 = arith.constant 0 : index
    %148 = vector.load %arg13[%c0_54, %c0_55] : memref<128x128xf32, #tpu.memory_space<vmem>>, vector<128x128xf32>
    %cst_56 = arith.constant dense<0.000000e+00> : vector<1x128xf32>
    %149 = tpu.matmul %57, %148, %cst_56 {dimension_numbers = #tpu.dot_dimension_numbers<[1], [0], [0], [1], [0, 0, 1, 1], [], []>} : vector<1x128xf32>, vector<128x128xf32>, vector<1x128xf32> -> vector<1x128xf32>
    %c0_57 = arith.constant 0 : index
    %c0_58 = arith.constant 0 : index
    %150 = vector.load %arg14[%c0_57, %c0_58] : memref<1x128xf32, #tpu.memory_space<vmem>>, vector<1x128xf32>
    %151 = arith.addf %149, %150 : vector<1x128xf32>
    %c0_59 = arith.constant 0 : index
    %c0_60 = arith.constant 0 : index
    %152 = vector.load %arg18[%c0_59, %c0_60] : memref<1x128xf32, #tpu.memory_space<vmem>>, vector<1x128xf32>
    tpu.vector_store %arg18[%c0_59, %c0_60], %151 {strides = array<i32>} : memref<1x128xf32, #tpu.memory_space<vmem>>, vector<1x128xf32>,
    %153 = tpu.iota {dimensions = array<i32: 1>} : vector<1x128xi32>
    %c3_i32 = arith.constant 3 : i32
    %154 = vector.broadcast %c3_i32 : i32 to vector<1x128xi32>
    %155 = arith.cmpi slt, %153, %154 : vector<1x128xi32>
    %cst_61 = arith.constant 0.699999988 : f32
    %156 = vector.broadcast %cst_61 : f32 to vector<1x128xf32>
    %157 = arith.mulf %151, %156 : vector<1x128xf32>
    %cst_62 = arith.constant -1.000000e+30 : f32
    %158 = vector.broadcast %cst_62 : f32 to vector<1x128xf32>
    %159 = arith.select %155, %157, %158 : vector<1x128xi1>, vector<1x128xf32>
    %cst_63 = arith.constant dense<0xFF800000> : vector<1xf32>
    %160 = vector.multi_reduction <maximumf>, %159, %cst_63 [1] : vector<1x128xf32> to vector<1xf32>
    %161 = vector.shape_cast %160 : vector<1xf32> to vector<1x1xf32>
    %162 = vector.broadcast %161 : vector<1x1xf32> to vector<1x128xf32>
    %163 = arith.subf %157, %162 : vector<1x128xf32>
    %164 = math.exp %163 : vector<1x128xf32>
    %cst_64 = arith.constant 0.000000e+00 : f32
    %165 = vector.broadcast %cst_64 : f32 to vector<1x128xf32>
    %166 = arith.select %155, %164, %165 : vector<1x128xi1>, vector<1x128xf32>
    %cst_65 = arith.constant dense<0.000000e+00> : vector<1xf32>
    %167 = vector.multi_reduction <add>, %166, %cst_65 [1] : vector<1x128xf32> to vector<1xf32>
    %168 = vector.shape_cast %167 : vector<1xf32> to vector<1x1xf32>
    %169 = vector.broadcast %168 : vector<1x1xf32> to vector<1x128xf32>
    %170 = arith.divf %166, %169 : vector<1x128xf32>
    %c0_66 = arith.constant 0 : index
    %c0_67 = arith.constant 0 : index
    %171 = vector.load %arg19[%c0_66, %c0_67] : memref<1x128xf32, #tpu.memory_space<vmem>>, vector<1x128xf32>
    tpu.vector_store %arg19[%c0_66, %c0_67], %170 {strides = array<i32>} : memref<1x128xf32, #tpu.memory_space<vmem>>, vector<1x128xf32>,
    return
  }
  func.func @transform_0(%arg0: i32) -> (i32, i32) {
    %c0_i32 = arith.constant 0 : i32
    %c0_i32_0 = arith.constant 0 : i32
    %c0_i32_1 = arith.constant 0 : i32
    return %c0_i32, %c0_i32_0 : i32, i32
  }
  func.func @transform_1(%arg0: i32) -> (i32, i32) {
    %c0_i32 = arith.constant 0 : i32
    %c0_i32_0 = arith.constant 0 : i32
    %c0_i32_1 = arith.constant 0 : i32
    return %c0_i32, %c0_i32_0 : i32, i32
  }
  func.func @transform_2(%arg0: i32) -> (i32, i32) {
    %c0_i32 = arith.constant 0 : i32
    %c0_i32_0 = arith.constant 0 : i32
    %c0_i32_1 = arith.constant 0 : i32
    return %c0_i32, %c0_i32_0 : i32, i32
  }
  func.func @transform_3(%arg0: i32) -> (i32, i32) {
    %c0_i32 = arith.constant 0 : i32
    %c0_i32_0 = arith.constant 0 : i32
    %c0_i32_1 = arith.constant 0 : i32
    return %c0_i32, %c0_i32_0 : i32, i32
  }
  func.func @transform_4(%arg0: i32) -> (i32, i32) {
    %c0_i32 = arith.constant 0 : i32
    %c0_i32_0 = arith.constant 0 : i32
    %c0_i32_1 = arith.constant 0 : i32
    return %c0_i32, %c0_i32_0 : i32, i32
  }
  func.func @transform_5(%arg0: i32) -> (i32, i32) {
    %c0_i32 = arith.constant 0 : i32
    %c0_i32_0 = arith.constant 0 : i32
    %c0_i32_1 = arith.constant 0 : i32
    return %c0_i32, %c0_i32_0 : i32, i32
  }
  func.func @transform_6(%arg0: i32) -> (i32, i32) {
    %c0_i32 = arith.constant 0 : i32
    %c0_i32_0 = arith.constant 0 : i32
    %c0_i32_1 = arith.constant 0 : i32
    return %c0_i32, %c0_i32_0 : i32, i32
  }
  func.func @transform_7(%arg0: i32) -> (i32, i32) {
    %c0_i32 = arith.constant 0 : i32
    %c0_i32_0 = arith.constant 0 : i32
    %c0_i32_1 = arith.constant 0 : i32
    return %c0_i32, %c0_i32_0 : i32, i32
  }
  func.func @transform_8(%arg0: i32) -> (i32, i32) {
    %c0_i32 = arith.constant 0 : i32
    %c0_i32_0 = arith.constant 0 : i32
    %c0_i32_1 = arith.constant 0 : i32
    return %c0_i32, %c0_i32_0 : i32, i32
  }
  func.func @transform_9(%arg0: i32) -> (i32, i32) {
    %c0_i32 = arith.constant 0 : i32
    %c0_i32_0 = arith.constant 0 : i32
    %c0_i32_1 = arith.constant 0 : i32
    return %c0_i32, %c0_i32_0 : i32, i32
  }
  func.func @transform_10(%arg0: i32) -> (i32, i32) {
    %c0_i32 = arith.constant 0 : i32
    %c0_i32_0 = arith.constant 0 : i32
    %c0_i32_1 = arith.constant 0 : i32
    return %c0_i32, %c0_i32_0 : i32, i32
  }
  func.func @transform_11(%arg0: i32) -> (i32, i32) {
    %c0_i32 = arith.constant 0 : i32
    %c0_i32_0 = arith.constant 0 : i32
    %c0_i32_1 = arith.constant 0 : i32
    return %c0_i32, %c0_i32_0 : i32, i32
  }
  func.func @transform_12(%arg0: i32) -> (i32, i32) {
    %c0_i32 = arith.constant 0 : i32
    %c0_i32_0 = arith.constant 0 : i32
    %c0_i32_1 = arith.constant 0 : i32
    return %c0_i32, %c0_i32_0 : i32, i32
  }
  func.func @transform_13(%arg0: i32) -> (i32, i32) {
    %c0_i32 = arith.constant 0 : i32
    %c0_i32_0 = arith.constant 0 : i32
    %c0_i32_1 = arith.constant 0 : i32
    return %c0_i32, %c0_i32_0 : i32, i32
  }
  func.func @transform_14(%arg0: i32) -> (i32, i32) {
    %c0_i32 = arith.constant 0 : i32
    %c0_i32_0 = arith.constant 0 : i32
    %c0_i32_1 = arith.constant 0 : i32
    return %c0_i32, %c0_i32_0 : i32, i32
  }
  func.func @transform_15(%arg0: i32) -> (i32, i32) {
    %c0_i32 = arith.constant 0 : i32
    %c0_i32_0 = arith.constant 0 : i32
    %c0_i32_1 = arith.constant 0 : i32
    return %c0_i32, %c0_i32_0 : i32, i32
  }
  func.func @transform_16(%arg0: i32) -> (i32, i32) {
    %c0_i32 = arith.constant 0 : i32
    %c0_i32_0 = arith.constant 0 : i32
    %c0_i32_1 = arith.constant 0 : i32
    return %c0_i32, %c0_i32_0 : i32, i32
  }
  func.func @transform_17(%arg0: i32) -> (i32, i32) {
    %c0_i32 = arith.constant 0 : i32
    %c0_i32_0 = arith.constant 0 : i32
    %c0_i32_1 = arith.constant 0 : i32
    return %c0_i32, %c0_i32_0 : i32, i32
  }
  func.func @transform_18(%arg0: i32) -> (i32, i32) {
    %c0_i32 = arith.constant 0 : i32
    %c0_i32_0 = arith.constant 0 : i32
    %c0_i32_1 = arith.constant 0 : i32
    return %c0_i32, %c0_i32_0 : i32, i32
  }
}

</mosaic_0001>

<llo_original>
// kernel: policy_forward.4
$region0: #{policy_forward.4}
  #allocation0 [shape = 'u32[]', space=smem, size = 0x4, offset = 0x4, fixed_abs, tag = 'smem constant byte address 0x4 - core index']
  #allocation1 [shape = 'u32[144,128]{1,0:T(1,128)}', space=vmem, size = 0x12000, scoped, tag = 'internal scratch']
  %s0 = inlined_call_operand.hbm [shape: f32[32,64], index: 0, kind: input, shape index: {}]
  %s1 = inlined_call_operand.vmem [shape: f32[64,1058], index: 1, kind: input, shape index: {}]
  %s2 = inlined_call_operand.vmem [shape: f32[32,1], index: 2, kind: input, shape index: {}]
  %s3 = inlined_call_operand.vmem [shape: f32[32,1058], index: 3, kind: output, shape index: {}]
  %s4 = sld [smem:[#allocation0]]
  $region26: #{policy_forward.4} parent=0
    _
  %s6 = ssub.s32 1, %s4
  %s7 = scalar_select 0, %s6, %s4
  $region1: #{policy_forward.4} parent=0
    #allocation2 [shape = 'u8[16384]{0}', space=vmem, size = 0x4000, scoped, tag = 'input window, operand 0, single buffered']
    #allocation3 [shape = 's32[1]{0}', space=sflag, size = 0x4, scoped, tag = 'scoped memory for policy_forward.4']
    %8 = vsyncpa [#allocation3], 0
    // Predicated region
    $region2: #{policy_forward.4} parent=1 // pred_check
      _
    $region3: #{policy_forward.4} parent=1 // pred_check_branch
      %10 = sbr.rel (0) target = $region5
    $region4: #{policy_forward.4} parent=1 // pred_region
      %s12 = ssub.s32 512, 512
      %13 = vsyncadd [#allocation3], %s12
      %s14 = sshll.u32 [#allocation2], 4
      %s15 = int_to_ptr.vmem [resolvable:$true] %s14
      %20 = dma.hbm_to_vmem [thread:$0]  %s0, 512, %s15, [#allocation3], 128, 128, 8
    $region5: #{policy_forward.4} parent=1 // pred_fallthru
      _
    // Predicated region
    $region6: #{policy_forward.4} parent=1 // pred_check
      _
    $region7: #{policy_forward.4} parent=1 // pred_check_branch
      %22 = sbr.rel (0) target = $region9
    $region8: #{policy_forward.4} parent=1 // pred_region
      _
    $region9: #{policy_forward.4} parent=1 // pred_fallthru
      _
    // Predicated region
    $region10: #{policy_forward.4} parent=1 // pred_check
      _
    $region11: #{policy_forward.4} parent=1 // pred_check_branch
      %24 = sbr.rel (0) target = $region13
    $region12: #{policy_forward.4} parent=1 // pred_region
      _
    $region13: #{policy_forward.4} parent=1 // pred_fallthru
      _
    // Predicated region
    $region14: #{policy_forward.4} parent=1 // pred_check
      _
    $region15: #{policy_forward.4} parent=1 // pred_check_branch
      %26 = sbr.rel (0) target = $region17
    $region16: #{policy_forward.4} parent=1 // pred_region
      %27 = dma.done [#allocation3], 512
    $region17: #{policy_forward.4} parent=1 // pred_fallthru
      _
    %v28 = vld [vmem:[#allocation2] sm:$0xff]
    %v29 = vld [vmem:[#allocation2 + $0x8] sm:$0xff]
    %v30 = vld [vmem:[#allocation2 + $0x10] sm:$0xff]
    %v31 = vld [vmem:[#allocation2 + $0x18] sm:$0xff]
    %v32 = vld [vmem:[%s1] sm:$0xff]
    %v33 = vld [vmem:[%s1 + $0x8] sm:$0xff]
    %v34 = vld [vmem:[%s1 + $0x10] sm:$0xff]
    %v35 = vld [vmem:[%s1 + $0x18] sm:$0xff]
    %v36 = vld [vmem:[%s1 + $0x20] sm:$0xff]
    %v37 = vld [vmem:[%s1 + $0x28] sm:$0xff]
    %v38 = vld [vmem:[%s1 + $0x30] sm:$0xff]
    %v39 = vld [vmem:[%s1 + $0x38] sm:$0xff]
    %v40 = vld [vmem:[%s1 + $0x40] sm:$0xff]
    %v41 = vld [vmem:[%s1 + $0x48] sm:$0xff]
    %v42 = vld [vmem:[%s1 + $0x50] sm:$0xff]
    %v43 = vld [vmem:[%s1 + $0x58] sm:$0xff]
    %v44 = vld [vmem:[%s1 + $0x60] sm:$0xff]
    %v45 = vld [vmem:[%s1 + $0x68] sm:$0xff]
    %v46 = vld [vmem:[%s1 + $0x70] sm:$0xff]
    %v47 = vld [vmem:[%s1 + $0x78] sm:$0xff]
    %v48 = vld [vmem:[%s1 + $0x80] sm:$0xff]
    %v49 = vld [vmem:[%s1 + $0x88] sm:$0xff]
    %v50 = vld [vmem:[%s1 + $0x90] sm:$0xff]
    %v51 = vld [vmem:[%s1 + $0x98] sm:$0xff]
    %v52 = vld [vmem:[%s1 + $0xa0] sm:$0xff]
    %v53 = vld [vmem:[%s1 + $0xa8] sm:$0xff]
    %v54 = vld [vmem:[%s1 + $0xb0] sm:$0xff]
    %v55 = vld [vmem:[%s1 + $0xb8] sm:$0xff]
    %v56 = vld [vmem:[%s1 + $0xc0] sm:$0xff]
    %v57 = vld [vmem:[%s1 + $0xc8] sm:$0xff]
    %v58 = vld [vmem:[%s1 + $0xd0] sm:$0xff]
    %v59 = vld [vmem:[%s1 + $0xd8] sm:$0xff]
    %v60 = vld [vmem:[%s1 + $0xe0] sm:$0xff]
    %v61 = vld [vmem:[%s1 + $0xe8] sm:$0xff]
    %v62 = vld [vmem:[%s1 + $0xf0] sm:$0xff]
    %v63 = vld [vmem:[%s1 + $0xf8] sm:$0xff]
    %v64 = vld [vmem:[%s1 + $0x100] sm:$0xff]
    %v65 = vld [vmem:[%s1 + $0x108] sm:$0xff]
    %v66 = vld [vmem:[%s1 + $0x110] sm:$0xff]
    %v67 = vld [vmem:[%s1 + $0x118] sm:$0xff]
    %v68 = vld [vmem:[%s1 + $0x120] sm:$0xff]
    %v69 = vld [vmem:[%s1 + $0x128] sm:$0xff]
    %v70 = vld [vmem:[%s1 + $0x130] sm:$0xff]
    %v71 = vld [vmem:[%s1 + $0x138] sm:$0xff]
    %v72 = vld [vmem:[%s1 + $0x140] sm:$0xff]
    %v73 = vld [vmem:[%s1 + $0x148] sm:$0xff]
    %v74 = vld [vmem:[%s1 + $0x150] sm:$0xff]
    %v75 = vld [vmem:[%s1 + $0x158] sm:$0xff]
    %v76 = vld [vmem:[%s1 + $0x160] sm:$0xff]
    %v77 = vld [vmem:[%s1 + $0x168] sm:$0xff]
    %v78 = vld [vmem:[%s1 + $0x170] sm:$0xff]
    %v79 = vld [vmem:[%s1 + $0x178] sm:$0xff]
    %v80 = vld [vmem:[%s1 + $0x180] sm:$0xff]
    %v81 = vld [vmem:[%s1 + $0x188] sm:$0xff]
    %v82 = vld [vmem:[%s1 + $0x190] sm:$0xff]
    %v83 = vld [vmem:[%s1 + $0x198] sm:$0xff]
    %v84 = vld [vmem:[%s1 + $0x1a0] sm:$0xff]
    %v85 = vld [vmem:[%s1 + $0x1a8] sm:$0xff]
    %v86 = vld [vmem:[%s1 + $0x1b0] sm:$0xff]
    %v87 = vld [vmem:[%s1 + $0x1b8] sm:$0xff]
    %v88 = vld [vmem:[%s1 + $0x1c0] sm:$0xff]
    %v89 = vld [vmem:[%s1 + $0x1c8] sm:$0xff]
    %v90 = vld [vmem:[%s1 + $0x1d0] sm:$0xff]
    %v91 = vld [vmem:[%s1 + $0x1d8] sm:$0xff]
    %v92 = vld [vmem:[%s1 + $0x1e0] sm:$0xff]
    %v93 = vld [vmem:[%s1 + $0x1e8] sm:$0xff]
    %v94 = vld [vmem:[%s1 + $0x1f0] sm:$0xff]
    %v95 = vld [vmem:[%s1 + $0x1f8] sm:$0xff]
    %v96 = vld [vmem:[%s1 + $0x200] sm:$0xff]
    %v97 = vld [vmem:[%s1 + $0x208] sm:$0xff]
    %v98 = vld [vmem:[%s1 + $0x210] sm:$0xff]
    %v99 = vld [vmem:[%s1 + $0x218] sm:$0xff]
    %v100 = vld [vmem:[%s1 + $0x220] sm:$0xff]
    %v101 = vld [vmem:[%s1 + $0x228] sm:$0xff]
    %v102 = vld [vmem:[%s1 + $0x230] sm:$0xff]
    %v103 = vld [vmem:[%s1 + $0x238] sm:$0xff]
    %v104 = vld [vmem:[%s2] sm:$0xff]
    %v105 = vld [vmem:[%s2 + $0x8] sm:$0xff]
    %v106 = vld [vmem:[%s2 + $0x10] sm:$0xff]
    %v107 = vld [vmem:[%s2 + $0x18] sm:$0xff]
    %109 = vset.pattern.permute.xlu0 0
    %110 = vperm.xlu0 %109, %v104
    %v111 = vpop.permute.xlu0 %110
    %114 = vset.pattern.permute.xlu0 0
    %115 = vperm.xlu0 %114, %v105
    %v116 = vpop.permute.xlu0 %115
    %119 = vset.pattern.permute.xlu0 0
    %120 = vperm.xlu0 %119, %v106
    %v121 = vpop.permute.xlu0 %120
    %124 = vset.pattern.permute.xlu0 0
    %125 = vperm.xlu0 %124, %v107
    %v126 = vpop.permute.xlu0 %125
    %vm128 = vcmask 523264
    %v130 = vsel %vm128, %v28, 0
    %v133 = vsel %vm128, %v29, 0
    %v136 = vsel %vm128, %v30, 0
    %v139 = vsel %vm128, %v31, 0
    %141 = vmatprep.subr.mxu0 0.0
    %142 = vmatpush1.msra.mxu0 0.0
    %143 = vmatprep.subr.mxu0 0.0
    %144 = vmatpush1.msra.mxu0 0.0
    %145 = vmatprep.subr.mxu0 0.0
    %146 = vmatpush1.msra.mxu0 0.0
    %147 = vmatprep.subr.mxu0 0.0
    %148 = vmatpush1.msra.mxu0 0.0
    %149 = vmatprep.subr.mxu0 0.0
    %150 = vmatpush1.msra.mxu0 0.0
    %151 = vmatprep.subr.mxu0 0.0
    %152 = vmatpush1.msra.mxu0 0.0
    %153 = vmatprep.subr.mxu0 0.0
    %154 = vmatpush1.msra.mxu0 0.0
    %155 = vmatprep.subr.mxu0 0.0
    %156 = vmatpush1.msra.mxu0 0.0
    %157 = vmatprep.subr.mxu0 %v96
    %158 = vmatpush1.msra.mxu0 %v95
    %159 = vmatprep.subr.mxu0 %v87
    %160 = vmatpush1.msra.mxu0 %v86
    %161 = vmatprep.subr.mxu0 %v78
    %162 = vmatpush1.msra.mxu0 %v77
    %163 = vmatprep.subr.mxu0 %v69
    %164 = vmatpush1.msra.mxu0 %v68
    %165 = vmatprep.subr.mxu0 %v60
    %166 = vmatpush1.msra.mxu0 %v59
    %167 = vmatprep.subr.mxu0 %v51
    %168 = vmatpush1.msra.mxu0 %v50
    %169 = vmatprep.subr.mxu0 %v42
    %170 = vmatpush1.msra.mxu0 %v41
    %171 = vmatprep.subr.mxu0 %v33
    %172 = vmatpush1.msra.mxu0 %v32
    %173 = vmatprep.subr.mxu0 0.0
    %174 = vmatpush2.msra.mxu0 0.0
    %175 = vmatprep.subr.mxu0 0.0
    %176 = vmatpush2.msra.mxu0 0.0
    %177 = vmatprep.subr.mxu0 0.0
    %178 = vmatpush2.msra.mxu0 0.0
    %179 = vmatprep.subr.mxu0 0.0
    %180 = vmatpush2.msra.mxu0 0.0
    %181 = vmatprep.subr.mxu0 0.0
    %182 = vmatpush2.msra.mxu0 0.0
    %183 = vmatprep.subr.mxu0 0.0
    %184 = vmatpush2.msra.mxu0 0.0
    %185 = vmatprep.subr.mxu0 0.0
    %186 = vmatpush2.msra.mxu0 0.0
    %187 = vmatprep.subr.mxu0 0.0
    %188 = vmatpush2.msra.mxu0 0.0
    %189 = vmatprep.subr.mxu0 0.0
    %190 = vmatpush2.msra.mxu0 0.0
    %191 = vmatprep.subr.mxu0 0.0
    %192 = vmatpush2.msra.mxu0 0.0
    %193 = vmatprep.subr.mxu0 0.0
    %194 = vmatpush2.msra.mxu0 0.0
    %195 = vmatprep.subr.mxu0 0.0
    %196 = vmatpush2.msra.mxu0 0.0
    %197 = vmatprep.subr.mxu0 0.0
    %198 = vmatpush2.msra.mxu0 0.0
    %199 = vmatprep.subr.mxu0 0.0
    %200 = vmatpush2.msra.mxu0 0.0
    %201 = vmatprep.subr.mxu0 0.0
    %202 = vmatpush2.msra.mxu0 0.0
    %203 = vmatprep.subr.mxu0 0.0
    %204 = vmatpush2.msra.mxu0 0.0
    %205 = vmatprep.mubr.f32.mxu0 0.0
    %206 = vmatmul.mubr.f32.gmra.mxu0 %v130
    %v207 = vpop.f32.mrf.mxu0
    %v208 = vadd.f32 %v111, %v207
    %v209 = vpop.f32.mrf.mxu0
    %v210 = vadd.f32 %v111, %v209
    %211 = vmatprep.mubr.f32.mxu0 0.0
    %212 = vmatmul.mubr.f32.gmra.mxu0 %v133
    %v213 = vpop.f32.mrf.mxu0
    %v214 = vadd.f32 %v116, %v213
    %v215 = vpop.f32.mrf.mxu0
    %v216 = vadd.f32 %v116, %v215
    %217 = vmatprep.mubr.f32.mxu0 0.0
    %218 = vmatmul.mubr.f32.gmra.mxu0 %v136
    %v219 = vpop.f32.mrf.mxu0
    %v220 = vadd.f32 %v121, %v219
    %v221 = vpop.f32.mrf.mxu0
    %v222 = vadd.f32 %v121, %v221
    %223 = vmatprep.mubr.f32.mxu0 0.0
    %224 = vmatmul.mubr.f32.gmra.mxu0 %v139
    %v225 = vpop.f32.mrf.mxu0
    %v226 = vadd.f32 %v126, %v225
    %v227 = vpop.f32.mrf.mxu0
    %v228 = vadd.f32 %v126, %v227
    %229 = vdwg.mxu0
    %230 = vmatprep.subr.mxu0 0.0
    %231 = vmatpush1.msra.mxu0 0.0
    %232 = vmatprep.subr.mxu0 0.0
    %233 = vmatpush1.msra.mxu0 0.0
    %234 = vmatprep.subr.mxu0 0.0
    %235 = vmatpush1.msra.mxu0 0.0
    %236 = vmatprep.subr.mxu0 0.0
    %237 = vmatpush1.msra.mxu0 0.0
    %238 = vmatprep.subr.mxu0 0.0
    %239 = vmatpush1.msra.mxu0 0.0
    %240 = vmatprep.subr.mxu0 0.0
    %241 = vmatpush1.msra.mxu0 0.0
    %242 = vmatprep.subr.mxu0 0.0
    %243 = vmatpush1.msra.mxu0 0.0
    %244 = vmatprep.subr.mxu0 0.0
    %245 = vmatpush1.msra.mxu0 0.0
    %246 = vmatprep.subr.mxu0 %v98
    %247 = vmatpush1.msra.mxu0 %v97
    %248 = vmatprep.subr.mxu0 %v89
    %249 = vmatpush1.msra.mxu0 %v88
    %250 = vmatprep.subr.mxu0 %v80
    %251 = vmatpush1.msra.mxu0 %v79
    %252 = vmatprep.subr.mxu0 %v71
    %253 = vmatpush1.msra.mxu0 %v70
    %254 = vmatprep.subr.mxu0 %v62
    %255 = vmatpush1.msra.mxu0 %v61
    %256 = vmatprep.subr.mxu0 %v53
    %257 = vmatpush1.msra.mxu0 %v52
    %258 = vmatprep.subr.mxu0 %v44
    %259 = vmatpush1.msra.mxu0 %v43
    %260 = vmatprep.subr.mxu0 %v35
    %261 = vmatpush1.msra.mxu0 %v34
    %262 = vmatprep.subr.mxu0 0.0
    %263 = vmatpush2.msra.mxu0 0.0
    %264 = vmatprep.subr.mxu0 0.0
    %265 = vmatpush2.msra.mxu0 0.0
    %266 = vmatprep.subr.mxu0 0.0
    %267 = vmatpush2.msra.mxu0 0.0
    %268 = vmatprep.subr.mxu0 0.0
    %269 = vmatpush2.msra.mxu0 0.0
    %270 = vmatprep.subr.mxu0 0.0
    %271 = vmatpush2.msra.mxu0 0.0
    %272 = vmatprep.subr.mxu0 0.0
    %273 = vmatpush2.msra.mxu0 0.0
    %274 = vmatprep.subr.mxu0 0.0
    %275 = vmatpush2.msra.mxu0 0.0
    %276 = vmatprep.subr.mxu0 0.0
    %277 = vmatpush2.msra.mxu0 0.0
    %278 = vmatprep.subr.mxu0 0.0
    %279 = vmatpush2.msra.mxu0 0.0
    %280 = vmatprep.subr.mxu0 0.0
    %281 = vmatpush2.msra.mxu0 0.0
    %282 = vmatprep.subr.mxu0 0.0
    %283 = vmatpush2.msra.mxu0 0.0
    %284 = vmatprep.subr.mxu0 0.0
    %285 = vmatpush2.msra.mxu0 0.0
    %286 = vmatprep.subr.mxu0 0.0
    %287 = vmatpush2.msra.mxu0 0.0
    %288 = vmatprep.subr.mxu0 0.0
    %289 = vmatpush2.msra.mxu0 0.0
    %290 = vmatprep.subr.mxu0 0.0
    %291 = vmatpush2.msra.mxu0 0.0
    %292 = vmatprep.subr.mxu0 0.0
    %293 = vmatpush2.msra.mxu0 0.0
    %294 = vmatprep.mubr.f32.mxu0 0.0
    %295 = vmatmul.mubr.f32.gmra.mxu0 %v130
    %v296 = vpop.f32.mrf.mxu0
    %v297 = vadd.f32 %v111, %v296
    %v298 = vpop.f32.mrf.mxu0
    %v299 = vadd.f32 %v111, %v298
    %300 = vmatprep.mubr.f32.mxu0 0.0
    %301 = vmatmul.mubr.f32.gmra.mxu0 %v133
    %v302 = vpop.f32.mrf.mxu0
    %v303 = vadd.f32 %v116, %v302
    %v304 = vpop.f32.mrf.mxu0
    %v305 = vadd.f32 %v116, %v304
    %306 = vmatprep.mubr.f32.mxu0 0.0
    %307 = vmatmul.mubr.f32.gmra.mxu0 %v136
    %v308 = vpop.f32.mrf.mxu0
    %v309 = vadd.f32 %v121, %v308
    %v310 = vpop.f32.mrf.mxu0
    %v311 = vadd.f32 %v121, %v310
    %312 = vmatprep.mubr.f32.mxu0 0.0
    %313 = vmatmul.mubr.f32.gmra.mxu0 %v139
    %v314 = vpop.f32.mrf.mxu0
    %v315 = vadd.f32 %v126, %v314
    %v316 = vpop.f32.mrf.mxu0
    %v317 = vadd.f32 %v126, %v316
    %318 = vdwg.mxu0
    %319 = vmatprep.subr.mxu0 0.0
    %320 = vmatpush1.msra.mxu0 0.0
    %321 = vmatprep.subr.mxu0 0.0
    %322 = vmatpush1.msra.mxu0 0.0
    %323 = vmatprep.subr.mxu0 0.0
    %324 = vmatpush1.msra.mxu0 0.0
    %325 = vmatprep.subr.mxu0 0.0
    %326 = vmatpush1.msra.mxu0 0.0
    %327 = vmatprep.subr.mxu0 0.0
    %328 = vmatpush1.msra.mxu0 0.0
    %329 = vmatprep.subr.mxu0 0.0
    %330 = vmatpush1.msra.mxu0 0.0
    %331 = vmatprep.subr.mxu0 0.0
    %332 = vmatpush1.msra.mxu0 0.0
    %333 = vmatprep.subr.mxu0 0.0
    %334 = vmatpush1.msra.mxu0 0.0
    %335 = vmatprep.subr.mxu0 %v100
    %336 = vmatpush1.msra.mxu0 %v99
    %337 = vmatprep.subr.mxu0 %v91
    %338 = vmatpush1.msra.mxu0 %v90
    %339 = vmatprep.subr.mxu0 %v82
    %340 = vmatpush1.msra.mxu0 %v81
    %341 = vmatprep.subr.mxu0 %v73
    %342 = vmatpush1.msra.mxu0 %v72
    %343 = vmatprep.subr.mxu0 %v64
    %344 = vmatpush1.msra.mxu0 %v63
    %345 = vmatprep.subr.mxu0 %v55
    %346 = vmatpush1.msra.mxu0 %v54
    %347 = vmatprep.subr.mxu0 %v46
    %348 = vmatpush1.msra.mxu0 %v45
    %349 = vmatprep.subr.mxu0 %v37
    %350 = vmatpush1.msra.mxu0 %v36
    %351 = vmatprep.subr.mxu0 0.0
    %352 = vmatpush2.msra.mxu0 0.0
    %353 = vmatprep.subr.mxu0 0.0
    %354 = vmatpush2.msra.mxu0 0.0
    %355 = vmatprep.subr.mxu0 0.0
    %356 = vmatpush2.msra.mxu0 0.0
    %357 = vmatprep.subr.mxu0 0.0
    %358 = vmatpush2.msra.mxu0 0.0
    %359 = vmatprep.subr.mxu0 0.0
    %360 = vmatpush2.msra.mxu0 0.0
    %361 = vmatprep.subr.mxu0 0.0
    %362 = vmatpush2.msra.mxu0 0.0
    %363 = vmatprep.subr.mxu0 0.0
    %364 = vmatpush2.msra.mxu0 0.0
    %365 = vmatprep.subr.mxu0 0.0
    %366 = vmatpush2.msra.mxu0 0.0
    %367 = vmatprep.subr.mxu0 0.0
    %368 = vmatpush2.msra.mxu0 0.0
    %369 = vmatprep.subr.mxu0 0.0
    %370 = vmatpush2.msra.mxu0 0.0
    %371 = vmatprep.subr.mxu0 0.0
    %372 = vmatpush2.msra.mxu0 0.0
    %373 = vmatprep.subr.mxu0 0.0
    %374 = vmatpush2.msra.mxu0 0.0
    %375 = vmatprep.subr.mxu0 0.0
    %376 = vmatpush2.msra.mxu0 0.0
    %377 = vmatprep.subr.mxu0 0.0
    %378 = vmatpush2.msra.mxu0 0.0
    %379 = vmatprep.subr.mxu0 0.0
    %380 = vmatpush2.msra.mxu0 0.0
    %381 = vmatprep.subr.mxu0 0.0
    %382 = vmatpush2.msra.mxu0 0.0
    %383 = vmatprep.mubr.f32.mxu0 0.0
    %384 = vmatmul.mubr.f32.gmra.mxu0 %v130
    %v385 = vpop.f32.mrf.mxu0
    %v386 = vadd.f32 %v111, %v385
    %v387 = vpop.f32.mrf.mxu0
    %v388 = vadd.f32 %v111, %v387
    %389 = vmatprep.mubr.f32.mxu0 0.0
    %390 = vmatmul.mubr.f32.gmra.mxu0 %v133
    %v391 = vpop.f32.mrf.mxu0
    %v392 = vadd.f32 %v116, %v391
    %v393 = vpop.f32.mrf.mxu0
    %v394 = vadd.f32 %v116, %v393
    %395 = vmatprep.mubr.f32.mxu0 0.0
    %396 = vmatmul.mubr.f32.gmra.mxu0 %v136
    %v397 = vpop.f32.mrf.mxu0
    %v398 = vadd.f32 %v121, %v397
    %v399 = vpop.f32.mrf.mxu0
    %v400 = vadd.f32 %v121, %v399
    %401 = vmatprep.mubr.f32.mxu0 0.0
    %402 = vmatmul.mubr.f32.gmra.mxu0 %v139
    %v403 = vpop.f32.mrf.mxu0
    %v404 = vadd.f32 %v126, %v403
    %v405 = vpop.f32.mrf.mxu0
    %v406 = vadd.f32 %v126, %v405
    %407 = vdwg.mxu0
    %408 = vmatprep.subr.mxu0 0.0
    %409 = vmatpush1.msra.mxu0 0.0
    %410 = vmatprep.subr.mxu0 0.0
    %411 = vmatpush1.msra.mxu0 0.0
    %412 = vmatprep.subr.mxu0 0.0
    %413 = vmatpush1.msra.mxu0 0.0
    %414 = vmatprep.subr.mxu0 0.0
    %415 = vmatpush1.msra.mxu0 0.0
    %416 = vmatprep.subr.mxu0 0.0
    %417 = vmatpush1.msra.mxu0 0.0
    %418 = vmatprep.subr.mxu0 0.0
    %419 = vmatpush1.msra.mxu0 0.0
    %420 = vmatprep.subr.mxu0 0.0
    %421 = vmatpush1.msra.mxu0 0.0
    %422 = vmatprep.subr.mxu0 0.0
    %423 = vmatpush1.msra.mxu0 0.0
    %424 = vmatprep.subr.mxu0 %v102
    %425 = vmatpush1.msra.mxu0 %v101
    %426 = vmatprep.subr.mxu0 %v93
    %427 = vmatpush1.msra.mxu0 %v92
    %428 = vmatprep.subr.mxu0 %v84
    %429 = vmatpush1.msra.mxu0 %v83
    %430 = vmatprep.subr.mxu0 %v75
    %431 = vmatpush1.msra.mxu0 %v74
    %432 = vmatprep.subr.mxu0 %v66
    %433 = vmatpush1.msra.mxu0 %v65
    %434 = vmatprep.subr.mxu0 %v57
    %435 = vmatpush1.msra.mxu0 %v56
    %436 = vmatprep.subr.mxu0 %v48
    %437 = vmatpush1.msra.mxu0 %v47
    %438 = vmatprep.subr.mxu0 %v39
    %439 = vmatpush1.msra.mxu0 %v38
    %440 = vmatprep.subr.mxu0 0.0
    %441 = vmatpush2.msra.mxu0 0.0
    %442 = vmatprep.subr.mxu0 0.0
    %443 = vmatpush2.msra.mxu0 0.0
    %444 = vmatprep.subr.mxu0 0.0
    %445 = vmatpush2.msra.mxu0 0.0
    %446 = vmatprep.subr.mxu0 0.0
    %447 = vmatpush2.msra.mxu0 0.0
    %448 = vmatprep.subr.mxu0 0.0
    %449 = vmatpush2.msra.mxu0 0.0
    %450 = vmatprep.subr.mxu0 0.0
    %451 = vmatpush2.msra.mxu0 0.0
    %452 = vmatprep.subr.mxu0 0.0
    %453 = vmatpush2.msra.mxu0 0.0
    %454 = vmatprep.subr.mxu0 0.0
    %455 = vmatpush2.msra.mxu0 0.0
    %456 = vmatprep.subr.mxu0 0.0
    %457 = vmatpush2.msra.mxu0 0.0
    %458 = vmatprep.subr.mxu0 0.0
    %459 = vmatpush2.msra.mxu0 0.0
    %460 = vmatprep.subr.mxu0 0.0
    %461 = vmatpush2.msra.mxu0 0.0
    %462 = vmatprep.subr.mxu0 0.0
    %463 = vmatpush2.msra.mxu0 0.0
    %464 = vmatprep.subr.mxu0 0.0
    %465 = vmatpush2.msra.mxu0 0.0
    %466 = vmatprep.subr.mxu0 0.0
    %467 = vmatpush2.msra.mxu0 0.0
    %468 = vmatprep.subr.mxu0 0.0
    %469 = vmatpush2.msra.mxu0 0.0
    %470 = vmatprep.subr.mxu0 0.0
    %471 = vmatpush2.msra.mxu0 0.0
    %472 = vmatprep.mubr.f32.mxu0 0.0
    %473 = vmatmul.mubr.f32.gmra.mxu0 %v130
    %v474 = vpop.f32.mrf.mxu0
    %v475 = vadd.f32 %v111, %v474
    %v476 = vpop.f32.mrf.mxu0
    %v477 = vadd.f32 %v111, %v476
    %478 = vmatprep.mubr.f32.mxu0 0.0
    %479 = vmatmul.mubr.f32.gmra.mxu0 %v133
    %v480 = vpop.f32.mrf.mxu0
    %v481 = vadd.f32 %v116, %v480
    %v482 = vpop.f32.mrf.mxu0
    %v483 = vadd.f32 %v116, %v482
    %484 = vmatprep.mubr.f32.mxu0 0.0
    %485 = vmatmul.mubr.f32.gmra.mxu0 %v136
    %v486 = vpop.f32.mrf.mxu0
    %v487 = vadd.f32 %v121, %v486
    %v488 = vpop.f32.mrf.mxu0
    %v489 = vadd.f32 %v121, %v488
    %490 = vmatprep.mubr.f32.mxu0 0.0
    %491 = vmatmul.mubr.f32.gmra.mxu0 %v139
    %v492 = vpop.f32.mrf.mxu0
    %v493 = vadd.f32 %v126, %v492
    %v494 = vpop.f32.mrf.mxu0
    %v495 = vadd.f32 %v126, %v494
    %496 = vdwg.mxu0
    %497 = vmatprep.subr.mxu0 0.0
    %498 = vmatpush1.msra.mxu0 0.0
    %499 = vmatprep.subr.mxu0 0.0
    %500 = vmatpush1.msra.mxu0 0.0
    %501 = vmatprep.subr.mxu0 0.0
    %502 = vmatpush1.msra.mxu0 0.0
    %503 = vmatprep.subr.mxu0 0.0
    %504 = vmatpush1.msra.mxu0 0.0
    %505 = vmatprep.subr.mxu0 0.0
    %506 = vmatpush1.msra.mxu0 0.0
    %507 = vmatprep.subr.mxu0 0.0
    %508 = vmatpush1.msra.mxu0 0.0
    %509 = vmatprep.subr.mxu0 0.0
    %510 = vmatpush1.msra.mxu0 0.0
    %511 = vmatprep.subr.mxu0 0.0
    %512 = vmatpush1.msra.mxu0 0.0
    %513 = vmatprep.subr.mxu0 0.0
    %514 = vmatpush1.msra.mxu0 %v103
    %515 = vmatprep.subr.mxu0 0.0
    %516 = vmatpush1.msra.mxu0 %v94
    %517 = vmatprep.subr.mxu0 0.0
    %518 = vmatpush1.msra.mxu0 %v85
    %519 = vmatprep.subr.mxu0 0.0
    %520 = vmatpush1.msra.mxu0 %v76
    %521 = vmatprep.subr.mxu0 0.0
    %522 = vmatpush1.msra.mxu0 %v67
    %523 = vmatprep.subr.mxu0 0.0
    %524 = vmatpush1.msra.mxu0 %v58
    %525 = vmatprep.subr.mxu0 0.0
    %526 = vmatpush1.msra.mxu0 %v49
    %527 = vmatprep.subr.mxu0 0.0
    %528 = vmatpush1.msra.mxu0 %v40
    %529 = vmatprep.subr.mxu0 0.0
    %530 = vmatpush2.msra.mxu0 0.0
    %531 = vmatprep.subr.mxu0 0.0
    %532 = vmatpush2.msra.mxu0 0.0
    %533 = vmatprep.subr.mxu0 0.0
    %534 = vmatpush2.msra.mxu0 0.0
    %535 = vmatprep.subr.mxu0 0.0
    %536 = vmatpush2.msra.mxu0 0.0
    %537 = vmatprep.subr.mxu0 0.0
    %538 = vmatpush2.msra.mxu0 0.0
    %539 = vmatprep.subr.mxu0 0.0
    %540 = vmatpush2.msra.mxu0 0.0
    %541 = vmatprep.subr.mxu0 0.0
    %542 = vmatpush2.msra.mxu0 0.0
    %543 = vmatprep.subr.mxu0 0.0
    %544 = vmatpush2.msra.mxu0 0.0
    %545 = vmatprep.subr.mxu0 0.0
    %546 = vmatpush2.msra.mxu0 0.0
    %547 = vmatprep.subr.mxu0 0.0
    %548 = vmatpush2.msra.mxu0 0.0
    %549 = vmatprep.subr.mxu0 0.0
    %550 = vmatpush2.msra.mxu0 0.0
    %551 = vmatprep.subr.mxu0 0.0
    %552 = vmatpush2.msra.mxu0 0.0
    %553 = vmatprep.subr.mxu0 0.0
    %554 = vmatpush2.msra.mxu0 0.0
    %555 = vmatprep.subr.mxu0 0.0
    %556 = vmatpush2.msra.mxu0 0.0
    %557 = vmatprep.subr.mxu0 0.0
    %558 = vmatpush2.msra.mxu0 0.0
    %559 = vmatprep.subr.mxu0 0.0
    %560 = vmatpush2.msra.mxu0 0.0
    %561 = vmatprep.mubr.f32.mxu0 0.0
    %562 = vmatmul.mubr.f32.gmra.mxu0 %v130
    %v563 = vpop.f32.mrf.mxu0
    %v564 = vadd.f32 %v111, %v563
    %v565 = vpop.f32.mrf.mxu0
    %566 = vmatprep.mubr.f32.mxu0 0.0
    %567 = vmatmul.mubr.f32.gmra.mxu0 %v133
    %v568 = vpop.f32.mrf.mxu0
    %v569 = vadd.f32 %v116, %v568
    %v570 = vpop.f32.mrf.mxu0
    %571 = vmatprep.mubr.f32.mxu0 0.0
    %572 = vmatmul.mubr.f32.gmra.mxu0 %v136
    %v573 = vpop.f32.mrf.mxu0
    %v574 = vadd.f32 %v121, %v573
    %v575 = vpop.f32.mrf.mxu0
    %576 = vmatprep.mubr.f32.mxu0 0.0
    %577 = vmatmul.mubr.f32.gmra.mxu0 %v139
    %v578 = vpop.f32.mrf.mxu0
    %v579 = vadd.f32 %v126, %v578
    %v580 = vpop.f32.mrf.mxu0
    %581 = vdwg.mxu0
    %v582 = vmax.f32 %v208, 0.0
    %v583 = vmax.f32 %v210, 0.0
    %v584 = vmax.f32 %v297, 0.0
    %v585 = vmax.f32 %v299, 0.0
    %v586 = vmax.f32 %v386, 0.0
    %v587 = vmax.f32 %v388, 0.0
    %v588 = vmax.f32 %v475, 0.0
    %v589 = vmax.f32 %v477, 0.0
    %v590 = vmax.f32 %v564, 0.0
    %v591 = vmax.f32 %v214, 0.0
    %v592 = vmax.f32 %v216, 0.0
    %v593 = vmax.f32 %v303, 0.0
    %v594 = vmax.f32 %v305, 0.0
    %v595 = vmax.f32 %v392, 0.0
    %v596 = vmax.f32 %v394, 0.0
    %v597 = vmax.f32 %v481, 0.0
    %v598 = vmax.f32 %v483, 0.0
    %v599 = vmax.f32 %v569, 0.0
    %v600 = vmax.f32 %v220, 0.0
    %v601 = vmax.f32 %v222, 0.0
    %v602 = vmax.f32 %v309, 0.0
    %v603 = vmax.f32 %v311, 0.0
    %v604 = vmax.f32 %v398, 0.0
    %v605 = vmax.f32 %v400, 0.0
    %v606 = vmax.f32 %v487, 0.0
    %v607 = vmax.f32 %v489, 0.0
    %v608 = vmax.f32 %v574, 0.0
    %v609 = vmax.f32 %v226, 0.0
    %v610 = vmax.f32 %v228, 0.0
    %v611 = vmax.f32 %v315, 0.0
    %v612 = vmax.f32 %v317, 0.0
    %v613 = vmax.f32 %v404, 0.0
    %v614 = vmax.f32 %v406, 0.0
    %v615 = vmax.f32 %v493, 0.0
    %v616 = vmax.f32 %v495, 0.0
    %v617 = vmax.f32 %v579, 0.0
    %618 = vst [vmem:[%s3] sm:$0xff] %v582
    %619 = vst [vmem:[%s3 + $0x8] sm:$0xff] %v583
    %620 = vst [vmem:[%s3 + $0x10] sm:$0xff] %v584
    %621 = vst [vmem:[%s3 + $0x18] sm:$0xff] %v585
    %622 = vst [vmem:[%s3 + $0x20] sm:$0xff] %v586
    %623 = vst [vmem:[%s3 + $0x28] sm:$0xff] %v587
    %624 = vst [vmem:[%s3 + $0x30] sm:$0xff] %v588
    %625 = vst [vmem:[%s3 + $0x38] sm:$0xff] %v589
    %vm626 = vcmask 277504
    %627 = vst.msk [vmem:[%s3 + $0x40] sm:$0xff] %vm626, %v590
    %628 = vst [vmem:[%s3 + $0x48] sm:$0xff] %v591
    %629 = vst [vmem:[%s3 + $0x50] sm:$0xff] %v592
    %630 = vst [vmem:[%s3 + $0x58] sm:$0xff] %v593
    %631 = vst [vmem:[%s3 + $0x60] sm:$0xff] %v594
    %632 = vst [vmem:[%s3 + $0x68] sm:$0xff] %v595
    %633 = vst [vmem:[%s3 + $0x70] sm:$0xff] %v596
    %634 = vst [vmem:[%s3 + $0x78] sm:$0xff] %v597
    %635 = vst [vmem:[%s3 + $0x80] sm:$0xff] %v598
    %636 = vst.msk [vmem:[%s3 + $0x88] sm:$0xff] %vm626, %v599
    %637 = vst [vmem:[%s3 + $0x90] sm:$0xff] %v600
    %638 = vst [vmem:[%s3 + $0x98] sm:$0xff] %v601
    %639 = vst [vmem:[%s3 + $0xa0] sm:$0xff] %v602
    %640 = vst [vmem:[%s3 + $0xa8] sm:$0xff] %v603
    %641 = vst [vmem:[%s3 + $0xb0] sm:$0xff] %v604
    %642 = vst [vmem:[%s3 + $0xb8] sm:$0xff] %v605
    %643 = vst [vmem:[%s3 + $0xc0] sm:$0xff] %v606
    %644 = vst [vmem:[%s3 + $0xc8] sm:$0xff] %v607
    %645 = vst.msk [vmem:[%s3 + $0xd0] sm:$0xff] %vm626, %v608
    %646 = vst [vmem:[%s3 + $0xd8] sm:$0xff] %v609
    %647 = vst [vmem:[%s3 + $0xe0] sm:$0xff] %v610
    %648 = vst [vmem:[%s3 + $0xe8] sm:$0xff] %v611
    %649 = vst [vmem:[%s3 + $0xf0] sm:$0xff] %v612
    %650 = vst [vmem:[%s3 + $0xf8] sm:$0xff] %v613
    %651 = vst [vmem:[%s3 + $0x100] sm:$0xff] %v614
    %652 = vst [vmem:[%s3 + $0x108] sm:$0xff] %v615
    %653 = vst [vmem:[%s3 + $0x110] sm:$0xff] %v616
    %654 = vst.msk [vmem:[%s3 + $0x118] sm:$0xff] %vm626, %v617
    // Predicated region
    $region18: #{policy_forward.4} parent=1 // pred_check
      _
    $region19: #{policy_forward.4} parent=1 // pred_check_branch
      %656 = sbr.rel (0) target = $region21
    $region20: #{policy_forward.4} parent=1 // pred_region
      _
    $region21: #{policy_forward.4} parent=1 // pred_fallthru
      _
    // Predicated region
    $region22: #{policy_forward.4} parent=1 // pred_check
      _
    $region23: #{policy_forward.4} parent=1 // pred_check_branch
      %658 = sbr.rel (0) target = $region25
    $region24: #{policy_forward.4} parent=1 // pred_region
      _
    $region25: #{policy_forward.4} parent=1 // pred_fallthru
      _
    %659 = vsyncpa [#allocation3], 1

// kernel: policy_forward.5
$region0: #{policy_forward.5}
  #allocation0 [shape = 'u32[]', space=smem, size = 0x4, offset = 0x4, fixed_abs, tag = 'smem constant byte address 0x4 - core index']
  #allocation1 [shape = 'u32[144,128]{1,0:T(1,128)}', space=vmem, size = 0x12000, scoped, tag = 'internal scratch']
  %s0 = inlined_call_operand.vmem [shape: f32[64,512], index: 0, kind: input, shape index: {}]
  %s1 = inlined_call_operand.vmem [shape: f32[512,200], index: 1, kind: input, shape index: {}]
  %s2 = inlined_call_operand.vmem [shape: f32[64,1], index: 2, kind: input, shape index: {}]
  %s3 = inlined_call_operand.vmem [shape: f32[64,200], index: 3, kind: output, shape index: {}]
  %s4 = sld [smem:[#allocation0]]
  $region22: #{policy_forward.5} parent=0
    _
  %s6 = ssub.s32 1, %s4
  %s7 = scalar_select 0, %s6, %s4
  // Predicated region
  $region2: #{policy_forward.5} parent=0 // pred_check
    _
  $region3: #{policy_forward.5} parent=0 // pred_check_branch
    %9 = sbr.rel (0) target = $region5
  $region4: #{policy_forward.5} parent=0 // pred_region
    _
  $region5: #{policy_forward.5} parent=0 // pred_fallthru
    _
  // Predicated region
  $region6: #{policy_forward.5} parent=0 // pred_check
    _
  $region7: #{policy_forward.5} parent=0 // pred_check_branch
    %11 = sbr.rel (0) target = $region9
  $region8: #{policy_forward.5} parent=0 // pred_region
    _
  $region9: #{policy_forward.5} parent=0 // pred_fallthru
    _
  // Predicated region
  $region10: #{policy_forward.5} parent=0 // pred_check
    _
  $region11: #{policy_forward.5} parent=0 // pred_check_branch
    %13 = sbr.rel (0) target = $region13
  $region12: #{policy_forward.5} parent=0 // pred_region
    _
  $region13: #{policy_forward.5} parent=0 // pred_fallthru
    _
  %v14 = vld [vmem:[%s0] sm:$0xff]
  %v15 = vld [vmem:[%s0 + $0x8] sm:$0xff]
  %v16 = vld [vmem:[%s0 + $0x10] sm:$0xff]
  %v17 = vld [vmem:[%s0 + $0x18] sm:$0xff]
  %v18 = vld [vmem:[%s0 + $0x20] sm:$0xff]
  %v19 = vld [vmem:[%s0 + $0x28] sm:$0xff]
  %v20 = vld [vmem:[%s0 + $0x30] sm:$0xff]
  %v21 = vld [vmem:[%s0 + $0x38] sm:$0xff]
  %v22 = vld [vmem:[%s0 + $0x40] sm:$0xff]
  %v23 = vld [vmem:[%s0 + $0x48] sm:$0xff]
  %v24 = vld [vmem:[%s0 + $0x50] sm:$0xff]
  %v25 = vld [vmem:[%s0 + $0x58] sm:$0xff]
  %v26 = vld [vmem:[%s0 + $0x60] sm:$0xff]
  %v27 = vld [vmem:[%s0 + $0x68] sm:$0xff]
  %v28 = vld [vmem:[%s0 + $0x70] sm:$0xff]
  %v29 = vld [vmem:[%s0 + $0x78] sm:$0xff]
  %v30 = vld [vmem:[%s0 + $0x80] sm:$0xff]
  %v31 = vld [vmem:[%s0 + $0x88] sm:$0xff]
  %v32 = vld [vmem:[%s0 + $0x90] sm:$0xff]
  %v33 = vld [vmem:[%s0 + $0x98] sm:$0xff]
  %v34 = vld [vmem:[%s0 + $0xa0] sm:$0xff]
  %v35 = vld [vmem:[%s0 + $0xa8] sm:$0xff]
  %v36 = vld [vmem:[%s0 + $0xb0] sm:$0xff]
  %v37 = vld [vmem:[%s0 + $0xb8] sm:$0xff]
  %v38 = vld [vmem:[%s0 + $0xc0] sm:$0xff]
  %v39 = vld [vmem:[%s0 + $0xc8] sm:$0xff]
  %v40 = vld [vmem:[%s0 + $0xd0] sm:$0xff]
  %v41 = vld [vmem:[%s0 + $0xd8] sm:$0xff]
  %v42 = vld [vmem:[%s0 + $0xe0] sm:$0xff]
  %v43 = vld [vmem:[%s0 + $0xe8] sm:$0xff]
  %v44 = vld [vmem:[%s0 + $0xf0] sm:$0xff]
  %v45 = vld [vmem:[%s0 + $0xf8] sm:$0xff]
  %v46 = vld [vmem:[%s1] sm:$0xff]
  %v47 = vld [vmem:[%s1 + $0x8] sm:$0xff]
  %v48 = vld [vmem:[%s1 + $0x10] sm:$0xff]
  %v49 = vld [vmem:[%s1 + $0x18] sm:$0xff]
  %v50 = vld [vmem:[%s1 + $0x20] sm:$0xff]
  %v51 = vld [vmem:[%s1 + $0x28] sm:$0xff]
  %v52 = vld [vmem:[%s1 + $0x30] sm:$0xff]
  %v53 = vld [vmem:[%s1 + $0x38] sm:$0xff]
  %v54 = vld [vmem:[%s1 + $0x40] sm:$0xff]
  %v55 = vld [vmem:[%s1 + $0x48] sm:$0xff]
  %v56 = vld [vmem:[%s1 + $0x50] sm:$0xff]
  %v57 = vld [vmem:[%s1 + $0x58] sm:$0xff]
  %v58 = vld [vmem:[%s1 + $0x60] sm:$0xff]
  %v59 = vld [vmem:[%s1 + $0x68] sm:$0xff]
  %v60 = vld [vmem:[%s1 + $0x70] sm:$0xff]
  %v61 = vld [vmem:[%s1 + $0x78] sm:$0xff]
  %v62 = vld [vmem:[%s1 + $0x80] sm:$0xff]
  %v63 = vld [vmem:[%s1 + $0x88] sm:$0xff]
  %v64 = vld [vmem:[%s1 + $0x90] sm:$0xff]
  %v65 = vld [vmem:[%s1 + $0x98] sm:$0xff]
  %v66 = vld [vmem:[%s1 + $0xa0] sm:$0xff]
  %v67 = vld [vmem:[%s1 + $0xa8] sm:$0xff]
  %v68 = vld [vmem:[%s1 + $0xb0] sm:$0xff]
  %v69 = vld [vmem:[%s1 + $0xb8] sm:$0xff]
  %v70 = vld [vmem:[%s1 + $0xc0] sm:$0xff]
  %v71 = vld [vmem:[%s1 + $0xc8] sm:$0xff]
  %v72 = vld [vmem:[%s1 + $0xd0] sm:$0xff]
  %v73 = vld [vmem:[%s1 + $0xd8] sm:$0xff]
  %v74 = vld [vmem:[%s1 + $0xe0] sm:$0xff]
  %v75 = vld [vmem:[%s1 + $0xe8] sm:$0xff]
  %v76 = vld [vmem:[%s1 + $0xf0] sm:$0xff]
  %v77 = vld [vmem:[%s1 + $0xf8] sm:$0xff]
  %v78 = vld [vmem:[%s1 + $0x100] sm:$0xff]
  %v79 = vld [vmem:[%s1 + $0x108] sm:$0xff]
  %v80 = vld [vmem:[%s1 + $0x110] sm:$0xff]
  %v81 = vld [vmem:[%s1 + $0x118] sm:$0xff]
  %v82 = vld [vmem:[%s1 + $0x120] sm:$0xff]
  %v83 = vld [vmem:[%s1 + $0x128] sm:$0xff]
  %v84 = vld [vmem:[%s1 + $0x130] sm:$0xff]
  %v85 = vld [vmem:[%s1 + $0x138] sm:$0xff]
  %v86 = vld [vmem:[%s1 + $0x140] sm:$0xff]
  %v87 = vld [vmem:[%s1 + $0x148] sm:$0xff]
  %v88 = vld [vmem:[%s1 + $0x150] sm:$0xff]
  %v89 = vld [vmem:[%s1 + $0x158] sm:$0xff]
  %v90 = vld [vmem:[%s1 + $0x160] sm:$0xff]
  %v91 = vld [vmem:[%s1 + $0x168] sm:$0xff]
  %v92 = vld [vmem:[%s1 + $0x170] sm:$0xff]
  %v93 = vld [vmem:[%s1 + $0x178] sm:$0xff]
  %v94 = vld [vmem:[%s1 + $0x180] sm:$0xff]
  %v95 = vld [vmem:[%s1 + $0x188] sm:$0xff]
  %v96 = vld [vmem:[%s1 + $0x190] sm:$0xff]
  %v97 = vld [vmem:[%s1 + $0x198] sm:$0xff]
  %v98 = vld [vmem:[%s1 + $0x1a0] sm:$0xff]
  %v99 = vld [vmem:[%s1 + $0x1a8] sm:$0xff]
  %v100 = vld [vmem:[%s1 + $0x1b0] sm:$0xff]
  %v101 = vld [vmem:[%s1 + $0x1b8] sm:$0xff]
  %v102 = vld [vmem:[%s1 + $0x1c0] sm:$0xff]
  %v103 = vld [vmem:[%s1 + $0x1c8] sm:$0xff]
  %v104 = vld [vmem:[%s1 + $0x1d0] sm:$0xff]
  %v105 = vld [vmem:[%s1 + $0x1d8] sm:$0xff]
  %v106 = vld [vmem:[%s1 + $0x1e0] sm:$0xff]
  %v107 = vld [vmem:[%s1 + $0x1e8] sm:$0xff]
  %v108 = vld [vmem:[%s1 + $0x1f0] sm:$0xff]
  %v109 = vld [vmem:[%s1 + $0x1f8] sm:$0xff]
  %v110 = vld [vmem:[%s1 + $0x200] sm:$0xff]
  %v111 = vld [vmem:[%s1 + $0x208] sm:$0xff]
  %v112 = vld [vmem:[%s1 + $0x210] sm:$0xff]
  %v113 = vld [vmem:[%s1 + $0x218] sm:$0xff]
  %v114 = vld [vmem:[%s1 + $0x220] sm:$0xff]
  %v115 = vld [vmem:[%s1 + $0x228] sm:$0xff]
  %v116 = vld [vmem:[%s1 + $0x230] sm:$0xff]
  %v117 = vld [vmem:[%s1 + $0x238] sm:$0xff]
  %v118 = vld [vmem:[%s1 + $0x240] sm:$0xff]
  %v119 = vld [vmem:[%s1 + $0x248] sm:$0xff]
  %v120 = vld [vmem:[%s1 + $0x250] sm:$0xff]
  %v121 = vld [vmem:[%s1 + $0x258] sm:$0xff]
  %v122 = vld [vmem:[%s1 + $0x260] sm:$0xff]
  %v123 = vld [vmem:[%s1 + $0x268] sm:$0xff]
  %v124 = vld [vmem:[%s1 + $0x270] sm:$0xff]
  %v125 = vld [vmem:[%s1 + $0x278] sm:$0xff]
  %v126 = vld [vmem:[%s1 + $0x280] sm:$0xff]
  %v127 = vld [vmem:[%s1 + $0x288] sm:$0xff]
  %v128 = vld [vmem:[%s1 + $0x290] sm:$0xff]
  %v129 = vld [vmem:[%s1 + $0x298] sm:$0xff]
  %v130 = vld [vmem:[%s1 + $0x2a0] sm:$0xff]
  %v131 = vld [vmem:[%s1 + $0x2a8] sm:$0xff]
  %v132 = vld [vmem:[%s1 + $0x2b0] sm:$0xff]
  %v133 = vld [vmem:[%s1 + $0x2b8] sm:$0xff]
  %v134 = vld [vmem:[%s1 + $0x2c0] sm:$0xff]
  %v135 = vld [vmem:[%s1 + $0x2c8] sm:$0xff]
  %v136 = vld [vmem:[%s1 + $0x2d0] sm:$0xff]
  %v137 = vld [vmem:[%s1 + $0x2d8] sm:$0xff]
  %v138 = vld [vmem:[%s1 + $0x2e0] sm:$0xff]
  %v139 = vld [vmem:[%s1 + $0x2e8] sm:$0xff]
  %v140 = vld [vmem:[%s1 + $0x2f0] sm:$0xff]
  %v141 = vld [vmem:[%s1 + $0x2f8] sm:$0xff]
  %v142 = vld [vmem:[%s1 + $0x300] sm:$0xff]
  %v143 = vld [vmem:[%s1 + $0x308] sm:$0xff]
  %v144 = vld [vmem:[%s1 + $0x310] sm:$0xff]
  %v145 = vld [vmem:[%s1 + $0x318] sm:$0xff]
  %v146 = vld [vmem:[%s1 + $0x320] sm:$0xff]
  %v147 = vld [vmem:[%s1 + $0x328] sm:$0xff]
  %v148 = vld [vmem:[%s1 + $0x330] sm:$0xff]
  %v149 = vld [vmem:[%s1 + $0x338] sm:$0xff]
  %v150 = vld [vmem:[%s1 + $0x340] sm:$0xff]
  %v151 = vld [vmem:[%s1 + $0x348] sm:$0xff]
  %v152 = vld [vmem:[%s1 + $0x350] sm:$0xff]
  %v153 = vld [vmem:[%s1 + $0x358] sm:$0xff]
  %v154 = vld [vmem:[%s1 + $0x360] sm:$0xff]
  %v155 = vld [vmem:[%s1 + $0x368] sm:$0xff]
  %v156 = vld [vmem:[%s1 + $0x370] sm:$0xff]
  %v157 = vld [vmem:[%s1 + $0x378] sm:$0xff]
  %v158 = vld [vmem:[%s1 + $0x380] sm:$0xff]
  %v159 = vld [vmem:[%s1 + $0x388] sm:$0xff]
  %v160 = vld [vmem:[%s1 + $0x390] sm:$0xff]
  %v161 = vld [vmem:[%s1 + $0x398] sm:$0xff]
  %v162 = vld [vmem:[%s1 + $0x3a0] sm:$0xff]
  %v163 = vld [vmem:[%s1 + $0x3a8] sm:$0xff]
  %v164 = vld [vmem:[%s1 + $0x3b0] sm:$0xff]
  %v165 = vld [vmem:[%s1 + $0x3b8] sm:$0xff]
  %v166 = vld [vmem:[%s1 + $0x3c0] sm:$0xff]
  %v167 = vld [vmem:[%s1 + $0x3c8] sm:$0xff]
  %v168 = vld [vmem:[%s1 + $0x3d0] sm:$0xff]
  %v169 = vld [vmem:[%s1 + $0x3d8] sm:$0xff]
  %v170 = vld [vmem:[%s1 + $0x3e0] sm:$0xff]
  %v171 = vld [vmem:[%s1 + $0x3e8] sm:$0xff]
  %v172 = vld [vmem:[%s1 + $0x3f0] sm:$0xff]
  %v173 = vld [vmem:[%s1 + $0x3f8] sm:$0xff]
  %v174 = vld [vmem:[%s2] sm:$0xff]
  %v175 = vld [vmem:[%s2 + $0x8] sm:$0xff]
  %v176 = vld [vmem:[%s2 + $0x10] sm:$0xff]
  %v177 = vld [vmem:[%s2 + $0x18] sm:$0xff]
  %v178 = vld [vmem:[%s2 + $0x20] sm:$0xff]
  %v179 = vld [vmem:[%s2 + $0x28] sm:$0xff]
  %v180 = vld [vmem:[%s2 + $0x30] sm:$0xff]
  %v181 = vld [vmem:[%s2 + $0x38] sm:$0xff]
  %183 = vset.pattern.permute.xlu0 0
  %184 = vperm.xlu0 %183, %v174
  %v185 = vpop.permute.xlu0 %184
  %188 = vset.pattern.permute.xlu0 0
  %189 = vperm.xlu0 %188, %v175
  %v190 = vpop.permute.xlu0 %189
  %193 = vset.pattern.permute.xlu0 0
  %194 = vperm.xlu0 %193, %v176
  %v195 = vpop.permute.xlu0 %194
  %198 = vset.pattern.permute.xlu0 0
  %199 = vperm.xlu0 %198, %v177
  %v200 = vpop.permute.xlu0 %199
  %203 = vset.pattern.permute.xlu0 0
  %204 = vperm.xlu0 %203, %v178
  %v205 = vpop.permute.xlu0 %204
  %208 = vset.pattern.permute.xlu0 0
  %209 = vperm.xlu0 %208, %v179
  %v210 = vpop.permute.xlu0 %209
  %213 = vset.pattern.permute.xlu0 0
  %214 = vperm.xlu0 %213, %v180
  %v215 = vpop.permute.xlu0 %214
  %218 = vset.pattern.permute.xlu0 0
  %219 = vperm.xlu0 %218, %v181
  %v220 = vpop.permute.xlu0 %219
  %222 = vmatprep.subr.mxu0 %v77
  %223 = vmatpush1.msra.mxu0 %v76
  %224 = vmatprep.subr.mxu0 %v75
  %225 = vmatpush1.msra.mxu0 %v74
  %226 = vmatprep.subr.mxu0 %v73
  %227 = vmatpush1.msra.mxu0 %v72
  %228 = vmatprep.subr.mxu0 %v71
  %229 = vmatpush1.msra.mxu0 %v70
  %230 = vmatprep.subr.mxu0 %v69
  %231 = vmatpush1.msra.mxu0 %v68
  %232 = vmatprep.subr.mxu0 %v67
  %233 = vmatpush1.msra.mxu0 %v66
  %234 = vmatprep.subr.mxu0 %v65
  %235 = vmatpush1.msra.mxu0 %v64
  %236 = vmatprep.subr.mxu0 %v63
  %237 = vmatpush1.msra.mxu0 %v62
  %238 = vmatprep.subr.mxu0 %v61
  %239 = vmatpush1.msra.mxu0 %v60
  %240 = vmatprep.subr.mxu0 %v59
  %241 = vmatpush1.msra.mxu0 %v58
  %242 = vmatprep.subr.mxu0 %v57
  %243 = vmatpush1.msra.mxu0 %v56
  %244 = vmatprep.subr.mxu0 %v55
  %245 = vmatpush1.msra.mxu0 %v54
  %246 = vmatprep.subr.mxu0 %v53
  %247 = vmatpush1.msra.mxu0 %v52
  %248 = vmatprep.subr.mxu0 %v51
  %249 = vmatpush1.msra.mxu0 %v50
  %250 = vmatprep.subr.mxu0 %v49
  %251 = vmatpush1.msra.mxu0 %v48
  %252 = vmatprep.subr.mxu0 %v47
  %253 = vmatpush1.msra.mxu0 %v46
  %254 = vmatprep.subr.mxu0 %v109
  %255 = vmatpush2.msra.mxu0 %v108
  %256 = vmatprep.subr.mxu0 %v107
  %257 = vmatpush2.msra.mxu0 %v106
  %258 = vmatprep.subr.mxu0 %v105
  %259 = vmatpush2.msra.mxu0 %v104
  %260 = vmatprep.subr.mxu0 %v103
  %261 = vmatpush2.msra.mxu0 %v102
  %262 = vmatprep.subr.mxu0 %v101
  %263 = vmatpush2.msra.mxu0 %v100
  %264 = vmatprep.subr.mxu0 %v99
  %265 = vmatpush2.msra.mxu0 %v98
  %266 = vmatprep.subr.mxu0 %v97
  %267 = vmatpush2.msra.mxu0 %v96
  %268 = vmatprep.subr.mxu0 %v95
  %269 = vmatpush2.msra.mxu0 %v94
  %270 = vmatprep.subr.mxu0 %v93
  %271 = vmatpush2.msra.mxu0 %v92
  %272 = vmatprep.subr.mxu0 %v91
  %273 = vmatpush2.msra.mxu0 %v90
  %274 = vmatprep.subr.mxu0 %v89
  %275 = vmatpush2.msra.mxu0 %v88
  %276 = vmatprep.subr.mxu0 %v87
  %277 = vmatpush2.msra.mxu0 %v86
  %278 = vmatprep.subr.mxu0 %v85
  %279 = vmatpush2.msra.mxu0 %v84
  %280 = vmatprep.subr.mxu0 %v83
  %281 = vmatpush2.msra.mxu0 %v82
  %282 = vmatprep.subr.mxu0 %v81
  %283 = vmatpush2.msra.mxu0 %v80
  %284 = vmatprep.subr.mxu0 %v79
  %285 = vmatpush2.msra.mxu0 %v78
  %286 = vmatprep.mubr.f32.mxu0 %v15
  %287 = vmatmul.mubr.f32.gmra.mxu0 %v14
  %v288 = vpop.f32.mrf.mxu0
  %v289 = vadd.f32 %v185, %v288
  %v290 = vpop.f32.mrf.mxu0
  %v291 = vadd.f32 %v185, %v290
  %292 = vmatprep.mubr.f32.mxu0 %v19
  %293 = vmatmul.mubr.f32.gmra.mxu0 %v18
  %v294 = vpop.f32.mrf.mxu0
  %v295 = vadd.f32 %v190, %v294
  %v296 = vpop.f32.mrf.mxu0
  %v297 = vadd.f32 %v190, %v296
  %298 = vmatprep.mubr.f32.mxu0 %v23
  %299 = vmatmul.mubr.f32.gmra.mxu0 %v22
  %v300 = vpop.f32.mrf.mxu0
  %v301 = vadd.f32 %v195, %v300
  %v302 = vpop.f32.mrf.mxu0
  %v303 = vadd.f32 %v195, %v302
  %304 = vmatprep.mubr.f32.mxu0 %v27
  %305 = vmatmul.mubr.f32.gmra.mxu0 %v26
  %v306 = vpop.f32.mrf.mxu0
  %v307 = vadd.f32 %v200, %v306
  %v308 = vpop.f32.mrf.mxu0
  %v309 = vadd.f32 %v200, %v308
  %310 = vmatprep.mubr.f32.mxu0 %v31
  %311 = vmatmul.mubr.f32.gmra.mxu0 %v30
  %v312 = vpop.f32.mrf.mxu0
  %v313 = vadd.f32 %v205, %v312
  %v314 = vpop.f32.mrf.mxu0
  %v315 = vadd.f32 %v205, %v314
  %316 = vmatprep.mubr.f32.mxu0 %v35
  %317 = vmatmul.mubr.f32.gmra.mxu0 %v34
  %v318 = vpop.f32.mrf.mxu0
  %v319 = vadd.f32 %v210, %v318
  %v320 = vpop.f32.mrf.mxu0
  %v321 = vadd.f32 %v210, %v320
  %322 = vmatprep.mubr.f32.mxu0 %v39
  %323 = vmatmul.mubr.f32.gmra.mxu0 %v38
  %v324 = vpop.f32.mrf.mxu0
  %v325 = vadd.f32 %v215, %v324
  %v326 = vpop.f32.mrf.mxu0
  %v327 = vadd.f32 %v215, %v326
  %328 = vmatprep.mubr.f32.mxu0 %v43
  %329 = vmatmul.mubr.f32.gmra.mxu0 %v42
  %v330 = vpop.f32.mrf.mxu0
  %v331 = vadd.f32 %v220, %v330
  %v332 = vpop.f32.mrf.mxu0
  %v333 = vadd.f32 %v220, %v332
  %334 = vdwg.mxu0
  %335 = vmatprep.subr.mxu0 %v141
  %336 = vmatpush1.msra.mxu0 %v140
  %337 = vmatprep.subr.mxu0 %v139
  %338 = vmatpush1.msra.mxu0 %v138
  %339 = vmatprep.subr.mxu0 %v137
  %340 = vmatpush1.msra.mxu0 %v136
  %341 = vmatprep.subr.mxu0 %v135
  %342 = vmatpush1.msra.mxu0 %v134
  %343 = vmatprep.subr.mxu0 %v133
  %344 = vmatpush1.msra.mxu0 %v132
  %345 = vmatprep.subr.mxu0 %v131
  %346 = vmatpush1.msra.mxu0 %v130
  %347 = vmatprep.subr.mxu0 %v129
  %348 = vmatpush1.msra.mxu0 %v128
  %349 = vmatprep.subr.mxu0 %v127
  %350 = vmatpush1.msra.mxu0 %v126
  %351 = vmatprep.subr.mxu0 %v125
  %352 = vmatpush1.msra.mxu0 %v124
  %353 = vmatprep.subr.mxu0 %v123
  %354 = vmatpush1.msra.mxu0 %v122
  %355 = vmatprep.subr.mxu0 %v121
  %356 = vmatpush1.msra.mxu0 %v120
  %357 = vmatprep.subr.mxu0 %v119
  %358 = vmatpush1.msra.mxu0 %v118
  %359 = vmatprep.subr.mxu0 %v117
  %360 = vmatpush1.msra.mxu0 %v116
  %361 = vmatprep.subr.mxu0 %v115
  %362 = vmatpush1.msra.mxu0 %v114
  %363 = vmatprep.subr.mxu0 %v113
  %364 = vmatpush1.msra.mxu0 %v112
  %365 = vmatprep.subr.mxu0 %v111
  %366 = vmatpush1.msra.mxu0 %v110
  %367 = vmatprep.subr.mxu0 %v173
  %368 = vmatpush2.msra.mxu0 %v172
  %369 = vmatprep.subr.mxu0 %v171
  %370 = vmatpush2.msra.mxu0 %v170
  %371 = vmatprep.subr.mxu0 %v169
  %372 = vmatpush2.msra.mxu0 %v168
  %373 = vmatprep.subr.mxu0 %v167
  %374 = vmatpush2.msra.mxu0 %v166
  %375 = vmatprep.subr.mxu0 %v165
  %376 = vmatpush2.msra.mxu0 %v164
  %377 = vmatprep.subr.mxu0 %v163
  %378 = vmatpush2.msra.mxu0 %v162
  %379 = vmatprep.subr.mxu0 %v161
  %380 = vmatpush2.msra.mxu0 %v160
  %381 = vmatprep.subr.mxu0 %v159
  %382 = vmatpush2.msra.mxu0 %v158
  %383 = vmatprep.subr.mxu0 %v157
  %384 = vmatpush2.msra.mxu0 %v156
  %385 = vmatprep.subr.mxu0 %v155
  %386 = vmatpush2.msra.mxu0 %v154
  %387 = vmatprep.subr.mxu0 %v153
  %388 = vmatpush2.msra.mxu0 %v152
  %389 = vmatprep.subr.mxu0 %v151
  %390 = vmatpush2.msra.mxu0 %v150
  %391 = vmatprep.subr.mxu0 %v149
  %392 = vmatpush2.msra.mxu0 %v148
  %393 = vmatprep.subr.mxu0 %v147
  %394 = vmatpush2.msra.mxu0 %v146
  %395 = vmatprep.subr.mxu0 %v145
  %396 = vmatpush2.msra.mxu0 %v144
  %397 = vmatprep.subr.mxu0 %v143
  %398 = vmatpush2.msra.mxu0 %v142
  %399 = vmatprep.mubr.f32.mxu0 %v17
  %400 = vmatmul.mubr.f32.gmra.mxu0 %v16
  %v401 = vpop.f32.mrf.mxu0
  %v402 = vadd.f32 %v289, %v401
  %v403 = vpop.f32.mrf.mxu0
  %v404 = vadd.f32 %v291, %v403
  %405 = vmatprep.mubr.f32.mxu0 %v21
  %406 = vmatmul.mubr.f32.gmra.mxu0 %v20
  %v407 = vpop.f32.mrf.mxu0
  %v408 = vadd.f32 %v295, %v407
  %v409 = vpop.f32.mrf.mxu0
  %v410 = vadd.f32 %v297, %v409
  %411 = vmatprep.mubr.f32.mxu0 %v25
  %412 = vmatmul.mubr.f32.gmra.mxu0 %v24
  %v413 = vpop.f32.mrf.mxu0
  %v414 = vadd.f32 %v301, %v413
  %v415 = vpop.f32.mrf.mxu0
  %v416 = vadd.f32 %v303, %v415
  %417 = vmatprep.mubr.f32.mxu0 %v29
  %418 = vmatmul.mubr.f32.gmra.mxu0 %v28
  %v419 = vpop.f32.mrf.mxu0
  %v420 = vadd.f32 %v307, %v419
  %v421 = vpop.f32.mrf.mxu0
  %v422 = vadd.f32 %v309, %v421
  %423 = vmatprep.mubr.f32.mxu0 %v33
  %424 = vmatmul.mubr.f32.gmra.mxu0 %v32
  %v425 = vpop.f32.mrf.mxu0
  %v426 = vadd.f32 %v313, %v425
  %v427 = vpop.f32.mrf.mxu0
  %v428 = vadd.f32 %v315, %v427
  %429 = vmatprep.mubr.f32.mxu0 %v37
  %430 = vmatmul.mubr.f32.gmra.mxu0 %v36
  %v431 = vpop.f32.mrf.mxu0
  %v432 = vadd.f32 %v319, %v431
  %v433 = vpop.f32.mrf.mxu0
  %v434 = vadd.f32 %v321, %v433
  %435 = vmatprep.mubr.f32.mxu0 %v41
  %436 = vmatmul.mubr.f32.gmra.mxu0 %v40
  %v437 = vpop.f32.mrf.mxu0
  %v438 = vadd.f32 %v325, %v437
  %v439 = vpop.f32.mrf.mxu0
  %v440 = vadd.f32 %v327, %v439
  %441 = vmatprep.mubr.f32.mxu0 %v45
  %442 = vmatmul.mubr.f32.gmra.mxu0 %v44
  %v443 = vpop.f32.mrf.mxu0
  %v444 = vadd.f32 %v331, %v443
  %v445 = vpop.f32.mrf.mxu0
  %v446 = vadd.f32 %v333, %v445
  %447 = vdwg.mxu0
  %v448 = vmax.f32 %v402, 0.0
  %v449 = vmax.f32 %v404, 0.0
  %v450 = vmax.f32 %v408, 0.0
  %v451 = vmax.f32 %v410, 0.0
  %v452 = vmax.f32 %v414, 0.0
  %v453 = vmax.f32 %v416, 0.0
  %v454 = vmax.f32 %v420, 0.0
  %v455 = vmax.f32 %v422, 0.0
  %v456 = vmax.f32 %v426, 0.0
  %v457 = vmax.f32 %v428, 0.0
  %v458 = vmax.f32 %v432, 0.0
  %v459 = vmax.f32 %v434, 0.0
  %v460 = vmax.f32 %v438, 0.0
  %v461 = vmax.f32 %v440, 0.0
  %v462 = vmax.f32 %v444, 0.0
  %v463 = vmax.f32 %v446, 0.0
  %464 = vst [vmem:[%s3] sm:$0xff] %v448
  %vm465 = vcmask 588800
  %466 = vst.msk [vmem:[%s3 + $0x8] sm:$0xff] %vm465, %v449
  %467 = vst [vmem:[%s3 + $0x10] sm:$0xff] %v450
  %468 = vst.msk [vmem:[%s3 + $0x18] sm:$0xff] %vm465, %v451
  %469 = vst [vmem:[%s3 + $0x20] sm:$0xff] %v452
  %470 = vst.msk [vmem:[%s3 + $0x28] sm:$0xff] %vm465, %v453
  %471 = vst [vmem:[%s3 + $0x30] sm:$0xff] %v454
  %472 = vst.msk [vmem:[%s3 + $0x38] sm:$0xff] %vm465, %v455
  %473 = vst [vmem:[%s3 + $0x40] sm:$0xff] %v456
  %474 = vst.msk [vmem:[%s3 + $0x48] sm:$0xff] %vm465, %v457
  %475 = vst [vmem:[%s3 + $0x50] sm:$0xff] %v458
  %476 = vst.msk [vmem:[%s3 + $0x58] sm:$0xff] %vm465, %v459
  %477 = vst [vmem:[%s3 + $0x60] sm:$0xff] %v460
  %478 = vst.msk [vmem:[%s3 + $0x68] sm:$0xff] %vm465, %v461
  %479 = vst [vmem:[%s3 + $0x70] sm:$0xff] %v462
  %480 = vst.msk [vmem:[%s3 + $0x78] sm:$0xff] %vm465, %v463
  // Predicated region
  $region14: #{policy_forward.5} parent=0 // pred_check
    _
  $region15: #{policy_forward.5} parent=0 // pred_check_branch
    %482 = sbr.rel (0) target = $region17
  $region16: #{policy_forward.5} parent=0 // pred_region
    _
  $region17: #{policy_forward.5} parent=0 // pred_fallthru
    _
  // Predicated region
  $region18: #{policy_forward.5} parent=0 // pred_check
    _
  $region19: #{policy_forward.5} parent=0 // pred_check_branch
    %484 = sbr.rel (0) target = $region21
  $region20: #{policy_forward.5} parent=0 // pred_region
    _
  $region21: #{policy_forward.5} parent=0 // pred_fallthru
    _

// kernel: policy_forward.6
$region0: #{policy_forward.6}
  #allocation0 [shape = 'u32[]', space=smem, size = 0x4, offset = 0x4, fixed_abs, tag = 'smem constant byte address 0x4 - core index']
  #allocation1 [shape = 'u32[144,128]{1,0:T(1,128)}', space=vmem, size = 0x12000, scoped, tag = 'internal scratch']
  %s0 = inlined_call_operand.vmem [shape: f32[32,1024], index: 0, kind: input, shape index: {}]
  %s1 = inlined_call_operand.vmem [shape: f32[1024,32], index: 1, kind: input, shape index: {}]
  %s2 = inlined_call_operand.vmem [shape: f32[32,1], index: 2, kind: input, shape index: {}]
  %s3 = inlined_call_operand.vmem [shape: f32[32,32], index: 3, kind: input, shape index: {}]
  %s4 = inlined_call_operand.vmem [shape: f32[32,32], index: 4, kind: output, shape index: {}]
  %s5 = sld [smem:[#allocation0]]
  $region26: #{policy_forward.6} parent=0
    _
  %s7 = ssub.s32 1, %s5
  %s8 = scalar_select 0, %s7, %s5
  // Predicated region
  $region2: #{policy_forward.6} parent=0 // pred_check
    _
  $region3: #{policy_forward.6} parent=0 // pred_check_branch
    %10 = sbr.rel (0) target = $region5
  $region4: #{policy_forward.6} parent=0 // pred_region
    _
  $region5: #{policy_forward.6} parent=0 // pred_fallthru
    _
  // Predicated region
  $region6: #{policy_forward.6} parent=0 // pred_check
    _
  $region7: #{policy_forward.6} parent=0 // pred_check_branch
    %12 = sbr.rel (0) target = $region9
  $region8: #{policy_forward.6} parent=0 // pred_region
    _
  $region9: #{policy_forward.6} parent=0 // pred_fallthru
    _
  // Predicated region
  $region10: #{policy_forward.6} parent=0 // pred_check
    _
  $region11: #{policy_forward.6} parent=0 // pred_check_branch
    %14 = sbr.rel (0) target = $region13
  $region12: #{policy_forward.6} parent=0 // pred_region
    _
  $region13: #{policy_forward.6} parent=0 // pred_fallthru
    _
  // Predicated region
  $region14: #{policy_forward.6} parent=0 // pred_check
    _
  $region15: #{policy_forward.6} parent=0 // pred_check_branch
    %16 = sbr.rel (0) target = $region17
  $region16: #{policy_forward.6} parent=0 // pred_region
    _
  $region17: #{policy_forward.6} parent=0 // pred_fallthru
    _
  %v17 = vld [vmem:[%s0] sm:$0xff]
  %v18 = vld [vmem:[%s0 + $0x8] sm:$0xff]
  %v19 = vld [vmem:[%s0 + $0x10] sm:$0xff]
  %v20 = vld [vmem:[%s0 + $0x18] sm:$0xff]
  %v21 = vld [vmem:[%s0 + $0x20] sm:$0xff]
  %v22 = vld [vmem:[%s0 + $0x28] sm:$0xff]
  %v23 = vld [vmem:[%s0 + $0x30] sm:$0xff]
  %v24 = vld [vmem:[%s0 + $0x38] sm:$0xff]
  %v25 = vld [vmem:[%s0 + $0x40] sm:$0xff]
  %v26 = vld [vmem:[%s0 + $0x48] sm:$0xff]
  %v27 = vld [vmem:[%s0 + $0x50] sm:$0xff]
  %v28 = vld [vmem:[%s0 + $0x58] sm:$0xff]
  %v29 = vld [vmem:[%s0 + $0x60] sm:$0xff]
  %v30 = vld [vmem:[%s0 + $0x68] sm:$0xff]
  %v31 = vld [vmem:[%s0 + $0x70] sm:$0xff]
  %v32 = vld [vmem:[%s0 + $0x78] sm:$0xff]
  %v33 = vld [vmem:[%s0 + $0x80] sm:$0xff]
  %v34 = vld [vmem:[%s0 + $0x88] sm:$0xff]
  %v35 = vld [vmem:[%s0 + $0x90] sm:$0xff]
  %v36 = vld [vmem:[%s0 + $0x98] sm:$0xff]
  %v37 = vld [vmem:[%s0 + $0xa0] sm:$0xff]
  %v38 = vld [vmem:[%s0 + $0xa8] sm:$0xff]
  %v39 = vld [vmem:[%s0 + $0xb0] sm:$0xff]
  %v40 = vld [vmem:[%s0 + $0xb8] sm:$0xff]
  %v41 = vld [vmem:[%s0 + $0xc0] sm:$0xff]
  %v42 = vld [vmem:[%s0 + $0xc8] sm:$0xff]
  %v43 = vld [vmem:[%s0 + $0xd0] sm:$0xff]
  %v44 = vld [vmem:[%s0 + $0xd8] sm:$0xff]
  %v45 = vld [vmem:[%s0 + $0xe0] sm:$0xff]
  %v46 = vld [vmem:[%s0 + $0xe8] sm:$0xff]
  %v47 = vld [vmem:[%s0 + $0xf0] sm:$0xff]
  %v48 = vld [vmem:[%s0 + $0xf8] sm:$0xff]
  %v49 = vld [vmem:[%s1] sm:$0xff]
  %v50 = vld [vmem:[%s1 + $0x8] sm:$0xff]
  %v51 = vld [vmem:[%s1 + $0x10] sm:$0xff]
  %v52 = vld [vmem:[%s1 + $0x18] sm:$0xff]
  %v53 = vld [vmem:[%s1 + $0x20] sm:$0xff]
  %v54 = vld [vmem:[%s1 + $0x28] sm:$0xff]
  %v55 = vld [vmem:[%s1 + $0x30] sm:$0xff]
  %v56 = vld [vmem:[%s1 + $0x38] sm:$0xff]
  %v57 = vld [vmem:[%s1 + $0x40] sm:$0xff]
  %v58 = vld [vmem:[%s1 + $0x48] sm:$0xff]
  %v59 = vld [vmem:[%s1 + $0x50] sm:$0xff]
  %v60 = vld [vmem:[%s1 + $0x58] sm:$0xff]
  %v61 = vld [vmem:[%s1 + $0x60] sm:$0xff]
  %v62 = vld [vmem:[%s1 + $0x68] sm:$0xff]
  %v63 = vld [vmem:[%s1 + $0x70] sm:$0xff]
  %v64 = vld [vmem:[%s1 + $0x78] sm:$0xff]
  %v65 = vld [vmem:[%s1 + $0x80] sm:$0xff]
  %v66 = vld [vmem:[%s1 + $0x88] sm:$0xff]
  %v67 = vld [vmem:[%s1 + $0x90] sm:$0xff]
  %v68 = vld [vmem:[%s1 + $0x98] sm:$0xff]
  %v69 = vld [vmem:[%s1 + $0xa0] sm:$0xff]
  %v70 = vld [vmem:[%s1 + $0xa8] sm:$0xff]
  %v71 = vld [vmem:[%s1 + $0xb0] sm:$0xff]
  %v72 = vld [vmem:[%s1 + $0xb8] sm:$0xff]
  %v73 = vld [vmem:[%s1 + $0xc0] sm:$0xff]
  %v74 = vld [vmem:[%s1 + $0xc8] sm:$0xff]
  %v75 = vld [vmem:[%s1 + $0xd0] sm:$0xff]
  %v76 = vld [vmem:[%s1 + $0xd8] sm:$0xff]
  %v77 = vld [vmem:[%s1 + $0xe0] sm:$0xff]
  %v78 = vld [vmem:[%s1 + $0xe8] sm:$0xff]
  %v79 = vld [vmem:[%s1 + $0xf0] sm:$0xff]
  %v80 = vld [vmem:[%s1 + $0xf8] sm:$0xff]
  %v81 = vld [vmem:[%s1 + $0x100] sm:$0xff]
  %v82 = vld [vmem:[%s1 + $0x108] sm:$0xff]
  %v83 = vld [vmem:[%s1 + $0x110] sm:$0xff]
  %v84 = vld [vmem:[%s1 + $0x118] sm:$0xff]
  %v85 = vld [vmem:[%s1 + $0x120] sm:$0xff]
  %v86 = vld [vmem:[%s1 + $0x128] sm:$0xff]
  %v87 = vld [vmem:[%s1 + $0x130] sm:$0xff]
  %v88 = vld [vmem:[%s1 + $0x138] sm:$0xff]
  %v89 = vld [vmem:[%s1 + $0x140] sm:$0xff]
  %v90 = vld [vmem:[%s1 + $0x148] sm:$0xff]
  %v91 = vld [vmem:[%s1 + $0x150] sm:$0xff]
  %v92 = vld [vmem:[%s1 + $0x158] sm:$0xff]
  %v93 = vld [vmem:[%s1 + $0x160] sm:$0xff]
  %v94 = vld [vmem:[%s1 + $0x168] sm:$0xff]
  %v95 = vld [vmem:[%s1 + $0x170] sm:$0xff]
  %v96 = vld [vmem:[%s1 + $0x178] sm:$0xff]
  %v97 = vld [vmem:[%s1 + $0x180] sm:$0xff]
  %v98 = vld [vmem:[%s1 + $0x188] sm:$0xff]
  %v99 = vld [vmem:[%s1 + $0x190] sm:$0xff]
  %v100 = vld [vmem:[%s1 + $0x198] sm:$0xff]
  %v101 = vld [vmem:[%s1 + $0x1a0] sm:$0xff]
  %v102 = vld [vmem:[%s1 + $0x1a8] sm:$0xff]
  %v103 = vld [vmem:[%s1 + $0x1b0] sm:$0xff]
  %v104 = vld [vmem:[%s1 + $0x1b8] sm:$0xff]
  %v105 = vld [vmem:[%s1 + $0x1c0] sm:$0xff]
  %v106 = vld [vmem:[%s1 + $0x1c8] sm:$0xff]
  %v107 = vld [vmem:[%s1 + $0x1d0] sm:$0xff]
  %v108 = vld [vmem:[%s1 + $0x1d8] sm:$0xff]
  %v109 = vld [vmem:[%s1 + $0x1e0] sm:$0xff]
  %v110 = vld [vmem:[%s1 + $0x1e8] sm:$0xff]
  %v111 = vld [vmem:[%s1 + $0x1f0] sm:$0xff]
  %v112 = vld [vmem:[%s1 + $0x1f8] sm:$0xff]
  %v113 = vld [vmem:[%s1 + $0x200] sm:$0xff]
  %v114 = vld [vmem:[%s1 + $0x208] sm:$0xff]
  %v115 = vld [vmem:[%s1 + $0x210] sm:$0xff]
  %v116 = vld [vmem:[%s1 + $0x218] sm:$0xff]
  %v117 = vld [vmem:[%s1 + $0x220] sm:$0xff]
  %v118 = vld [vmem:[%s1 + $0x228] sm:$0xff]
  %v119 = vld [vmem:[%s1 + $0x230] sm:$0xff]
  %v120 = vld [vmem:[%s1 + $0x238] sm:$0xff]
  %v121 = vld [vmem:[%s1 + $0x240] sm:$0xff]
  %v122 = vld [vmem:[%s1 + $0x248] sm:$0xff]
  %v123 = vld [vmem:[%s1 + $0x250] sm:$0xff]
  %v124 = vld [vmem:[%s1 + $0x258] sm:$0xff]
  %v125 = vld [vmem:[%s1 + $0x260] sm:$0xff]
  %v126 = vld [vmem:[%s1 + $0x268] sm:$0xff]
  %v127 = vld [vmem:[%s1 + $0x270] sm:$0xff]
  %v128 = vld [vmem:[%s1 + $0x278] sm:$0xff]
  %v129 = vld [vmem:[%s1 + $0x280] sm:$0xff]
  %v130 = vld [vmem:[%s1 + $0x288] sm:$0xff]
  %v131 = vld [vmem:[%s1 + $0x290] sm:$0xff]
  %v132 = vld [vmem:[%s1 + $0x298] sm:$0xff]
  %v133 = vld [vmem:[%s1 + $0x2a0] sm:$0xff]
  %v134 = vld [vmem:[%s1 + $0x2a8] sm:$0xff]
  %v135 = vld [vmem:[%s1 + $0x2b0] sm:$0xff]
  %v136 = vld [vmem:[%s1 + $0x2b8] sm:$0xff]
  %v137 = vld [vmem:[%s1 + $0x2c0] sm:$0xff]
  %v138 = vld [vmem:[%s1 + $0x2c8] sm:$0xff]
  %v139 = vld [vmem:[%s1 + $0x2d0] sm:$0xff]
  %v140 = vld [vmem:[%s1 + $0x2d8] sm:$0xff]
  %v141 = vld [vmem:[%s1 + $0x2e0] sm:$0xff]
  %v142 = vld [vmem:[%s1 + $0x2e8] sm:$0xff]
  %v143 = vld [vmem:[%s1 + $0x2f0] sm:$0xff]
  %v144 = vld [vmem:[%s1 + $0x2f8] sm:$0xff]
  %v145 = vld [vmem:[%s1 + $0x300] sm:$0xff]
  %v146 = vld [vmem:[%s1 + $0x308] sm:$0xff]
  %v147 = vld [vmem:[%s1 + $0x310] sm:$0xff]
  %v148 = vld [vmem:[%s1 + $0x318] sm:$0xff]
  %v149 = vld [vmem:[%s1 + $0x320] sm:$0xff]
  %v150 = vld [vmem:[%s1 + $0x328] sm:$0xff]
  %v151 = vld [vmem:[%s1 + $0x330] sm:$0xff]
  %v152 = vld [vmem:[%s1 + $0x338] sm:$0xff]
  %v153 = vld [vmem:[%s1 + $0x340] sm:$0xff]
  %v154 = vld [vmem:[%s1 + $0x348] sm:$0xff]
  %v155 = vld [vmem:[%s1 + $0x350] sm:$0xff]
  %v156 = vld [vmem:[%s1 + $0x358] sm:$0xff]
  %v157 = vld [vmem:[%s1 + $0x360] sm:$0xff]
  %v158 = vld [vmem:[%s1 + $0x368] sm:$0xff]
  %v159 = vld [vmem:[%s1 + $0x370] sm:$0xff]
  %v160 = vld [vmem:[%s1 + $0x378] sm:$0xff]
  %v161 = vld [vmem:[%s1 + $0x380] sm:$0xff]
  %v162 = vld [vmem:[%s1 + $0x388] sm:$0xff]
  %v163 = vld [vmem:[%s1 + $0x390] sm:$0xff]
  %v164 = vld [vmem:[%s1 + $0x398] sm:$0xff]
  %v165 = vld [vmem:[%s1 + $0x3a0] sm:$0xff]
  %v166 = vld [vmem:[%s1 + $0x3a8] sm:$0xff]
  %v167 = vld [vmem:[%s1 + $0x3b0] sm:$0xff]
  %v168 = vld [vmem:[%s1 + $0x3b8] sm:$0xff]
  %v169 = vld [vmem:[%s1 + $0x3c0] sm:$0xff]
  %v170 = vld [vmem:[%s1 + $0x3c8] sm:$0xff]
  %v171 = vld [vmem:[%s1 + $0x3d0] sm:$0xff]
  %v172 = vld [vmem:[%s1 + $0x3d8] sm:$0xff]
  %v173 = vld [vmem:[%s1 + $0x3e0] sm:$0xff]
  %v174 = vld [vmem:[%s1 + $0x3e8] sm:$0xff]
  %v175 = vld [vmem:[%s1 + $0x3f0] sm:$0xff]
  %v176 = vld [vmem:[%s1 + $0x3f8] sm:$0xff]
  %v177 = vld [vmem:[%s2] sm:$0xff]
  %v178 = vld [vmem:[%s2 + $0x8] sm:$0xff]
  %v179 = vld [vmem:[%s2 + $0x10] sm:$0xff]
  %v180 = vld [vmem:[%s2 + $0x18] sm:$0xff]
  %182 = vset.pattern.permute.xlu0 0
  %183 = vperm.xlu0 %182, %v177
  %v184 = vpop.permute.xlu0 %183
  %187 = vset.pattern.permute.xlu0 0
  %188 = vperm.xlu0 %187, %v178
  %v189 = vpop.permute.xlu0 %188
  %192 = vset.pattern.permute.xlu0 0
  %193 = vperm.xlu0 %192, %v179
  %v194 = vpop.permute.xlu0 %193
  %197 = vset.pattern.permute.xlu0 0
  %198 = vperm.xlu0 %197, %v180
  %v199 = vpop.permute.xlu0 %198
  %201 = vmatprep.subr.mxu0 0.0
  %202 = vmatpush1.msra.mxu0 %v64
  %203 = vmatprep.subr.mxu0 0.0
  %204 = vmatpush1.msra.mxu0 %v63
  %205 = vmatprep.subr.mxu0 0.0
  %206 = vmatpush1.msra.mxu0 %v62
  %207 = vmatprep.subr.mxu0 0.0
  %208 = vmatpush1.msra.mxu0 %v61
  %209 = vmatprep.subr.mxu0 0.0
  %210 = vmatpush1.msra.mxu0 %v60
  %211 = vmatprep.subr.mxu0 0.0
  %212 = vmatpush1.msra.mxu0 %v59
  %213 = vmatprep.subr.mxu0 0.0
  %214 = vmatpush1.msra.mxu0 %v58
  %215 = vmatprep.subr.mxu0 0.0
  %216 = vmatpush1.msra.mxu0 %v57
  %217 = vmatprep.subr.mxu0 0.0
  %218 = vmatpush1.msra.mxu0 %v56
  %219 = vmatprep.subr.mxu0 0.0
  %220 = vmatpush1.msra.mxu0 %v55
  %221 = vmatprep.subr.mxu0 0.0
  %222 = vmatpush1.msra.mxu0 %v54
  %223 = vmatprep.subr.mxu0 0.0
  %224 = vmatpush1.msra.mxu0 %v53
  %225 = vmatprep.subr.mxu0 0.0
  %226 = vmatpush1.msra.mxu0 %v52
  %227 = vmatprep.subr.mxu0 0.0
  %228 = vmatpush1.msra.mxu0 %v51
  %229 = vmatprep.subr.mxu0 0.0
  %230 = vmatpush1.msra.mxu0 %v50
  %231 = vmatprep.subr.mxu0 0.0
  %232 = vmatpush1.msra.mxu0 %v49
  %233 = vmatprep.subr.mxu0 0.0
  %234 = vmatpush2.msra.mxu0 %v80
  %235 = vmatprep.subr.mxu0 0.0
  %236 = vmatpush2.msra.mxu0 %v79
  %237 = vmatprep.subr.mxu0 0.0
  %238 = vmatpush2.msra.mxu0 %v78
  %239 = vmatprep.subr.mxu0 0.0
  %240 = vmatpush2.msra.mxu0 %v77
  %241 = vmatprep.subr.mxu0 0.0
  %242 = vmatpush2.msra.mxu0 %v76
  %243 = vmatprep.subr.mxu0 0.0
  %244 = vmatpush2.msra.mxu0 %v75
  %245 = vmatprep.subr.mxu0 0.0
  %246 = vmatpush2.msra.mxu0 %v74
  %247 = vmatprep.subr.mxu0 0.0
  %248 = vmatpush2.msra.mxu0 %v73
  %249 = vmatprep.subr.mxu0 0.0
  %250 = vmatpush2.msra.mxu0 %v72
  %251 = vmatprep.subr.mxu0 0.0
  %252 = vmatpush2.msra.mxu0 %v71
  %253 = vmatprep.subr.mxu0 0.0
  %254 = vmatpush2.msra.mxu0 %v70
  %255 = vmatprep.subr.mxu0 0.0
  %256 = vmatpush2.msra.mxu0 %v69
  %257 = vmatprep.subr.mxu0 0.0
  %258 = vmatpush2.msra.mxu0 %v68
  %259 = vmatprep.subr.mxu0 0.0
  %260 = vmatpush2.msra.mxu0 %v67
  %261 = vmatprep.subr.mxu0 0.0
  %262 = vmatpush2.msra.mxu0 %v66
  %263 = vmatprep.subr.mxu0 0.0
  %264 = vmatpush2.msra.mxu0 %v65
  %265 = vmatprep.mubr.f32.mxu0 %v18
  %266 = vmatmul.mubr.f32.gmra.mxu0 %v17
  %v267 = vpop.f32.mrf.mxu0
  %v268 = vadd.f32 %v184, %v267
  %v269 = vpop.f32.mrf.mxu0
  %270 = vmatprep.mubr.f32.mxu0 %v26
  %271 = vmatmul.mubr.f32.gmra.mxu0 %v25
  %v272 = vpop.f32.mrf.mxu0
  %v273 = vadd.f32 %v189, %v272
  %v274 = vpop.f32.mrf.mxu0
  %275 = vmatprep.mubr.f32.mxu0 %v34
  %276 = vmatmul.mubr.f32.gmra.mxu0 %v33
  %v277 = vpop.f32.mrf.mxu0
  %v278 = vadd.f32 %v194, %v277
  %v279 = vpop.f32.mrf.mxu0
  %280 = vmatprep.mubr.f32.mxu0 %v42
  %281 = vmatmul.mubr.f32.gmra.mxu0 %v41
  %v282 = vpop.f32.mrf.mxu0
  %v283 = vadd.f32 %v199, %v282
  %v284 = vpop.f32.mrf.mxu0
  %285 = vdwg.mxu0
  %286 = vmatprep.subr.mxu0 0.0
  %287 = vmatpush1.msra.mxu0 %v96
  %288 = vmatprep.subr.mxu0 0.0
  %289 = vmatpush1.msra.mxu0 %v95
  %290 = vmatprep.subr.mxu0 0.0
  %291 = vmatpush1.msra.mxu0 %v94
  %292 = vmatprep.subr.mxu0 0.0
  %293 = vmatpush1.msra.mxu0 %v93
  %294 = vmatprep.subr.mxu0 0.0
  %295 = vmatpush1.msra.mxu0 %v92
  %296 = vmatprep.subr.mxu0 0.0
  %297 = vmatpush1.msra.mxu0 %v91
  %298 = vmatprep.subr.mxu0 0.0
  %299 = vmatpush1.msra.mxu0 %v90
  %300 = vmatprep.subr.mxu0 0.0
  %301 = vmatpush1.msra.mxu0 %v89
  %302 = vmatprep.subr.mxu0 0.0
  %303 = vmatpush1.msra.mxu0 %v88
  %304 = vmatprep.subr.mxu0 0.0
  %305 = vmatpush1.msra.mxu0 %v87
  %306 = vmatprep.subr.mxu0 0.0
  %307 = vmatpush1.msra.mxu0 %v86
  %308 = vmatprep.subr.mxu0 0.0
  %309 = vmatpush1.msra.mxu0 %v85
  %310 = vmatprep.subr.mxu0 0.0
  %311 = vmatpush1.msra.mxu0 %v84
  %312 = vmatprep.subr.mxu0 0.0
  %313 = vmatpush1.msra.mxu0 %v83
  %314 = vmatprep.subr.mxu0 0.0
  %315 = vmatpush1.msra.mxu0 %v82
  %316 = vmatprep.subr.mxu0 0.0
  %317 = vmatpush1.msra.mxu0 %v81
  %318 = vmatprep.subr.mxu0 0.0
  %319 = vmatpush2.msra.mxu0 %v112
  %320 = vmatprep.subr.mxu0 0.0
  %321 = vmatpush2.msra.mxu0 %v111
  %322 = vmatprep.subr.mxu0 0.0
  %323 = vmatpush2.msra.mxu0 %v110
  %324 = vmatprep.subr.mxu0 0.0
  %325 = vmatpush2.msra.mxu0 %v109
  %326 = vmatprep.subr.mxu0 0.0
  %327 = vmatpush2.msra.mxu0 %v108
  %328 = vmatprep.subr.mxu0 0.0
  %329 = vmatpush2.msra.mxu0 %v107
  %330 = vmatprep.subr.mxu0 0.0
  %331 = vmatpush2.msra.mxu0 %v106
  %332 = vmatprep.subr.mxu0 0.0
  %333 = vmatpush2.msra.mxu0 %v105
  %334 = vmatprep.subr.mxu0 0.0
  %335 = vmatpush2.msra.mxu0 %v104
  %336 = vmatprep.subr.mxu0 0.0
  %337 = vmatpush2.msra.mxu0 %v103
  %338 = vmatprep.subr.mxu0 0.0
  %339 = vmatpush2.msra.mxu0 %v102
  %340 = vmatprep.subr.mxu0 0.0
  %341 = vmatpush2.msra.mxu0 %v101
  %342 = vmatprep.subr.mxu0 0.0
  %343 = vmatpush2.msra.mxu0 %v100
  %344 = vmatprep.subr.mxu0 0.0
  %345 = vmatpush2.msra.mxu0 %v99
  %346 = vmatprep.subr.mxu0 0.0
  %347 = vmatpush2.msra.mxu0 %v98
  %348 = vmatprep.subr.mxu0 0.0
  %349 = vmatpush2.msra.mxu0 %v97
  %350 = vmatprep.mubr.f32.mxu0 %v20
  %351 = vmatmul.mubr.f32.gmra.mxu0 %v19
  %v352 = vpop.f32.mrf.mxu0
  %v353 = vadd.f32 %v268, %v352
  %v354 = vpop.f32.mrf.mxu0
  %355 = vmatprep.mubr.f32.mxu0 %v28
  %356 = vmatmul.mubr.f32.gmra.mxu0 %v27
  %v357 = vpop.f32.mrf.mxu0
  %v358 = vadd.f32 %v273, %v357
  %v359 = vpop.f32.mrf.mxu0
  %360 = vmatprep.mubr.f32.mxu0 %v36
  %361 = vmatmul.mubr.f32.gmra.mxu0 %v35
  %v362 = vpop.f32.mrf.mxu0
  %v363 = vadd.f32 %v278, %v362
  %v364 = vpop.f32.mrf.mxu0
  %365 = vmatprep.mubr.f32.mxu0 %v44
  %366 = vmatmul.mubr.f32.gmra.mxu0 %v43
  %v367 = vpop.f32.mrf.mxu0
  %v368 = vadd.f32 %v283, %v367
  %v369 = vpop.f32.mrf.mxu0
  %370 = vdwg.mxu0
  %371 = vmatprep.subr.mxu0 0.0
  %372 = vmatpush1.msra.mxu0 %v128
  %373 = vmatprep.subr.mxu0 0.0
  %374 = vmatpush1.msra.mxu0 %v127
  %375 = vmatprep.subr.mxu0 0.0
  %376 = vmatpush1.msra.mxu0 %v126
  %377 = vmatprep.subr.mxu0 0.0
  %378 = vmatpush1.msra.mxu0 %v125
  %379 = vmatprep.subr.mxu0 0.0
  %380 = vmatpush1.msra.mxu0 %v124
  %381 = vmatprep.subr.mxu0 0.0
  %382 = vmatpush1.msra.mxu0 %v123
  %383 = vmatprep.subr.mxu0 0.0
  %384 = vmatpush1.msra.mxu0 %v122
  %385 = vmatprep.subr.mxu0 0.0
  %386 = vmatpush1.msra.mxu0 %v121
  %387 = vmatprep.subr.mxu0 0.0
  %388 = vmatpush1.msra.mxu0 %v120
  %389 = vmatprep.subr.mxu0 0.0
  %390 = vmatpush1.msra.mxu0 %v119
  %391 = vmatprep.subr.mxu0 0.0
  %392 = vmatpush1.msra.mxu0 %v118
  %393 = vmatprep.subr.mxu0 0.0
  %394 = vmatpush1.msra.mxu0 %v117
  %395 = vmatprep.subr.mxu0 0.0
  %396 = vmatpush1.msra.mxu0 %v116
  %397 = vmatprep.subr.mxu0 0.0
  %398 = vmatpush1.msra.mxu0 %v115
  %399 = vmatprep.subr.mxu0 0.0
  %400 = vmatpush1.msra.mxu0 %v114
  %401 = vmatprep.subr.mxu0 0.0
  %402 = vmatpush1.msra.mxu0 %v113
  %403 = vmatprep.subr.mxu0 0.0
  %404 = vmatpush2.msra.mxu0 %v144
  %405 = vmatprep.subr.mxu0 0.0
  %406 = vmatpush2.msra.mxu0 %v143
  %407 = vmatprep.subr.mxu0 0.0
  %408 = vmatpush2.msra.mxu0 %v142
  %409 = vmatprep.subr.mxu0 0.0
  %410 = vmatpush2.msra.mxu0 %v141
  %411 = vmatprep.subr.mxu0 0.0
  %412 = vmatpush2.msra.mxu0 %v140
  %413 = vmatprep.subr.mxu0 0.0
  %414 = vmatpush2.msra.mxu0 %v139
  %415 = vmatprep.subr.mxu0 0.0
  %416 = vmatpush2.msra.mxu0 %v138
  %417 = vmatprep.subr.mxu0 0.0
  %418 = vmatpush2.msra.mxu0 %v137
  %419 = vmatprep.subr.mxu0 0.0
  %420 = vmatpush2.msra.mxu0 %v136
  %421 = vmatprep.subr.mxu0 0.0
  %422 = vmatpush2.msra.mxu0 %v135
  %423 = vmatprep.subr.mxu0 0.0
  %424 = vmatpush2.msra.mxu0 %v134
  %425 = vmatprep.subr.mxu0 0.0
  %426 = vmatpush2.msra.mxu0 %v133
  %427 = vmatprep.subr.mxu0 0.0
  %428 = vmatpush2.msra.mxu0 %v132
  %429 = vmatprep.subr.mxu0 0.0
  %430 = vmatpush2.msra.mxu0 %v131
  %431 = vmatprep.subr.mxu0 0.0
  %432 = vmatpush2.msra.mxu0 %v130
  %433 = vmatprep.subr.mxu0 0.0
  %434 = vmatpush2.msra.mxu0 %v129
  %435 = vmatprep.mubr.f32.mxu0 %v22
  %436 = vmatmul.mubr.f32.gmra.mxu0 %v21
  %v437 = vpop.f32.mrf.mxu0
  %v438 = vadd.f32 %v353, %v437
  %v439 = vpop.f32.mrf.mxu0
  %440 = vmatprep.mubr.f32.mxu0 %v30
  %441 = vmatmul.mubr.f32.gmra.mxu0 %v29
  %v442 = vpop.f32.mrf.mxu0
  %v443 = vadd.f32 %v358, %v442
  %v444 = vpop.f32.mrf.mxu0
  %445 = vmatprep.mubr.f32.mxu0 %v38
  %446 = vmatmul.mubr.f32.gmra.mxu0 %v37
  %v447 = vpop.f32.mrf.mxu0
  %v448 = vadd.f32 %v363, %v447
  %v449 = vpop.f32.mrf.mxu0
  %450 = vmatprep.mubr.f32.mxu0 %v46
  %451 = vmatmul.mubr.f32.gmra.mxu0 %v45
  %v452 = vpop.f32.mrf.mxu0
  %v453 = vadd.f32 %v368, %v452
  %v454 = vpop.f32.mrf.mxu0
  %455 = vdwg.mxu0
  %456 = vmatprep.subr.mxu0 0.0
  %457 = vmatpush1.msra.mxu0 %v160
  %458 = vmatprep.subr.mxu0 0.0
  %459 = vmatpush1.msra.mxu0 %v159
  %460 = vmatprep.subr.mxu0 0.0
  %461 = vmatpush1.msra.mxu0 %v158
  %462 = vmatprep.subr.mxu0 0.0
  %463 = vmatpush1.msra.mxu0 %v157
  %464 = vmatprep.subr.mxu0 0.0
  %465 = vmatpush1.msra.mxu0 %v156
  %466 = vmatprep.subr.mxu0 0.0
  %467 = vmatpush1.msra.mxu0 %v155
  %468 = vmatprep.subr.mxu0 0.0
  %469 = vmatpush1.msra.mxu0 %v154
  %470 = vmatprep.subr.mxu0 0.0
  %471 = vmatpush1.msra.mxu0 %v153
  %472 = vmatprep.subr.mxu0 0.0
  %473 = vmatpush1.msra.mxu0 %v152
  %474 = vmatprep.subr.mxu0 0.0
  %475 = vmatpush1.msra.mxu0 %v151
  %476 = vmatprep.subr.mxu0 0.0
  %477 = vmatpush1.msra.mxu0 %v150
  %478 = vmatprep.subr.mxu0 0.0
  %479 = vmatpush1.msra.mxu0 %v149
  %480 = vmatprep.subr.mxu0 0.0
  %481 = vmatpush1.msra.mxu0 %v148
  %482 = vmatprep.subr.mxu0 0.0
  %483 = vmatpush1.msra.mxu0 %v147
  %484 = vmatprep.subr.mxu0 0.0
  %485 = vmatpush1.msra.mxu0 %v146
  %486 = vmatprep.subr.mxu0 0.0
  %487 = vmatpush1.msra.mxu0 %v145
  %488 = vmatprep.subr.mxu0 0.0
  %489 = vmatpush2.msra.mxu0 %v176
  %490 = vmatprep.subr.mxu0 0.0
  %491 = vmatpush2.msra.mxu0 %v175
  %492 = vmatprep.subr.mxu0 0.0
  %493 = vmatpush2.msra.mxu0 %v174
  %494 = vmatprep.subr.mxu0 0.0
  %495 = vmatpush2.msra.mxu0 %v173
  %496 = vmatprep.subr.mxu0 0.0
  %497 = vmatpush2.msra.mxu0 %v172
  %498 = vmatprep.subr.mxu0 0.0
  %499 = vmatpush2.msra.mxu0 %v171
  %500 = vmatprep.subr.mxu0 0.0
  %501 = vmatpush2.msra.mxu0 %v170
  %502 = vmatprep.subr.mxu0 0.0
  %503 = vmatpush2.msra.mxu0 %v169
  %504 = vmatprep.subr.mxu0 0.0
  %505 = vmatpush2.msra.mxu0 %v168
  %506 = vmatprep.subr.mxu0 0.0
  %507 = vmatpush2.msra.mxu0 %v167
  %508 = vmatprep.subr.mxu0 0.0
  %509 = vmatpush2.msra.mxu0 %v166
  %510 = vmatprep.subr.mxu0 0.0
  %511 = vmatpush2.msra.mxu0 %v165
  %512 = vmatprep.subr.mxu0 0.0
  %513 = vmatpush2.msra.mxu0 %v164
  %514 = vmatprep.subr.mxu0 0.0
  %515 = vmatpush2.msra.mxu0 %v163
  %516 = vmatprep.subr.mxu0 0.0
  %517 = vmatpush2.msra.mxu0 %v162
  %518 = vmatprep.subr.mxu0 0.0
  %519 = vmatpush2.msra.mxu0 %v161
  %520 = vmatprep.mubr.f32.mxu0 %v24
  %521 = vmatmul.mubr.f32.gmra.mxu0 %v23
  %v522 = vpop.f32.mrf.mxu0
  %v523 = vadd.f32 %v438, %v522
  %v524 = vpop.f32.mrf.mxu0
  %525 = vmatprep.mubr.f32.mxu0 %v32
  %526 = vmatmul.mubr.f32.gmra.mxu0 %v31
  %v527 = vpop.f32.mrf.mxu0
  %v528 = vadd.f32 %v443, %v527
  %v529 = vpop.f32.mrf.mxu0
  %530 = vmatprep.mubr.f32.mxu0 %v40
  %531 = vmatmul.mubr.f32.gmra.mxu0 %v39
  %v532 = vpop.f32.mrf.mxu0
  %v533 = vadd.f32 %v448, %v532
  %v534 = vpop.f32.mrf.mxu0
  %535 = vmatprep.mubr.f32.mxu0 %v48
  %536 = vmatmul.mubr.f32.gmra.mxu0 %v47
  %v537 = vpop.f32.mrf.mxu0
  %v538 = vadd.f32 %v453, %v537
  %v539 = vpop.f32.mrf.mxu0
  %540 = vdwg.mxu0
  %v541 = vld [vmem:[%s3] sm:$0xff]
  %v542 = vld [vmem:[%s3 + $0x8] sm:$0xff]
  %v543 = vld [vmem:[%s3 + $0x10] sm:$0xff]
  %v544 = vld [vmem:[%s3 + $0x18] sm:$0xff]
  %v545 = vmul.f32 %v523, %v541
  %v546 = vmul.f32 %v528, %v542
  %v547 = vmul.f32 %v533, %v543
  %v548 = vmul.f32 %v538, %v544
  %v549 = vmax.f32 %v545, 0.0
  %v550 = vmax.f32 %v546, 0.0
  %v551 = vmax.f32 %v547, 0.0
  %v552 = vmax.f32 %v548, 0.0
  %vm553 = vcmask 261120
  %554 = vst.msk [vmem:[%s4] sm:$0xff] %vm553, %v549
  %555 = vst.msk [vmem:[%s4 + $0x8] sm:$0xff] %vm553, %v550
  %556 = vst.msk [vmem:[%s4 + $0x10] sm:$0xff] %vm553, %v551
  %557 = vst.msk [vmem:[%s4 + $0x18] sm:$0xff] %vm553, %v552
  // Predicated region
  $region18: #{policy_forward.6} parent=0 // pred_check
    _
  $region19: #{policy_forward.6} parent=0 // pred_check_branch
    %559 = sbr.rel (0) target = $region21
  $region20: #{policy_forward.6} parent=0 // pred_region
    _
  $region21: #{policy_forward.6} parent=0 // pred_fallthru
    _
  // Predicated region
  $region22: #{policy_forward.6} parent=0 // pred_check
    _
  $region23: #{policy_forward.6} parent=0 // pred_check_branch
    %561 = sbr.rel (0) target = $region25
  $region24: #{policy_forward.6} parent=0 // pred_region
    _
  $region25: #{policy_forward.6} parent=0 // pred_fallthru
    _

// kernel: policy_forward.7
$region0: #{policy_forward.7}
  #allocation0 [shape = 'u32[]', space=smem, size = 0x4, offset = 0x4, fixed_abs, tag = 'smem constant byte address 0x4 - core index']
  #allocation1 [shape = 'u32[144,128]{1,0:T(1,128)}', space=vmem, size = 0x12000, scoped, tag = 'internal scratch']
  %s0 = inlined_call_operand.vmem [shape: f32[4,256], index: 0, kind: input, shape index: {}]
  %s1 = inlined_call_operand.vmem [shape: f32[256,256], index: 1, kind: input, shape index: {}]
  %s2 = inlined_call_operand.vmem [shape: f32[1,256], index: 2, kind: input, shape index: {}]
  %s3 = inlined_call_operand.vmem [shape: f32[256,128], index: 3, kind: input, shape index: {}]
  %s4 = inlined_call_operand.vmem [shape: f32[1,128], index: 4, kind: input, shape index: {}]
  %s5 = inlined_call_operand.vmem [shape: f32[128,128], index: 5, kind: input, shape index: {}]
  %s6 = inlined_call_operand.vmem [shape: f32[1,128], index: 6, kind: input, shape index: {}]
  %s7 = inlined_call_operand.vmem [shape: f32[1,128], index: 7, kind: input, shape index: {}]
  %s8 = inlined_call_operand.vmem [shape: f32[1,128], index: 8, kind: input, shape index: {}]
  %s9 = inlined_call_operand.vmem [shape: f32[128,512], index: 9, kind: input, shape index: {}]
  %s10 = inlined_call_operand.vmem [shape: f32[128,512], index: 10, kind: input, shape index: {}]
  %s11 = inlined_call_operand.vmem [shape: f32[1,512], index: 11, kind: input, shape index: {}]
  %s12 = inlined_call_operand.vmem [shape: f32[128,128], index: 12, kind: input, shape index: {}]
  %s13 = inlined_call_operand.vmem [shape: f32[1,128], index: 13, kind: input, shape index: {}]
  %s14 = inlined_call_operand.hbm [shape: f32[4,128], index: 14, kind: output, shape index: {0}]
  %s15 = inlined_call_operand.hbm [shape: f32[1,128], index: 15, kind: output, shape index: {1}]
  %s16 = inlined_call_operand.hbm [shape: f32[1,128], index: 16, kind: output, shape index: {2}]
  %s17 = inlined_call_operand.vmem [shape: f32[1,128], index: 17, kind: output, shape index: {3}]
  %s18 = inlined_call_operand.vmem [shape: f32[1,128], index: 18, kind: output, shape index: {4}]
  %19 = xla_tuple %s14, %s15, %s16, %s17, %s18
  %s20 = sld [smem:[#allocation0]]
  $region98: #{policy_forward.7} parent=0
    _
  %s22 = ssub.s32 1, %s20
  %s23 = scalar_select 0, %s22, %s20
  $region1: #{policy_forward.7} parent=0
    #allocation2 [shape = 'u8[2048]{0}', space=vmem, size = 0x800, scoped, tag = 'output window, operand 0, single buffered']
    #allocation3 [shape = 's32[1]{0}', space=sflag, size = 0x4, scoped, tag = 'scoped memory for policy_forward.7']
    #allocation4 [shape = 'u8[512]{0}', space=vmem, size = 0x400, scoped, tag = 'output window, operand 1, single buffered']
    #allocation5 [shape = 's32[1]{0}', space=sflag, size = 0x4, scoped, tag = 'scoped memory for policy_forward.7']
    #allocation6 [shape = 'u8[512]{0}', space=vmem, size = 0x400, scoped, tag = 'output window, operand 2, single buffered']
    %24 = vsyncpa [#allocation3], 0
    %25 = vsyncpa [#allocation5], 0
    // Predicated region
    $region2: #{policy_forward.7} parent=1 // pred_check
      _
    $region3: #{policy_forward.7} parent=1 // pred_check_branch
      %27 = sbr.rel (0) target = $region5
    $region4: #{policy_forward.7} parent=1 // pred_region
      _
    $region5: #{policy_forward.7} parent=1 // pred_fallthru
      _
    // Predicated region
    $region6: #{policy_forward.7} parent=1 // pred_check
      _
    $region7: #{policy_forward.7} parent=1 // pred_check_branch
      %29 = sbr.rel (0) target = $region9
    $region8: #{policy_forward.7} parent=1 // pred_region
      _
    $region9: #{policy_forward.7} parent=1 // pred_fallthru
      _
    // Predicated region
    $region10: #{policy_forward.7} parent=1 // pred_check
      _
    $region11: #{policy_forward.7} parent=1 // pred_check_branch
      %31 = sbr.rel (0) target = $region13
    $region12: #{policy_forward.7} parent=1 // pred_region
      _
    $region13: #{policy_forward.7} parent=1 // pred_fallthru
      _
    // Predicated region
    $region14: #{policy_forward.7} parent=1 // pred_check
      _
    $region15: #{policy_forward.7} parent=1 // pred_check_branch
      %33 = sbr.rel (0) target = $region17
    $region16: #{policy_forward.7} parent=1 // pred_region
      _
    $region17: #{policy_forward.7} parent=1 // pred_fallthru
      _
    // Predicated region
    $region18: #{policy_forward.7} parent=1 // pred_check
      _
    $region19: #{policy_forward.7} parent=1 // pred_check_branch
      %35 = sbr.rel (0) target = $region21
    $region20: #{policy_forward.7} parent=1 // pred_region
      _
    $region21: #{policy_forward.7} parent=1 // pred_fallthru
      _
    // Predicated region
    $region22: #{policy_forward.7} parent=1 // pred_check
      _
    $region23: #{policy_forward.7} parent=1 // pred_check_branch
      %37 = sbr.rel (0) target = $region25
    $region24: #{policy_forward.7} parent=1 // pred_region
      _
    $region25: #{policy_forward.7} parent=1 // pred_fallthru
      _
    // Predicated region
    $region26: #{policy_forward.7} parent=1 // pred_check
      _
    $region27: #{policy_forward.7} parent=1 // pred_check_branch
      %39 = sbr.rel (0) target = $region29
    $region28: #{policy_forward.7} parent=1 // pred_region
      _
    $region29: #{policy_forward.7} parent=1 // pred_fallthru
      _
    // Predicated region
    $region30: #{policy_forward.7} parent=1 // pred_check
      _
    $region31: #{policy_forward.7} parent=1 // pred_check_branch
      %41 = sbr.rel (0) target = $region33
    $region32: #{policy_forward.7} parent=1 // pred_region
      _
    $region33: #{policy_forward.7} parent=1 // pred_fallthru
      _
    // Predicated region
    $region34: #{policy_forward.7} parent=1 // pred_check
      _
    $region35: #{policy_forward.7} parent=1 // pred_check_branch
      %43 = sbr.rel (0) target = $region37
    $region36: #{policy_forward.7} parent=1 // pred_region
      _
    $region37: #{policy_forward.7} parent=1 // pred_fallthru
      _
    // Predicated region
    $region38: #{policy_forward.7} parent=1 // pred_check
      _
    $region39: #{policy_forward.7} parent=1 // pred_check_branch
      %45 = sbr.rel (0) target = $region41
    $region40: #{policy_forward.7} parent=1 // pred_region
      _
    $region41: #{policy_forward.7} parent=1 // pred_fallthru
      _
    // Predicated region
    $region42: #{policy_forward.7} parent=1 // pred_check
      _
    $region43: #{policy_forward.7} parent=1 // pred_check_branch
      %47 = sbr.rel (0) target = $region45
    $region44: #{policy_forward.7} parent=1 // pred_region
      _
    $region45: #{policy_forward.7} parent=1 // pred_fallthru
      _
    // Predicated region
    $region46: #{policy_forward.7} parent=1 // pred_check
      _
    $region47: #{policy_forward.7} parent=1 // pred_check_branch
      %49 = sbr.rel (0) target = $region49
    $region48: #{policy_forward.7} parent=1 // pred_region
      _
    $region49: #{policy_forward.7} parent=1 // pred_fallthru
      _
    // Predicated region
    $region50: #{policy_forward.7} parent=1 // pred_check
      _
    $region51: #{policy_forward.7} parent=1 // pred_check_branch
      %51 = sbr.rel (0) target = $region53
    $region52: #{policy_forward.7} parent=1 // pred_region
      _
    $region53: #{policy_forward.7} parent=1 // pred_fallthru
      _
    // Predicated region
    $region54: #{policy_forward.7} parent=1 // pred_check
      _
    $region55: #{policy_forward.7} parent=1 // pred_check_branch
      %53 = sbr.rel (0) target = $region57
    $region56: #{policy_forward.7} parent=1 // pred_region
      _
    $region57: #{policy_forward.7} parent=1 // pred_fallthru
      _
    %v54 = vld [vmem:[%s0] sm:$0xff]
    %v55 = vld [vmem:[%s1] sm:$0xff]
    %v56 = vld [vmem:[%s1 + $0x8] sm:$0xff]
    %v57 = vld [vmem:[%s1 + $0x10] sm:$0xff]
    %v58 = vld [vmem:[%s1 + $0x18] sm:$0xff]
    %v59 = vld [vmem:[%s1 + $0x20] sm:$0xff]
    %v60 = vld [vmem:[%s1 + $0x28] sm:$0xff]
    %v61 = vld [vmem:[%s1 + $0x30] sm:$0xff]
    %v62 = vld [vmem:[%s1 + $0x38] sm:$0xff]
    %v63 = vld [vmem:[%s1 + $0x40] sm:$0xff]
    %v64 = vld [vmem:[%s1 + $0x48] sm:$0xff]
    %v65 = vld [vmem:[%s1 + $0x50] sm:$0xff]
    %v66 = vld [vmem:[%s1 + $0x58] sm:$0xff]
    %v67 = vld [vmem:[%s1 + $0x60] sm:$0xff]
    %v68 = vld [vmem:[%s1 + $0x68] sm:$0xff]
    %v69 = vld [vmem:[%s1 + $0x70] sm:$0xff]
    %v70 = vld [vmem:[%s1 + $0x78] sm:$0xff]
    %v71 = vld [vmem:[%s1 + $0x80] sm:$0xff]
    %v72 = vld [vmem:[%s1 + $0x88] sm:$0xff]
    %v73 = vld [vmem:[%s1 + $0x90] sm:$0xff]
    %v74 = vld [vmem:[%s1 + $0x98] sm:$0xff]
    %v75 = vld [vmem:[%s1 + $0xa0] sm:$0xff]
    %v76 = vld [vmem:[%s1 + $0xa8] sm:$0xff]
    %v77 = vld [vmem:[%s1 + $0xb0] sm:$0xff]
    %v78 = vld [vmem:[%s1 + $0xb8] sm:$0xff]
    %v79 = vld [vmem:[%s1 + $0xc0] sm:$0xff]
    %v80 = vld [vmem:[%s1 + $0xc8] sm:$0xff]
    %v81 = vld [vmem:[%s1 + $0xd0] sm:$0xff]
    %v82 = vld [vmem:[%s1 + $0xd8] sm:$0xff]
    %v83 = vld [vmem:[%s1 + $0xe0] sm:$0xff]
    %v84 = vld [vmem:[%s1 + $0xe8] sm:$0xff]
    %v85 = vld [vmem:[%s1 + $0xf0] sm:$0xff]
    %v86 = vld [vmem:[%s1 + $0xf8] sm:$0xff]
    %v87 = vld [vmem:[%s1 + $0x100] sm:$0xff]
    %v88 = vld [vmem:[%s1 + $0x108] sm:$0xff]
    %v89 = vld [vmem:[%s1 + $0x110] sm:$0xff]
    %v90 = vld [vmem:[%s1 + $0x118] sm:$0xff]
    %v91 = vld [vmem:[%s1 + $0x120] sm:$0xff]
    %v92 = vld [vmem:[%s1 + $0x128] sm:$0xff]
    %v93 = vld [vmem:[%s1 + $0x130] sm:$0xff]
    %v94 = vld [vmem:[%s1 + $0x138] sm:$0xff]
    %v95 = vld [vmem:[%s1 + $0x140] sm:$0xff]
    %v96 = vld [vmem:[%s1 + $0x148] sm:$0xff]
    %v97 = vld [vmem:[%s1 + $0x150] sm:$0xff]
    %v98 = vld [vmem:[%s1 + $0x158] sm:$0xff]
    %v99 = vld [vmem:[%s1 + $0x160] sm:$0xff]
    %v100 = vld [vmem:[%s1 + $0x168] sm:$0xff]
    %v101 = vld [vmem:[%s1 + $0x170] sm:$0xff]
    %v102 = vld [vmem:[%s1 + $0x178] sm:$0xff]
    %v103 = vld [vmem:[%s1 + $0x180] sm:$0xff]
    %v104 = vld [vmem:[%s1 + $0x188] sm:$0xff]
    %v105 = vld [vmem:[%s1 + $0x190] sm:$0xff]
    %v106 = vld [vmem:[%s1 + $0x198] sm:$0xff]
    %v107 = vld [vmem:[%s1 + $0x1a0] sm:$0xff]
    %v108 = vld [vmem:[%s1 + $0x1a8] sm:$0xff]
    %v109 = vld [vmem:[%s1 + $0x1b0] sm:$0xff]
    %v110 = vld [vmem:[%s1 + $0x1b8] sm:$0xff]
    %v111 = vld [vmem:[%s1 + $0x1c0] sm:$0xff]
    %v112 = vld [vmem:[%s1 + $0x1c8] sm:$0xff]
    %v113 = vld [vmem:[%s1 + $0x1d0] sm:$0xff]
    %v114 = vld [vmem:[%s1 + $0x1d8] sm:$0xff]
    %v115 = vld [vmem:[%s1 + $0x1e0] sm:$0xff]
    %v116 = vld [vmem:[%s1 + $0x1e8] sm:$0xff]
    %v117 = vld [vmem:[%s1 + $0x1f0] sm:$0xff]
    %v118 = vld [vmem:[%s1 + $0x1f8] sm:$0xff]
    %v119 = vld [vmem:[%s2] sm:$0x3]
    %v121 = vlaneseq
    %v122 = vshrl.u32 %v121, 7
    %v123 = vsub.s32 0, %v122
    %v124 = vrot.slane %v119, %v123
    %v125 = vlaneseq
    %v126 = vshrl.u32 %v125, 7
    %v127 = vsub.s32 1, %v126
    %v128 = vrot.slane %v119, %v127
    %v132 = vcombine.high %v54, %v54
    %134 = vmatprep.subr.mxu0 %v86
    %135 = vmatpush1.msra.mxu0 %v85
    %136 = vmatprep.subr.mxu0 %v84
    %137 = vmatpush1.msra.mxu0 %v83
    %138 = vmatprep.subr.mxu0 %v82
    %139 = vmatpush1.msra.mxu0 %v81
    %140 = vmatprep.subr.mxu0 %v80
    %141 = vmatpush1.msra.mxu0 %v79
    %142 = vmatprep.subr.mxu0 %v78
    %143 = vmatpush1.msra.mxu0 %v77
    %144 = vmatprep.subr.mxu0 %v76
    %145 = vmatpush1.msra.mxu0 %v75
    %146 = vmatprep.subr.mxu0 %v74
    %147 = vmatpush1.msra.mxu0 %v73
    %148 = vmatprep.subr.mxu0 %v72
    %149 = vmatpush1.msra.mxu0 %v71
    %150 = vmatprep.subr.mxu0 %v70
    %151 = vmatpush1.msra.mxu0 %v69
    %152 = vmatprep.subr.mxu0 %v68
    %153 = vmatpush1.msra.mxu0 %v67
    %154 = vmatprep.subr.mxu0 %v66
    %155 = vmatpush1.msra.mxu0 %v65
    %156 = vmatprep.subr.mxu0 %v64
    %157 = vmatpush1.msra.mxu0 %v63
    %158 = vmatprep.subr.mxu0 %v62
    %159 = vmatpush1.msra.mxu0 %v61
    %160 = vmatprep.subr.mxu0 %v60
    %161 = vmatpush1.msra.mxu0 %v59
    %162 = vmatprep.subr.mxu0 %v58
    %163 = vmatpush1.msra.mxu0 %v57
    %164 = vmatprep.subr.mxu0 %v56
    %165 = vmatpush1.msra.mxu0 %v55
    %166 = vmatprep.subr.mxu0 %v118
    %167 = vmatpush2.msra.mxu0 %v117
    %168 = vmatprep.subr.mxu0 %v116
    %169 = vmatpush2.msra.mxu0 %v115
    %170 = vmatprep.subr.mxu0 %v114
    %171 = vmatpush2.msra.mxu0 %v113
    %172 = vmatprep.subr.mxu0 %v112
    %173 = vmatpush2.msra.mxu0 %v111
    %174 = vmatprep.subr.mxu0 %v110
    %175 = vmatpush2.msra.mxu0 %v109
    %176 = vmatprep.subr.mxu0 %v108
    %177 = vmatpush2.msra.mxu0 %v107
    %178 = vmatprep.subr.mxu0 %v106
    %179 = vmatpush2.msra.mxu0 %v105
    %180 = vmatprep.subr.mxu0 %v104
    %181 = vmatpush2.msra.mxu0 %v103
    %182 = vmatprep.subr.mxu0 %v102
    %183 = vmatpush2.msra.mxu0 %v101
    %184 = vmatprep.subr.mxu0 %v100
    %185 = vmatpush2.msra.mxu0 %v99
    %186 = vmatprep.subr.mxu0 %v98
    %187 = vmatpush2.msra.mxu0 %v97
    %188 = vmatprep.subr.mxu0 %v96
    %189 = vmatpush2.msra.mxu0 %v95
    %190 = vmatprep.subr.mxu0 %v94
    %191 = vmatpush2.msra.mxu0 %v93
    %192 = vmatprep.subr.mxu0 %v92
    %193 = vmatpush2.msra.mxu0 %v91
    %194 = vmatprep.subr.mxu0 %v90
    %195 = vmatpush2.msra.mxu0 %v89
    %196 = vmatprep.subr.mxu0 %v88
    %197 = vmatpush2.msra.mxu0 %v87
    %198 = vmatprep.mubr.f32.mxu0 %v132
    %199 = vmatmul.mubr.f32.gmra.mxu0 %v54
    %v200 = vpop.f32.mrf.mxu0
    %v201 = vadd.f32 %v124, %v200
    %v202 = vpop.f32.mrf.mxu0
    %v203 = vadd.f32 %v128, %v202
    %204 = vdwg.mxu0
    %v205 = vmax.f32 %v201, 0.0
    %v206 = vmax.f32 %v203, 0.0
    %v207 = vld [vmem:[%s3] sm:$0xff]
    %v208 = vld [vmem:[%s3 + $0x8] sm:$0xff]
    %v209 = vld [vmem:[%s3 + $0x10] sm:$0xff]
    %v210 = vld [vmem:[%s3 + $0x18] sm:$0xff]
    %v211 = vld [vmem:[%s3 + $0x20] sm:$0xff]
    %v212 = vld [vmem:[%s3 + $0x28] sm:$0xff]
    %v213 = vld [vmem:[%s3 + $0x30] sm:$0xff]
    %v214 = vld [vmem:[%s3 + $0x38] sm:$0xff]
    %v215 = vld [vmem:[%s3 + $0x40] sm:$0xff]
    %v216 = vld [vmem:[%s3 + $0x48] sm:$0xff]
    %v217 = vld [vmem:[%s3 + $0x50] sm:$0xff]
    %v218 = vld [vmem:[%s3 + $0x58] sm:$0xff]
    %v219 = vld [vmem:[%s3 + $0x60] sm:$0xff]
    %v220 = vld [vmem:[%s3 + $0x68] sm:$0xff]
    %v221 = vld [vmem:[%s3 + $0x70] sm:$0xff]
    %v222 = vld [vmem:[%s3 + $0x78] sm:$0xff]
    %v223 = vld [vmem:[%s3 + $0x80] sm:$0xff]
    %v224 = vld [vmem:[%s3 + $0x88] sm:$0xff]
    %v225 = vld [vmem:[%s3 + $0x90] sm:$0xff]
    %v226 = vld [vmem:[%s3 + $0x98] sm:$0xff]
    %v227 = vld [vmem:[%s3 + $0xa0] sm:$0xff]
    %v228 = vld [vmem:[%s3 + $0xa8] sm:$0xff]
    %v229 = vld [vmem:[%s3 + $0xb0] sm:$0xff]
    %v230 = vld [vmem:[%s3 + $0xb8] sm:$0xff]
    %v231 = vld [vmem:[%s3 + $0xc0] sm:$0xff]
    %v232 = vld [vmem:[%s3 + $0xc8] sm:$0xff]
    %v233 = vld [vmem:[%s3 + $0xd0] sm:$0xff]
    %v234 = vld [vmem:[%s3 + $0xd8] sm:$0xff]
    %v235 = vld [vmem:[%s3 + $0xe0] sm:$0xff]
    %v236 = vld [vmem:[%s3 + $0xe8] sm:$0xff]
    %v237 = vld [vmem:[%s3 + $0xf0] sm:$0xff]
    %v238 = vld [vmem:[%s3 + $0xf8] sm:$0xff]
    %v239 = vld [vmem:[%s4] sm:$0x1]
    %v241 = vlaneseq
    %v242 = vshrl.u32 %v241, 7
    %v243 = vsub.s32 0, %v242
    %v244 = vrot.slane %v239, %v243
    %246 = vmatprep.subr.mxu0 0.0
    %247 = vmatpush1.msra.mxu0 %v222
    %248 = vmatprep.subr.mxu0 0.0
    %249 = vmatpush1.msra.mxu0 %v221
    %250 = vmatprep.subr.mxu0 0.0
    %251 = vmatpush1.msra.mxu0 %v220
    %252 = vmatprep.subr.mxu0 0.0
    %253 = vmatpush1.msra.mxu0 %v219
    %254 = vmatprep.subr.mxu0 0.0
    %255 = vmatpush1.msra.mxu0 %v218
    %256 = vmatprep.subr.mxu0 0.0
    %257 = vmatpush1.msra.mxu0 %v217
    %258 = vmatprep.subr.mxu0 0.0
    %259 = vmatpush1.msra.mxu0 %v216
    %260 = vmatprep.subr.mxu0 0.0
    %261 = vmatpush1.msra.mxu0 %v215
    %262 = vmatprep.subr.mxu0 0.0
    %263 = vmatpush1.msra.mxu0 %v214
    %264 = vmatprep.subr.mxu0 0.0
    %265 = vmatpush1.msra.mxu0 %v213
    %266 = vmatprep.subr.mxu0 0.0
    %267 = vmatpush1.msra.mxu0 %v212
    %268 = vmatprep.subr.mxu0 0.0
    %269 = vmatpush1.msra.mxu0 %v211
    %270 = vmatprep.subr.mxu0 0.0
    %271 = vmatpush1.msra.mxu0 %v210
    %272 = vmatprep.subr.mxu0 0.0
    %273 = vmatpush1.msra.mxu0 %v209
    %274 = vmatprep.subr.mxu0 0.0
    %275 = vmatpush1.msra.mxu0 %v208
    %276 = vmatprep.subr.mxu0 0.0
    %277 = vmatpush1.msra.mxu0 %v207
    %278 = vmatprep.subr.mxu0 0.0
    %279 = vmatpush2.msra.mxu0 %v238
    %280 = vmatprep.subr.mxu0 0.0
    %281 = vmatpush2.msra.mxu0 %v237
    %282 = vmatprep.subr.mxu0 0.0
    %283 = vmatpush2.msra.mxu0 %v236
    %284 = vmatprep.subr.mxu0 0.0
    %285 = vmatpush2.msra.mxu0 %v235
    %286 = vmatprep.subr.mxu0 0.0
    %287 = vmatpush2.msra.mxu0 %v234
    %288 = vmatprep.subr.mxu0 0.0
    %289 = vmatpush2.msra.mxu0 %v233
    %290 = vmatprep.subr.mxu0 0.0
    %291 = vmatpush2.msra.mxu0 %v232
    %292 = vmatprep.subr.mxu0 0.0
    %293 = vmatpush2.msra.mxu0 %v231
    %294 = vmatprep.subr.mxu0 0.0
    %295 = vmatpush2.msra.mxu0 %v230
    %296 = vmatprep.subr.mxu0 0.0
    %297 = vmatpush2.msra.mxu0 %v229
    %298 = vmatprep.subr.mxu0 0.0
    %299 = vmatpush2.msra.mxu0 %v228
    %300 = vmatprep.subr.mxu0 0.0
    %301 = vmatpush2.msra.mxu0 %v227
    %302 = vmatprep.subr.mxu0 0.0
    %303 = vmatpush2.msra.mxu0 %v226
    %304 = vmatprep.subr.mxu0 0.0
    %305 = vmatpush2.msra.mxu0 %v225
    %306 = vmatprep.subr.mxu0 0.0
    %307 = vmatpush2.msra.mxu0 %v224
    %308 = vmatprep.subr.mxu0 0.0
    %309 = vmatpush2.msra.mxu0 %v223
    %310 = vmatprep.mubr.f32.mxu0 %v206
    %311 = vmatmul.mubr.f32.gmra.mxu0 %v205
    %v312 = vpop.f32.mrf.mxu0
    %v313 = vadd.f32 %v244, %v312
    %v314 = vpop.f32.mrf.mxu0
    %315 = vdwg.mxu0
    %v316 = vmax.f32 %v313, 0.0
    %v317 = vld [vmem:[%s5] sm:$0xff]
    %v318 = vld [vmem:[%s5 + $0x8] sm:$0xff]
    %v319 = vld [vmem:[%s5 + $0x10] sm:$0xff]
    %v320 = vld [vmem:[%s5 + $0x18] sm:$0xff]
    %v321 = vld [vmem:[%s5 + $0x20] sm:$0xff]
    %v322 = vld [vmem:[%s5 + $0x28] sm:$0xff]
    %v323 = vld [vmem:[%s5 + $0x30] sm:$0xff]
    %v324 = vld [vmem:[%s5 + $0x38] sm:$0xff]
    %v325 = vld [vmem:[%s5 + $0x40] sm:$0xff]
    %v326 = vld [vmem:[%s5 + $0x48] sm:$0xff]
    %v327 = vld [vmem:[%s5 + $0x50] sm:$0xff]
    %v328 = vld [vmem:[%s5 + $0x58] sm:$0xff]
    %v329 = vld [vmem:[%s5 + $0x60] sm:$0xff]
    %v330 = vld [vmem:[%s5 + $0x68] sm:$0xff]
    %v331 = vld [vmem:[%s5 + $0x70] sm:$0xff]
    %v332 = vld [vmem:[%s5 + $0x78] sm:$0xff]
    %v333 = vld [vmem:[%s6] sm:$0x1]
    %v335 = vlaneseq
    %v336 = vshrl.u32 %v335, 7
    %v337 = vsub.s32 0, %v336
    %v338 = vrot.slane %v333, %v337
    %340 = vmatprep.subr.mxu0 0.0
    %341 = vmatpush1.msra.mxu0 %v332
    %342 = vmatprep.subr.mxu0 0.0
    %343 = vmatpush1.msra.mxu0 %v331
    %344 = vmatprep.subr.mxu0 0.0
    %345 = vmatpush1.msra.mxu0 %v330
    %346 = vmatprep.subr.mxu0 0.0
    %347 = vmatpush1.msra.mxu0 %v329
    %348 = vmatprep.subr.mxu0 0.0
    %349 = vmatpush1.msra.mxu0 %v328
    %350 = vmatprep.subr.mxu0 0.0
    %351 = vmatpush1.msra.mxu0 %v327
    %352 = vmatprep.subr.mxu0 0.0
    %353 = vmatpush1.msra.mxu0 %v326
    %354 = vmatprep.subr.mxu0 0.0
    %355 = vmatpush1.msra.mxu0 %v325
    %356 = vmatprep.subr.mxu0 0.0
    %357 = vmatpush1.msra.mxu0 %v324
    %358 = vmatprep.subr.mxu0 0.0
    %359 = vmatpush1.msra.mxu0 %v323
    %360 = vmatprep.subr.mxu0 0.0
    %361 = vmatpush1.msra.mxu0 %v322
    %362 = vmatprep.subr.mxu0 0.0
    %363 = vmatpush1.msra.mxu0 %v321
    %364 = vmatprep.subr.mxu0 0.0
    %365 = vmatpush1.msra.mxu0 %v320
    %366 = vmatprep.subr.mxu0 0.0
    %367 = vmatpush1.msra.mxu0 %v319
    %368 = vmatprep.subr.mxu0 0.0
    %369 = vmatpush1.msra.mxu0 %v318
    %370 = vmatprep.subr.mxu0 0.0
    %371 = vmatpush1.msra.mxu0 %v317
    %372 = vmatprep.subr.mxu0 0.0
    %373 = vmatpush2.msra.mxu0 0.0
    %374 = vmatprep.subr.mxu0 0.0
    %375 = vmatpush2.msra.mxu0 0.0
    %376 = vmatprep.subr.mxu0 0.0
    %377 = vmatpush2.msra.mxu0 0.0
    %378 = vmatprep.subr.mxu0 0.0
    %379 = vmatpush2.msra.mxu0 0.0
    %380 = vmatprep.subr.mxu0 0.0
    %381 = vmatpush2.msra.mxu0 0.0
    %382 = vmatprep.subr.mxu0 0.0
    %383 = vmatpush2.msra.mxu0 0.0
    %384 = vmatprep.subr.mxu0 0.0
    %385 = vmatpush2.msra.mxu0 0.0
    %386 = vmatprep.subr.mxu0 0.0
    %387 = vmatpush2.msra.mxu0 0.0
    %388 = vmatprep.subr.mxu0 0.0
    %389 = vmatpush2.msra.mxu0 0.0
    %390 = vmatprep.subr.mxu0 0.0
    %391 = vmatpush2.msra.mxu0 0.0
    %392 = vmatprep.subr.mxu0 0.0
    %393 = vmatpush2.msra.mxu0 0.0
    %394 = vmatprep.subr.mxu0 0.0
    %395 = vmatpush2.msra.mxu0 0.0
    %396 = vmatprep.subr.mxu0 0.0
    %397 = vmatpush2.msra.mxu0 0.0
    %398 = vmatprep.subr.mxu0 0.0
    %399 = vmatpush2.msra.mxu0 0.0
    %400 = vmatprep.subr.mxu0 0.0
    %401 = vmatpush2.msra.mxu0 0.0
    %402 = vmatprep.subr.mxu0 0.0
    %403 = vmatpush2.msra.mxu0 0.0
    %404 = vmatprep.mubr.f32.mxu0 0.0
    %405 = vmatmul.mubr.f32.gmra.mxu0 %v316
    %v406 = vpop.f32.mrf.mxu0
    %v407 = vadd.f32 %v338, %v406
    %v408 = vpop.f32.mrf.mxu0
    %409 = vdwg.mxu0
    %v410 = vmax.f32 %v407, 0.0
    %v411 = vld [vmem:[%s9] sm:$0xff]
    %v412 = vld [vmem:[%s9 + $0x8] sm:$0xff]
    %v413 = vld [vmem:[%s9 + $0x10] sm:$0xff]
    %v414 = vld [vmem:[%s9 + $0x18] sm:$0xff]
    %v415 = vld [vmem:[%s9 + $0x20] sm:$0xff]
    %v416 = vld [vmem:[%s9 + $0x28] sm:$0xff]
    %v417 = vld [vmem:[%s9 + $0x30] sm:$0xff]
    %v418 = vld [vmem:[%s9 + $0x38] sm:$0xff]
    %v419 = vld [vmem:[%s9 + $0x40] sm:$0xff]
    %v420 = vld [vmem:[%s9 + $0x48] sm:$0xff]
    %v421 = vld [vmem:[%s9 + $0x50] sm:$0xff]
    %v422 = vld [vmem:[%s9 + $0x58] sm:$0xff]
    %v423 = vld [vmem:[%s9 + $0x60] sm:$0xff]
    %v424 = vld [vmem:[%s9 + $0x68] sm:$0xff]
    %v425 = vld [vmem:[%s9 + $0x70] sm:$0xff]
    %v426 = vld [vmem:[%s9 + $0x78] sm:$0xff]
    %v427 = vld [vmem:[%s9 + $0x80] sm:$0xff]
    %v428 = vld [vmem:[%s9 + $0x88] sm:$0xff]
    %v429 = vld [vmem:[%s9 + $0x90] sm:$0xff]
    %v430 = vld [vmem:[%s9 + $0x98] sm:$0xff]
    %v431 = vld [vmem:[%s9 + $0xa0] sm:$0xff]
    %v432 = vld [vmem:[%s9 + $0xa8] sm:$0xff]
    %v433 = vld [vmem:[%s9 + $0xb0] sm:$0xff]
    %v434 = vld [vmem:[%s9 + $0xb8] sm:$0xff]
    %v435 = vld [vmem:[%s9 + $0xc0] sm:$0xff]
    %v436 = vld [vmem:[%s9 + $0xc8] sm:$0xff]
    %v437 = vld [vmem:[%s9 + $0xd0] sm:$0xff]
    %v438 = vld [vmem:[%s9 + $0xd8] sm:$0xff]
    %v439 = vld [vmem:[%s9 + $0xe0] sm:$0xff]
    %v440 = vld [vmem:[%s9 + $0xe8] sm:$0xff]
    %v441 = vld [vmem:[%s9 + $0xf0] sm:$0xff]
    %v442 = vld [vmem:[%s9 + $0xf8] sm:$0xff]
    %v443 = vld [vmem:[%s9 + $0x100] sm:$0xff]
    %v444 = vld [vmem:[%s9 + $0x108] sm:$0xff]
    %v445 = vld [vmem:[%s9 + $0x110] sm:$0xff]
    %v446 = vld [vmem:[%s9 + $0x118] sm:$0xff]
    %v447 = vld [vmem:[%s9 + $0x120] sm:$0xff]
    %v448 = vld [vmem:[%s9 + $0x128] sm:$0xff]
    %v449 = vld [vmem:[%s9 + $0x130] sm:$0xff]
    %v450 = vld [vmem:[%s9 + $0x138] sm:$0xff]
    %v451 = vld [vmem:[%s9 + $0x140] sm:$0xff]
    %v452 = vld [vmem:[%s9 + $0x148] sm:$0xff]
    %v453 = vld [vmem:[%s9 + $0x150] sm:$0xff]
    %v454 = vld [vmem:[%s9 + $0x158] sm:$0xff]
    %v455 = vld [vmem:[%s9 + $0x160] sm:$0xff]
    %v456 = vld [vmem:[%s9 + $0x168] sm:$0xff]
    %v457 = vld [vmem:[%s9 + $0x170] sm:$0xff]
    %v458 = vld [vmem:[%s9 + $0x178] sm:$0xff]
    %v459 = vld [vmem:[%s9 + $0x180] sm:$0xff]
    %v460 = vld [vmem:[%s9 + $0x188] sm:$0xff]
    %v461 = vld [vmem:[%s9 + $0x190] sm:$0xff]
    %v462 = vld [vmem:[%s9 + $0x198] sm:$0xff]
    %v463 = vld [vmem:[%s9 + $0x1a0] sm:$0xff]
    %v464 = vld [vmem:[%s9 + $0x1a8] sm:$0xff]
    %v465 = vld [vmem:[%s9 + $0x1b0] sm:$0xff]
    %v466 = vld [vmem:[%s9 + $0x1b8] sm:$0xff]
    %v467 = vld [vmem:[%s9 + $0x1c0] sm:$0xff]
    %v468 = vld [vmem:[%s9 + $0x1c8] sm:$0xff]
    %v469 = vld [vmem:[%s9 + $0x1d0] sm:$0xff]
    %v470 = vld [vmem:[%s9 + $0x1d8] sm:$0xff]
    %v471 = vld [vmem:[%s9 + $0x1e0] sm:$0xff]
    %v472 = vld [vmem:[%s9 + $0x1e8] sm:$0xff]
    %v473 = vld [vmem:[%s9 + $0x1f0] sm:$0xff]
    %v474 = vld [vmem:[%s9 + $0x1f8] sm:$0xff]
    %v475 = vld [vmem:[%s11] sm:$0xf]
    %v477 = vlaneseq
    %v478 = vshrl.u32 %v477, 7
    %v479 = vsub.s32 0, %v478
    %v480 = vrot.slane %v475, %v479
    %v481 = vlaneseq
    %v482 = vshrl.u32 %v481, 7
    %v483 = vsub.s32 1, %v482
    %v484 = vrot.slane %v475, %v483
    %v485 = vlaneseq
    %v486 = vshrl.u32 %v485, 7
    %v487 = vsub.s32 2, %v486
    %v488 = vrot.slane %v475, %v487
    %v489 = vlaneseq
    %v490 = vshrl.u32 %v489, 7
    %v491 = vsub.s32 3, %v490
    %v492 = vrot.slane %v475, %v491
    %497 = vmatprep.subr.mxu0 %v472
    %498 = vmatpush1.msra.mxu0 %v471
    %499 = vmatprep.subr.mxu0 %v468
    %500 = vmatpush1.msra.mxu0 %v467
    %501 = vmatprep.subr.mxu0 %v464
    %502 = vmatpush1.msra.mxu0 %v463
    %503 = vmatprep.subr.mxu0 %v460
    %504 = vmatpush1.msra.mxu0 %v459
    %505 = vmatprep.subr.mxu0 %v456
    %506 = vmatpush1.msra.mxu0 %v455
    %507 = vmatprep.subr.mxu0 %v452
    %508 = vmatpush1.msra.mxu0 %v451
    %509 = vmatprep.subr.mxu0 %v448
    %510 = vmatpush1.msra.mxu0 %v447
    %511 = vmatprep.subr.mxu0 %v444
    %512 = vmatpush1.msra.mxu0 %v443
    %513 = vmatprep.subr.mxu0 %v440
    %514 = vmatpush1.msra.mxu0 %v439
    %515 = vmatprep.subr.mxu0 %v436
    %516 = vmatpush1.msra.mxu0 %v435
    %517 = vmatprep.subr.mxu0 %v432
    %518 = vmatpush1.msra.mxu0 %v431
    %519 = vmatprep.subr.mxu0 %v428
    %520 = vmatpush1.msra.mxu0 %v427
    %521 = vmatprep.subr.mxu0 %v424
    %522 = vmatpush1.msra.mxu0 %v423
    %523 = vmatprep.subr.mxu0 %v420
    %524 = vmatpush1.msra.mxu0 %v419
    %525 = vmatprep.subr.mxu0 %v416
    %526 = vmatpush1.msra.mxu0 %v415
    %527 = vmatprep.subr.mxu0 %v412
    %528 = vmatpush1.msra.mxu0 %v411
    %529 = vmatprep.subr.mxu0 0.0
    %530 = vmatpush2.msra.mxu0 0.0
    %531 = vmatprep.subr.mxu0 0.0
    %532 = vmatpush2.msra.mxu0 0.0
    %533 = vmatprep.subr.mxu0 0.0
    %534 = vmatpush2.msra.mxu0 0.0
    %535 = vmatprep.subr.mxu0 0.0
    %536 = vmatpush2.msra.mxu0 0.0
    %537 = vmatprep.subr.mxu0 0.0
    %538 = vmatpush2.msra.mxu0 0.0
    %539 = vmatprep.subr.mxu0 0.0
    %540 = vmatpush2.msra.mxu0 0.0
    %541 = vmatprep.subr.mxu0 0.0
    %542 = vmatpush2.msra.mxu0 0.0
    %543 = vmatprep.subr.mxu0 0.0
    %544 = vmatpush2.msra.mxu0 0.0
    %545 = vmatprep.subr.mxu0 0.0
    %546 = vmatpush2.msra.mxu0 0.0
    %547 = vmatprep.subr.mxu0 0.0
    %548 = vmatpush2.msra.mxu0 0.0
    %549 = vmatprep.subr.mxu0 0.0
    %550 = vmatpush2.msra.mxu0 0.0
    %551 = vmatprep.subr.mxu0 0.0
    %552 = vmatpush2.msra.mxu0 0.0
    %553 = vmatprep.subr.mxu0 0.0
    %554 = vmatpush2.msra.mxu0 0.0
    %555 = vmatprep.subr.mxu0 0.0
    %556 = vmatpush2.msra.mxu0 0.0
    %557 = vmatprep.subr.mxu0 0.0
    %558 = vmatpush2.msra.mxu0 0.0
    %559 = vmatprep.subr.mxu0 0.0
    %560 = vmatpush2.msra.mxu0 0.0
    %561 = vmatprep.mubr.f32.mxu0 0.0
    %562 = vmatmul.mubr.f32.gmra.mxu0 %v410
    %v563 = vpop.f32.mrf.mxu0
    %v564 = vadd.f32 %v480, %v563
    %v565 = vpop.f32.mrf.mxu0
    %v566 = vadd.f32 %v484, %v565
    %567 = vdwg.mxu0
    %568 = vmatprep.subr.mxu0 %v474
    %569 = vmatpush1.msra.mxu0 %v473
    %570 = vmatprep.subr.mxu0 %v470
    %571 = vmatpush1.msra.mxu0 %v469
    %572 = vmatprep.subr.mxu0 %v466
    %573 = vmatpush1.msra.mxu0 %v465
    %574 = vmatprep.subr.mxu0 %v462
    %575 = vmatpush1.msra.mxu0 %v461
    %576 = vmatprep.subr.mxu0 %v458
    %577 = vmatpush1.msra.mxu0 %v457
    %578 = vmatprep.subr.mxu0 %v454
    %579 = vmatpush1.msra.mxu0 %v453
    %580 = vmatprep.subr.mxu0 %v450
    %581 = vmatpush1.msra.mxu0 %v449
    %582 = vmatprep.subr.mxu0 %v446
    %583 = vmatpush1.msra.mxu0 %v445
    %584 = vmatprep.subr.mxu0 %v442
    %585 = vmatpush1.msra.mxu0 %v441
    %586 = vmatprep.subr.mxu0 %v438
    %587 = vmatpush1.msra.mxu0 %v437
    %588 = vmatprep.subr.mxu0 %v434
    %589 = vmatpush1.msra.mxu0 %v433
    %590 = vmatprep.subr.mxu0 %v430
    %591 = vmatpush1.msra.mxu0 %v429
    %592 = vmatprep.subr.mxu0 %v426
    %593 = vmatpush1.msra.mxu0 %v425
    %594 = vmatprep.subr.mxu0 %v422
    %595 = vmatpush1.msra.mxu0 %v421
    %596 = vmatprep.subr.mxu0 %v418
    %597 = vmatpush1.msra.mxu0 %v417
    %598 = vmatprep.subr.mxu0 %v414
    %599 = vmatpush1.msra.mxu0 %v413
    %600 = vmatprep.subr.mxu0 0.0
    %601 = vmatpush2.msra.mxu0 0.0
    %602 = vmatprep.subr.mxu0 0.0
    %603 = vmatpush2.msra.mxu0 0.0
    %604 = vmatprep.subr.mxu0 0.0
    %605 = vmatpush2.msra.mxu0 0.0
    %606 = vmatprep.subr.mxu0 0.0
    %607 = vmatpush2.msra.mxu0 0.0
    %608 = vmatprep.subr.mxu0 0.0
    %609 = vmatpush2.msra.mxu0 0.0
    %610 = vmatprep.subr.mxu0 0.0
    %611 = vmatpush2.msra.mxu0 0.0
    %612 = vmatprep.subr.mxu0 0.0
    %613 = vmatpush2.msra.mxu0 0.0
    %614 = vmatprep.subr.mxu0 0.0
    %615 = vmatpush2.msra.mxu0 0.0
    %616 = vmatprep.subr.mxu0 0.0
    %617 = vmatpush2.msra.mxu0 0.0
    %618 = vmatprep.subr.mxu0 0.0
    %619 = vmatpush2.msra.mxu0 0.0
    %620 = vmatprep.subr.mxu0 0.0
    %621 = vmatpush2.msra.mxu0 0.0
    %622 = vmatprep.subr.mxu0 0.0
    %623 = vmatpush2.msra.mxu0 0.0
    %624 = vmatprep.subr.mxu0 0.0
    %625 = vmatpush2.msra.mxu0 0.0
    %626 = vmatprep.subr.mxu0 0.0
    %627 = vmatpush2.msra.mxu0 0.0
    %628 = vmatprep.subr.mxu0 0.0
    %629 = vmatpush2.msra.mxu0 0.0
    %630 = vmatprep.subr.mxu0 0.0
    %631 = vmatpush2.msra.mxu0 0.0
    %632 = vmatprep.mubr.f32.mxu0 0.0
    %633 = vmatmul.mubr.f32.gmra.mxu0 %v410
    %v634 = vpop.f32.mrf.mxu0
    %v635 = vadd.f32 %v488, %v634
    %v636 = vpop.f32.mrf.mxu0
    %v637 = vadd.f32 %v492, %v636
    %638 = vdwg.mxu0
    %v639 = vld [vmem:[%s10] sm:$0xff]
    %v640 = vld [vmem:[%s10 + $0x8] sm:$0xff]
    %v641 = vld [vmem:[%s10 + $0x10] sm:$0xff]
    %v642 = vld [vmem:[%s10 + $0x18] sm:$0xff]
    %v643 = vld [vmem:[%s10 + $0x20] sm:$0xff]
    %v644 = vld [vmem:[%s10 + $0x28] sm:$0xff]
    %v645 = vld [vmem:[%s10 + $0x30] sm:$0xff]
    %v646 = vld [vmem:[%s10 + $0x38] sm:$0xff]
    %v647 = vld [vmem:[%s10 + $0x40] sm:$0xff]
    %v648 = vld [vmem:[%s10 + $0x48] sm:$0xff]
    %v649 = vld [vmem:[%s10 + $0x50] sm:$0xff]
    %v650 = vld [vmem:[%s10 + $0x58] sm:$0xff]
    %v651 = vld [vmem:[%s10 + $0x60] sm:$0xff]
    %v652 = vld [vmem:[%s10 + $0x68] sm:$0xff]
    %v653 = vld [vmem:[%s10 + $0x70] sm:$0xff]
    %v654 = vld [vmem:[%s10 + $0x78] sm:$0xff]
    %v655 = vld [vmem:[%s10 + $0x80] sm:$0xff]
    %v656 = vld [vmem:[%s10 + $0x88] sm:$0xff]
    %v657 = vld [vmem:[%s10 + $0x90] sm:$0xff]
    %v658 = vld [vmem:[%s10 + $0x98] sm:$0xff]
    %v659 = vld [vmem:[%s10 + $0xa0] sm:$0xff]
    %v660 = vld [vmem:[%s10 + $0xa8] sm:$0xff]
    %v661 = vld [vmem:[%s10 + $0xb0] sm:$0xff]
    %v662 = vld [vmem:[%s10 + $0xb8] sm:$0xff]
    %v663 = vld [vmem:[%s10 + $0xc0] sm:$0xff]
    %v664 = vld [vmem:[%s10 + $0xc8] sm:$0xff]
    %v665 = vld [vmem:[%s10 + $0xd0] sm:$0xff]
    %v666 = vld [vmem:[%s10 + $0xd8] sm:$0xff]
    %v667 = vld [vmem:[%s10 + $0xe0] sm:$0xff]
    %v668 = vld [vmem:[%s10 + $0xe8] sm:$0xff]
    %v669 = vld [vmem:[%s10 + $0xf0] sm:$0xff]
    %v670 = vld [vmem:[%s10 + $0xf8] sm:$0xff]
    %v671 = vld [vmem:[%s10 + $0x100] sm:$0xff]
    %v672 = vld [vmem:[%s10 + $0x108] sm:$0xff]
    %v673 = vld [vmem:[%s10 + $0x110] sm:$0xff]
    %v674 = vld [vmem:[%s10 + $0x118] sm:$0xff]
    %v675 = vld [vmem:[%s10 + $0x120] sm:$0xff]
    %v676 = vld [vmem:[%s10 + $0x128] sm:$0xff]
    %v677 = vld [vmem:[%s10 + $0x130] sm:$0xff]
    %v678 = vld [vmem:[%s10 + $0x138] sm:$0xff]
    %v679 = vld [vmem:[%s10 + $0x140] sm:$0xff]
    %v680 = vld [vmem:[%s10 + $0x148] sm:$0xff]
    %v681 = vld [vmem:[%s10 + $0x150] sm:$0xff]
    %v682 = vld [vmem:[%s10 + $0x158] sm:$0xff]
    %v683 = vld [vmem:[%s10 + $0x160] sm:$0xff]
    %v684 = vld [vmem:[%s10 + $0x168] sm:$0xff]
    %v685 = vld [vmem:[%s10 + $0x170] sm:$0xff]
    %v686 = vld [vmem:[%s10 + $0x178] sm:$0xff]
    %v687 = vld [vmem:[%s10 + $0x180] sm:$0xff]
    %v688 = vld [vmem:[%s10 + $0x188] sm:$0xff]
    %v689 = vld [vmem:[%s10 + $0x190] sm:$0xff]
    %v690 = vld [vmem:[%s10 + $0x198] sm:$0xff]
    %v691 = vld [vmem:[%s10 + $0x1a0] sm:$0xff]
    %v692 = vld [vmem:[%s10 + $0x1a8] sm:$0xff]
    %v693 = vld [vmem:[%s10 + $0x1b0] sm:$0xff]
    %v694 = vld [vmem:[%s10 + $0x1b8] sm:$0xff]
    %v695 = vld [vmem:[%s10 + $0x1c0] sm:$0xff]
    %v696 = vld [vmem:[%s10 + $0x1c8] sm:$0xff]
    %v697 = vld [vmem:[%s10 + $0x1d0] sm:$0xff]
    %v698 = vld [vmem:[%s10 + $0x1d8] sm:$0xff]
    %v699 = vld [vmem:[%s10 + $0x1e0] sm:$0xff]
    %v700 = vld [vmem:[%s10 + $0x1e8] sm:$0xff]
    %v701 = vld [vmem:[%s10 + $0x1f0] sm:$0xff]
    %v702 = vld [vmem:[%s10 + $0x1f8] sm:$0xff]
    %v703 = vld [vmem:[%s7] sm:$0x1]
    %v704 = vld [vmem:[%s8] sm:$0x1]
    %705 = vmatprep.subr.mxu0 %v700
    %706 = vmatpush1.msra.mxu0 %v699
    %707 = vmatprep.subr.mxu0 %v696
    %708 = vmatpush1.msra.mxu0 %v695
    %709 = vmatprep.subr.mxu0 %v692
    %710 = vmatpush1.msra.mxu0 %v691
    %711 = vmatprep.subr.mxu0 %v688
    %712 = vmatpush1.msra.mxu0 %v687
    %713 = vmatprep.subr.mxu0 %v684
    %714 = vmatpush1.msra.mxu0 %v683
    %715 = vmatprep.subr.mxu0 %v680
    %716 = vmatpush1.msra.mxu0 %v679
    %717 = vmatprep.subr.mxu0 %v676
    %718 = vmatpush1.msra.mxu0 %v675
    %719 = vmatprep.subr.mxu0 %v672
    %720 = vmatpush1.msra.mxu0 %v671
    %721 = vmatprep.subr.mxu0 %v668
    %722 = vmatpush1.msra.mxu0 %v667
    %723 = vmatprep.subr.mxu0 %v664
    %724 = vmatpush1.msra.mxu0 %v663
    %725 = vmatprep.subr.mxu0 %v660
    %726 = vmatpush1.msra.mxu0 %v659
    %727 = vmatprep.subr.mxu0 %v656
    %728 = vmatpush1.msra.mxu0 %v655
    %729 = vmatprep.subr.mxu0 %v652
    %730 = vmatpush1.msra.mxu0 %v651
    %731 = vmatprep.subr.mxu0 %v648
    %732 = vmatpush1.msra.mxu0 %v647
    %733 = vmatprep.subr.mxu0 %v644
    %734 = vmatpush1.msra.mxu0 %v643
    %735 = vmatprep.subr.mxu0 %v640
    %736 = vmatpush1.msra.mxu0 %v639
    %737 = vmatprep.subr.mxu0 0.0
    %738 = vmatpush2.msra.mxu0 0.0
    %739 = vmatprep.subr.mxu0 0.0
    %740 = vmatpush2.msra.mxu0 0.0
    %741 = vmatprep.subr.mxu0 0.0
    %742 = vmatpush2.msra.mxu0 0.0
    %743 = vmatprep.subr.mxu0 0.0
    %744 = vmatpush2.msra.mxu0 0.0
    %745 = vmatprep.subr.mxu0 0.0
    %746 = vmatpush2.msra.mxu0 0.0
    %747 = vmatprep.subr.mxu0 0.0
    %748 = vmatpush2.msra.mxu0 0.0
    %749 = vmatprep.subr.mxu0 0.0
    %750 = vmatpush2.msra.mxu0 0.0
    %751 = vmatprep.subr.mxu0 0.0
    %752 = vmatpush2.msra.mxu0 0.0
    %753 = vmatprep.subr.mxu0 0.0
    %754 = vmatpush2.msra.mxu0 0.0
    %755 = vmatprep.subr.mxu0 0.0
    %756 = vmatpush2.msra.mxu0 0.0
    %757 = vmatprep.subr.mxu0 0.0
    %758 = vmatpush2.msra.mxu0 0.0
    %759 = vmatprep.subr.mxu0 0.0
    %760 = vmatpush2.msra.mxu0 0.0
    %761 = vmatprep.subr.mxu0 0.0
    %762 = vmatpush2.msra.mxu0 0.0
    %763 = vmatprep.subr.mxu0 0.0
    %764 = vmatpush2.msra.mxu0 0.0
    %765 = vmatprep.subr.mxu0 0.0
    %766 = vmatpush2.msra.mxu0 0.0
    %767 = vmatprep.subr.mxu0 0.0
    %768 = vmatpush2.msra.mxu0 0.0
    %769 = vmatprep.mubr.f32.mxu0 0.0
    %770 = vmatmul.mubr.f32.gmra.mxu0 %v703
    %v771 = vpop.f32.mrf.mxu0
    %v772 = vadd.f32 0.0, %v771
    %v773 = vpop.f32.mrf.mxu0
    %v774 = vadd.f32 0.0, %v773
    %775 = vdwg.mxu0
    %776 = vmatprep.subr.mxu0 %v702
    %777 = vmatpush1.msra.mxu0 %v701
    %778 = vmatprep.subr.mxu0 %v698
    %779 = vmatpush1.msra.mxu0 %v697
    %780 = vmatprep.subr.mxu0 %v694
    %781 = vmatpush1.msra.mxu0 %v693
    %782 = vmatprep.subr.mxu0 %v690
    %783 = vmatpush1.msra.mxu0 %v689
    %784 = vmatprep.subr.mxu0 %v686
    %785 = vmatpush1.msra.mxu0 %v685
    %786 = vmatprep.subr.mxu0 %v682
    %787 = vmatpush1.msra.mxu0 %v681
    %788 = vmatprep.subr.mxu0 %v678
    %789 = vmatpush1.msra.mxu0 %v677
    %790 = vmatprep.subr.mxu0 %v674
    %791 = vmatpush1.msra.mxu0 %v673
    %792 = vmatprep.subr.mxu0 %v670
    %793 = vmatpush1.msra.mxu0 %v669
    %794 = vmatprep.subr.mxu0 %v666
    %795 = vmatpush1.msra.mxu0 %v665
    %796 = vmatprep.subr.mxu0 %v662
    %797 = vmatpush1.msra.mxu0 %v661
    %798 = vmatprep.subr.mxu0 %v658
    %799 = vmatpush1.msra.mxu0 %v657
    %800 = vmatprep.subr.mxu0 %v654
    %801 = vmatpush1.msra.mxu0 %v653
    %802 = vmatprep.subr.mxu0 %v650
    %803 = vmatpush1.msra.mxu0 %v649
    %804 = vmatprep.subr.mxu0 %v646
    %805 = vmatpush1.msra.mxu0 %v645
    %806 = vmatprep.subr.mxu0 %v642
    %807 = vmatpush1.msra.mxu0 %v641
    %808 = vmatprep.subr.mxu0 0.0
    %809 = vmatpush2.msra.mxu0 0.0
    %810 = vmatprep.subr.mxu0 0.0
    %811 = vmatpush2.msra.mxu0 0.0
    %812 = vmatprep.subr.mxu0 0.0
    %813 = vmatpush2.msra.mxu0 0.0
    %814 = vmatprep.subr.mxu0 0.0
    %815 = vmatpush2.msra.mxu0 0.0
    %816 = vmatprep.subr.mxu0 0.0
    %817 = vmatpush2.msra.mxu0 0.0
    %818 = vmatprep.subr.mxu0 0.0
    %819 = vmatpush2.msra.mxu0 0.0
    %820 = vmatprep.subr.mxu0 0.0
    %821 = vmatpush2.msra.mxu0 0.0
    %822 = vmatprep.subr.mxu0 0.0
    %823 = vmatpush2.msra.mxu0 0.0
    %824 = vmatprep.subr.mxu0 0.0
    %825 = vmatpush2.msra.mxu0 0.0
    %826 = vmatprep.subr.mxu0 0.0
    %827 = vmatpush2.msra.mxu0 0.0
    %828 = vmatprep.subr.mxu0 0.0
    %829 = vmatpush2.msra.mxu0 0.0
    %830 = vmatprep.subr.mxu0 0.0
    %831 = vmatpush2.msra.mxu0 0.0
    %832 = vmatprep.subr.mxu0 0.0
    %833 = vmatpush2.msra.mxu0 0.0
    %834 = vmatprep.subr.mxu0 0.0
    %835 = vmatpush2.msra.mxu0 0.0
    %836 = vmatprep.subr.mxu0 0.0
    %837 = vmatpush2.msra.mxu0 0.0
    %838 = vmatprep.subr.mxu0 0.0
    %839 = vmatpush2.msra.mxu0 0.0
    %840 = vmatprep.mubr.f32.mxu0 0.0
    %841 = vmatmul.mubr.f32.gmra.mxu0 %v703
    %v842 = vpop.f32.mrf.mxu0
    %v843 = vadd.f32 0.0, %v842
    %v844 = vpop.f32.mrf.mxu0
    %v845 = vadd.f32 0.0, %v844
    %846 = vdwg.mxu0
    %v847 = vadd.f32 %v564, %v772
    %v848 = vadd.f32 %v566, %v774
    %v849 = vadd.f32 %v635, %v843
    %v850 = vadd.f32 %v637, %v845
    %v851 = vxor.u32 %v847, 2147483648
    %v852 = vmul.f32 %v851, 1.442695
    %v853 = vpow.pop %v852
    %v854 = vadd.f32 %v853, 1.0
    %v855 = vrcp.pop %v854
    %v856 = vmul.f32 1.0, %v855
    %v857 = vxor.u32 %v848, 2147483648
    %v858 = vmul.f32 %v857, 1.442695
    %v859 = vpow.pop %v858
    %v860 = vadd.f32 %v859, 1.0
    %v861 = vrcp.pop %v860
    %v862 = vmul.f32 1.0, %v861
    %v863 = vtanh.pop %v849
    %v864 = vxor.u32 %v850, 2147483648
    %v865 = vmul.f32 %v864, 1.442695
    %v866 = vpow.pop %v865
    %v867 = vadd.f32 %v866, 1.0
    %v868 = vrcp.pop %v867
    %v869 = vmul.f32 1.0, %v868
    %v870 = vmul.f32 %v862, %v704
    %v871 = vmul.f32 %v856, %v863
    %v872 = vadd.f32 %v870, %v871
    %v873 = vtanh.pop %v872
    %v874 = vmul.f32 %v869, %v873
    %875 = vst [vmem:[#allocation2] sm:$0x1] %v874
    %876 = vmatprep.subr.mxu0 %v700
    %877 = vmatpush1.msra.mxu0 %v699
    %878 = vmatprep.subr.mxu0 %v696
    %879 = vmatpush1.msra.mxu0 %v695
    %880 = vmatprep.subr.mxu0 %v692
    %881 = vmatpush1.msra.mxu0 %v691
    %882 = vmatprep.subr.mxu0 %v688
    %883 = vmatpush1.msra.mxu0 %v687
    %884 = vmatprep.subr.mxu0 %v684
    %885 = vmatpush1.msra.mxu0 %v683
    %886 = vmatprep.subr.mxu0 %v680
    %887 = vmatpush1.msra.mxu0 %v679
    %888 = vmatprep.subr.mxu0 %v676
    %889 = vmatpush1.msra.mxu0 %v675
    %890 = vmatprep.subr.mxu0 %v672
    %891 = vmatpush1.msra.mxu0 %v671
    %892 = vmatprep.subr.mxu0 %v668
    %893 = vmatpush1.msra.mxu0 %v667
    %894 = vmatprep.subr.mxu0 %v664
    %895 = vmatpush1.msra.mxu0 %v663
    %896 = vmatprep.subr.mxu0 %v660
    %897 = vmatpush1.msra.mxu0 %v659
    %898 = vmatprep.subr.mxu0 %v656
    %899 = vmatpush1.msra.mxu0 %v655
    %900 = vmatprep.subr.mxu0 %v652
    %901 = vmatpush1.msra.mxu0 %v651
    %902 = vmatprep.subr.mxu0 %v648
    %903 = vmatpush1.msra.mxu0 %v647
    %904 = vmatprep.subr.mxu0 %v644
    %905 = vmatpush1.msra.mxu0 %v643
    %906 = vmatprep.subr.mxu0 %v640
    %907 = vmatpush1.msra.mxu0 %v639
    %908 = vmatprep.subr.mxu0 0.0
    %909 = vmatpush2.msra.mxu0 0.0
    %910 = vmatprep.subr.mxu0 0.0
    %911 = vmatpush2.msra.mxu0 0.0
    %912 = vmatprep.subr.mxu0 0.0
    %913 = vmatpush2.msra.mxu0 0.0
    %914 = vmatprep.subr.mxu0 0.0
    %915 = vmatpush2.msra.mxu0 0.0
    %916 = vmatprep.subr.mxu0 0.0
    %917 = vmatpush2.msra.mxu0 0.0
    %918 = vmatprep.subr.mxu0 0.0
    %919 = vmatpush2.msra.mxu0 0.0
    %920 = vmatprep.subr.mxu0 0.0
    %921 = vmatpush2.msra.mxu0 0.0
    %922 = vmatprep.subr.mxu0 0.0
    %923 = vmatpush2.msra.mxu0 0.0
    %924 = vmatprep.subr.mxu0 0.0
    %925 = vmatpush2.msra.mxu0 0.0
    %926 = vmatprep.subr.mxu0 0.0
    %927 = vmatpush2.msra.mxu0 0.0
    %928 = vmatprep.subr.mxu0 0.0
    %929 = vmatpush2.msra.mxu0 0.0
    %930 = vmatprep.subr.mxu0 0.0
    %931 = vmatpush2.msra.mxu0 0.0
    %932 = vmatprep.subr.mxu0 0.0
    %933 = vmatpush2.msra.mxu0 0.0
    %934 = vmatprep.subr.mxu0 0.0
    %935 = vmatpush2.msra.mxu0 0.0
    %936 = vmatprep.subr.mxu0 0.0
    %937 = vmatpush2.msra.mxu0 0.0
    %938 = vmatprep.subr.mxu0 0.0
    %939 = vmatpush2.msra.mxu0 0.0
    %940 = vmatprep.mubr.f32.mxu0 0.0
    %941 = vmatmul.mubr.f32.gmra.mxu0 %v874
    %v942 = vpop.f32.mrf.mxu0
    %v943 = vadd.f32 0.0, %v942
    %v944 = vpop.f32.mrf.mxu0
    %v945 = vadd.f32 0.0, %v944
    %946 = vdwg.mxu0
    %947 = vmatprep.subr.mxu0 %v702
    %948 = vmatpush1.msra.mxu0 %v701
    %949 = vmatprep.subr.mxu0 %v698
    %950 = vmatpush1.msra.mxu0 %v697
    %951 = vmatprep.subr.mxu0 %v694
    %952 = vmatpush1.msra.mxu0 %v693
    %953 = vmatprep.subr.mxu0 %v690
    %954 = vmatpush1.msra.mxu0 %v689
    %955 = vmatprep.subr.mxu0 %v686
    %956 = vmatpush1.msra.mxu0 %v685
    %957 = vmatprep.subr.mxu0 %v682
    %958 = vmatpush1.msra.mxu0 %v681
    %959 = vmatprep.subr.mxu0 %v678
    %960 = vmatpush1.msra.mxu0 %v677
    %961 = vmatprep.subr.mxu0 %v674
    %962 = vmatpush1.msra.mxu0 %v673
    %963 = vmatprep.subr.mxu0 %v670
    %964 = vmatpush1.msra.mxu0 %v669
    %965 = vmatprep.subr.mxu0 %v666
    %966 = vmatpush1.msra.mxu0 %v665
    %967 = vmatprep.subr.mxu0 %v662
    %968 = vmatpush1.msra.mxu0 %v661
    %969 = vmatprep.subr.mxu0 %v658
    %970 = vmatpush1.msra.mxu0 %v657
    %971 = vmatprep.subr.mxu0 %v654
    %972 = vmatpush1.msra.mxu0 %v653
    %973 = vmatprep.subr.mxu0 %v650
    %974 = vmatpush1.msra.mxu0 %v649
    %975 = vmatprep.subr.mxu0 %v646
    %976 = vmatpush1.msra.mxu0 %v645
    %977 = vmatprep.subr.mxu0 %v642
    %978 = vmatpush1.msra.mxu0 %v641
    %979 = vmatprep.subr.mxu0 0.0
    %980 = vmatpush2.msra.mxu0 0.0
    %981 = vmatprep.subr.mxu0 0.0
    %982 = vmatpush2.msra.mxu0 0.0
    %983 = vmatprep.subr.mxu0 0.0
    %984 = vmatpush2.msra.mxu0 0.0
    %985 = vmatprep.subr.mxu0 0.0
    %986 = vmatpush2.msra.mxu0 0.0
    %987 = vmatprep.subr.mxu0 0.0
    %988 = vmatpush2.msra.mxu0 0.0
    %989 = vmatprep.subr.mxu0 0.0
    %990 = vmatpush2.msra.mxu0 0.0
    %991 = vmatprep.subr.mxu0 0.0
    %992 = vmatpush2.msra.mxu0 0.0
    %993 = vmatprep.subr.mxu0 0.0
    %994 = vmatpush2.msra.mxu0 0.0
    %995 = vmatprep.subr.mxu0 0.0
    %996 = vmatpush2.msra.mxu0 0.0
    %997 = vmatprep.subr.mxu0 0.0
    %998 = vmatpush2.msra.mxu0 0.0
    %999 = vmatprep.subr.mxu0 0.0
    %1000 = vmatpush2.msra.mxu0 0.0
    %1001 = vmatprep.subr.mxu0 0.0
    %1002 = vmatpush2.msra.mxu0 0.0
    %1003 = vmatprep.subr.mxu0 0.0
    %1004 = vmatpush2.msra.mxu0 0.0
    %1005 = vmatprep.subr.mxu0 0.0
    %1006 = vmatpush2.msra.mxu0 0.0
    %1007 = vmatprep.subr.mxu0 0.0
    %1008 = vmatpush2.msra.mxu0 0.0
    %1009 = vmatprep.subr.mxu0 0.0
    %1010 = vmatpush2.msra.mxu0 0.0
    %1011 = vmatprep.mubr.f32.mxu0 0.0
    %1012 = vmatmul.mubr.f32.gmra.mxu0 %v874
    %v1013 = vpop.f32.mrf.mxu0
    %v1014 = vadd.f32 0.0, %v1013
    %v1015 = vpop.f32.mrf.mxu0
    %v1016 = vadd.f32 0.0, %v1015
    %1017 = vdwg.mxu0
    %v1022 = vrot.slane %v943, 7
    %v1023 = vrot.slane %v945, 7
    %v1024 = vrot.slane %v1014, 7
    %v1025 = vrot.slane %v1016, 7
    %v1030 = vadd.f32 %v564, %v1022
    %v1031 = vadd.f32 %v566, %v1023
    %v1032 = vadd.f32 %v635, %v1024
    %v1033 = vadd.f32 %v637, %v1025
    %v1034 = vxor.u32 %v1030, 2147483648
    %v1035 = vmul.f32 %v1034, 1.442695
    %v1036 = vpow.pop %v1035
    %v1037 = vadd.f32 %v1036, 1.0
    %v1038 = vrcp.pop %v1037
    %v1039 = vmul.f32 1.0, %v1038
    %v1040 = vxor.u32 %v1031, 2147483648
    %v1041 = vmul.f32 %v1040, 1.442695
    %v1042 = vpow.pop %v1041
    %v1043 = vadd.f32 %v1042, 1.0
    %v1044 = vrcp.pop %v1043
    %v1045 = vmul.f32 1.0, %v1044
    %v1046 = vtanh.pop %v1032
    %v1047 = vxor.u32 %v1033, 2147483648
    %v1048 = vmul.f32 %v1047, 1.442695
    %v1049 = vpow.pop %v1048
    %v1050 = vadd.f32 %v1049, 1.0
    %v1051 = vrcp.pop %v1050
    %v1052 = vmul.f32 1.0, %v1051
    %v1054 = vrot.slane %v872, 7
    %v1056 = vmul.f32 %v1045, %v1054
    %v1057 = vmul.f32 %v1039, %v1046
    %v1058 = vadd.f32 %v1056, %v1057
    %v1059 = vtanh.pop %v1058
    %v1060 = vmul.f32 %v1052, %v1059
    %1061 = vst [vmem:[#allocation2] sm:$0x2] %v1060
    %v1063 = vrot.slane %v1060, 1
    %1065 = vmatprep.subr.mxu0 %v700
    %1066 = vmatpush1.msra.mxu0 %v699
    %1067 = vmatprep.subr.mxu0 %v696
    %1068 = vmatpush1.msra.mxu0 %v695
    %1069 = vmatprep.subr.mxu0 %v692
    %1070 = vmatpush1.msra.mxu0 %v691
    %1071 = vmatprep.subr.mxu0 %v688
    %1072 = vmatpush1.msra.mxu0 %v687
    %1073 = vmatprep.subr.mxu0 %v684
    %1074 = vmatpush1.msra.mxu0 %v683
    %1075 = vmatprep.subr.mxu0 %v680
    %1076 = vmatpush1.msra.mxu0 %v679
    %1077 = vmatprep.subr.mxu0 %v676
    %1078 = vmatpush1.msra.mxu0 %v675
    %1079 = vmatprep.subr.mxu0 %v672
    %1080 = vmatpush1.msra.mxu0 %v671
    %1081 = vmatprep.subr.mxu0 %v668
    %1082 = vmatpush1.msra.mxu0 %v667
    %1083 = vmatprep.subr.mxu0 %v664
    %1084 = vmatpush1.msra.mxu0 %v663
    %1085 = vmatprep.subr.mxu0 %v660
    %1086 = vmatpush1.msra.mxu0 %v659
    %1087 = vmatprep.subr.mxu0 %v656
    %1088 = vmatpush1.msra.mxu0 %v655
    %1089 = vmatprep.subr.mxu0 %v652
    %1090 = vmatpush1.msra.mxu0 %v651
    %1091 = vmatprep.subr.mxu0 %v648
    %1092 = vmatpush1.msra.mxu0 %v647
    %1093 = vmatprep.subr.mxu0 %v644
    %1094 = vmatpush1.msra.mxu0 %v643
    %1095 = vmatprep.subr.mxu0 %v640
    %1096 = vmatpush1.msra.mxu0 %v639
    %1097 = vmatprep.subr.mxu0 0.0
    %1098 = vmatpush2.msra.mxu0 0.0
    %1099 = vmatprep.subr.mxu0 0.0
    %1100 = vmatpush2.msra.mxu0 0.0
    %1101 = vmatprep.subr.mxu0 0.0
    %1102 = vmatpush2.msra.mxu0 0.0
    %1103 = vmatprep.subr.mxu0 0.0
    %1104 = vmatpush2.msra.mxu0 0.0
    %1105 = vmatprep.subr.mxu0 0.0
    %1106 = vmatpush2.msra.mxu0 0.0
    %1107 = vmatprep.subr.mxu0 0.0
    %1108 = vmatpush2.msra.mxu0 0.0
    %1109 = vmatprep.subr.mxu0 0.0
    %1110 = vmatpush2.msra.mxu0 0.0
    %1111 = vmatprep.subr.mxu0 0.0
    %1112 = vmatpush2.msra.mxu0 0.0
    %1113 = vmatprep.subr.mxu0 0.0
    %1114 = vmatpush2.msra.mxu0 0.0
    %1115 = vmatprep.subr.mxu0 0.0
    %1116 = vmatpush2.msra.mxu0 0.0
    %1117 = vmatprep.subr.mxu0 0.0
    %1118 = vmatpush2.msra.mxu0 0.0
    %1119 = vmatprep.subr.mxu0 0.0
    %1120 = vmatpush2.msra.mxu0 0.0
    %1121 = vmatprep.subr.mxu0 0.0
    %1122 = vmatpush2.msra.mxu0 0.0
    %1123 = vmatprep.subr.mxu0 0.0
    %1124 = vmatpush2.msra.mxu0 0.0
    %1125 = vmatprep.subr.mxu0 0.0
    %1126 = vmatpush2.msra.mxu0 0.0
    %1127 = vmatprep.subr.mxu0 0.0
    %1128 = vmatpush2.msra.mxu0 0.0
    %1129 = vmatprep.mubr.f32.mxu0 0.0
    %1130 = vmatmul.mubr.f32.gmra.mxu0 %v1063
    %v1131 = vpop.f32.mrf.mxu0
    %v1132 = vadd.f32 0.0, %v1131
    %v1133 = vpop.f32.mrf.mxu0
    %v1134 = vadd.f32 0.0, %v1133
    %1135 = vdwg.mxu0
    %1136 = vmatprep.subr.mxu0 %v702
    %1137 = vmatpush1.msra.mxu0 %v701
    %1138 = vmatprep.subr.mxu0 %v698
    %1139 = vmatpush1.msra.mxu0 %v697
    %1140 = vmatprep.subr.mxu0 %v694
    %1141 = vmatpush1.msra.mxu0 %v693
    %1142 = vmatprep.subr.mxu0 %v690
    %1143 = vmatpush1.msra.mxu0 %v689
    %1144 = vmatprep.subr.mxu0 %v686
    %1145 = vmatpush1.msra.mxu0 %v685
    %1146 = vmatprep.subr.mxu0 %v682
    %1147 = vmatpush1.msra.mxu0 %v681
    %1148 = vmatprep.subr.mxu0 %v678
    %1149 = vmatpush1.msra.mxu0 %v677
    %1150 = vmatprep.subr.mxu0 %v674
    %1151 = vmatpush1.msra.mxu0 %v673
    %1152 = vmatprep.subr.mxu0 %v670
    %1153 = vmatpush1.msra.mxu0 %v669
    %1154 = vmatprep.subr.mxu0 %v666
    %1155 = vmatpush1.msra.mxu0 %v665
    %1156 = vmatprep.subr.mxu0 %v662
    %1157 = vmatpush1.msra.mxu0 %v661
    %1158 = vmatprep.subr.mxu0 %v658
    %1159 = vmatpush1.msra.mxu0 %v657
    %1160 = vmatprep.subr.mxu0 %v654
    %1161 = vmatpush1.msra.mxu0 %v653
    %1162 = vmatprep.subr.mxu0 %v650
    %1163 = vmatpush1.msra.mxu0 %v649
    %1164 = vmatprep.subr.mxu0 %v646
    %1165 = vmatpush1.msra.mxu0 %v645
    %1166 = vmatprep.subr.mxu0 %v642
    %1167 = vmatpush1.msra.mxu0 %v641
    %1168 = vmatprep.subr.mxu0 0.0
    %1169 = vmatpush2.msra.mxu0 0.0
    %1170 = vmatprep.subr.mxu0 0.0
    %1171 = vmatpush2.msra.mxu0 0.0
    %1172 = vmatprep.subr.mxu0 0.0
    %1173 = vmatpush2.msra.mxu0 0.0
    %1174 = vmatprep.subr.mxu0 0.0
    %1175 = vmatpush2.msra.mxu0 0.0
    %1176 = vmatprep.subr.mxu0 0.0
    %1177 = vmatpush2.msra.mxu0 0.0
    %1178 = vmatprep.subr.mxu0 0.0
    %1179 = vmatpush2.msra.mxu0 0.0
    %1180 = vmatprep.subr.mxu0 0.0
    %1181 = vmatpush2.msra.mxu0 0.0
    %1182 = vmatprep.subr.mxu0 0.0
    %1183 = vmatpush2.msra.mxu0 0.0
    %1184 = vmatprep.subr.mxu0 0.0
    %1185 = vmatpush2.msra.mxu0 0.0
    %1186 = vmatprep.subr.mxu0 0.0
    %1187 = vmatpush2.msra.mxu0 0.0
    %1188 = vmatprep.subr.mxu0 0.0
    %1189 = vmatpush2.msra.mxu0 0.0
    %1190 = vmatprep.subr.mxu0 0.0
    %1191 = vmatpush2.msra.mxu0 0.0
    %1192 = vmatprep.subr.mxu0 0.0
    %1193 = vmatpush2.msra.mxu0 0.0
    %1194 = vmatprep.subr.mxu0 0.0
    %1195 = vmatpush2.msra.mxu0 0.0
    %1196 = vmatprep.subr.mxu0 0.0
    %1197 = vmatpush2.msra.mxu0 0.0
    %1198 = vmatprep.subr.mxu0 0.0
    %1199 = vmatpush2.msra.mxu0 0.0
    %1200 = vmatprep.mubr.f32.mxu0 0.0
    %1201 = vmatmul.mubr.f32.gmra.mxu0 %v1063
    %v1202 = vpop.f32.mrf.mxu0
    %v1203 = vadd.f32 0.0, %v1202
    %v1204 = vpop.f32.mrf.mxu0
    %v1205 = vadd.f32 0.0, %v1204
    %1206 = vdwg.mxu0
    %v1211 = vrot.slane %v1132, 6
    %v1212 = vrot.slane %v1134, 6
    %v1213 = vrot.slane %v1203, 6
    %v1214 = vrot.slane %v1205, 6
    %v1219 = vadd.f32 %v564, %v1211
    %v1220 = vadd.f32 %v566, %v1212
    %v1221 = vadd.f32 %v635, %v1213
    %v1222 = vadd.f32 %v637, %v1214
    %v1223 = vxor.u32 %v1219, 2147483648
    %v1224 = vmul.f32 %v1223, 1.442695
    %v1225 = vpow.pop %v1224
    %v1226 = vadd.f32 %v1225, 1.0
    %v1227 = vrcp.pop %v1226
    %v1228 = vmul.f32 1.0, %v1227
    %v1229 = vxor.u32 %v1220, 2147483648
    %v1230 = vmul.f32 %v1229, 1.442695
    %v1231 = vpow.pop %v1230
    %v1232 = vadd.f32 %v1231, 1.0
    %v1233 = vrcp.pop %v1232
    %v1234 = vmul.f32 1.0, %v1233
    %v1235 = vtanh.pop %v1221
    %v1236 = vxor.u32 %v1222, 2147483648
    %v1237 = vmul.f32 %v1236, 1.442695
    %v1238 = vpow.pop %v1237
    %v1239 = vadd.f32 %v1238, 1.0
    %v1240 = vrcp.pop %v1239
    %v1241 = vmul.f32 1.0, %v1240
    %v1243 = vrot.slane %v1058, 7
    %v1245 = vmul.f32 %v1234, %v1243
    %v1246 = vmul.f32 %v1228, %v1235
    %v1247 = vadd.f32 %v1245, %v1246
    %v1248 = vtanh.pop %v1247
    %v1249 = vmul.f32 %v1241, %v1248
    %1250 = vst [vmem:[#allocation2] sm:$0x4] %v1249
    %v1252 = vrot.slane %v1249, 2
    %1254 = vmatprep.subr.mxu0 %v700
    %1255 = vmatpush1.msra.mxu0 %v699
    %1256 = vmatprep.subr.mxu0 %v696
    %1257 = vmatpush1.msra.mxu0 %v695
    %1258 = vmatprep.subr.mxu0 %v692
    %1259 = vmatpush1.msra.mxu0 %v691
    %1260 = vmatprep.subr.mxu0 %v688
    %1261 = vmatpush1.msra.mxu0 %v687
    %1262 = vmatprep.subr.mxu0 %v684
    %1263 = vmatpush1.msra.mxu0 %v683
    %1264 = vmatprep.subr.mxu0 %v680
    %1265 = vmatpush1.msra.mxu0 %v679
    %1266 = vmatprep.subr.mxu0 %v676
    %1267 = vmatpush1.msra.mxu0 %v675
    %1268 = vmatprep.subr.mxu0 %v672
    %1269 = vmatpush1.msra.mxu0 %v671
    %1270 = vmatprep.subr.mxu0 %v668
    %1271 = vmatpush1.msra.mxu0 %v667
    %1272 = vmatprep.subr.mxu0 %v664
    %1273 = vmatpush1.msra.mxu0 %v663
    %1274 = vmatprep.subr.mxu0 %v660
    %1275 = vmatpush1.msra.mxu0 %v659
    %1276 = vmatprep.subr.mxu0 %v656
    %1277 = vmatpush1.msra.mxu0 %v655
    %1278 = vmatprep.subr.mxu0 %v652
    %1279 = vmatpush1.msra.mxu0 %v651
    %1280 = vmatprep.subr.mxu0 %v648
    %1281 = vmatpush1.msra.mxu0 %v647
    %1282 = vmatprep.subr.mxu0 %v644
    %1283 = vmatpush1.msra.mxu0 %v643
    %1284 = vmatprep.subr.mxu0 %v640
    %1285 = vmatpush1.msra.mxu0 %v639
    %1286 = vmatprep.subr.mxu0 0.0
    %1287 = vmatpush2.msra.mxu0 0.0
    %1288 = vmatprep.subr.mxu0 0.0
    %1289 = vmatpush2.msra.mxu0 0.0
    %1290 = vmatprep.subr.mxu0 0.0
    %1291 = vmatpush2.msra.mxu0 0.0
    %1292 = vmatprep.subr.mxu0 0.0
    %1293 = vmatpush2.msra.mxu0 0.0
    %1294 = vmatprep.subr.mxu0 0.0
    %1295 = vmatpush2.msra.mxu0 0.0
    %1296 = vmatprep.subr.mxu0 0.0
    %1297 = vmatpush2.msra.mxu0 0.0
    %1298 = vmatprep.subr.mxu0 0.0
    %1299 = vmatpush2.msra.mxu0 0.0
    %1300 = vmatprep.subr.mxu0 0.0
    %1301 = vmatpush2.msra.mxu0 0.0
    %1302 = vmatprep.subr.mxu0 0.0
    %1303 = vmatpush2.msra.mxu0 0.0
    %1304 = vmatprep.subr.mxu0 0.0
    %1305 = vmatpush2.msra.mxu0 0.0
    %1306 = vmatprep.subr.mxu0 0.0
    %1307 = vmatpush2.msra.mxu0 0.0
    %1308 = vmatprep.subr.mxu0 0.0
    %1309 = vmatpush2.msra.mxu0 0.0
    %1310 = vmatprep.subr.mxu0 0.0
    %1311 = vmatpush2.msra.mxu0 0.0
    %1312 = vmatprep.subr.mxu0 0.0
    %1313 = vmatpush2.msra.mxu0 0.0
    %1314 = vmatprep.subr.mxu0 0.0
    %1315 = vmatpush2.msra.mxu0 0.0
    %1316 = vmatprep.subr.mxu0 0.0
    %1317 = vmatpush2.msra.mxu0 0.0
    %1318 = vmatprep.mubr.f32.mxu0 0.0
    %1319 = vmatmul.mubr.f32.gmra.mxu0 %v1252
    %v1320 = vpop.f32.mrf.mxu0
    %v1321 = vadd.f32 0.0, %v1320
    %v1322 = vpop.f32.mrf.mxu0
    %v1323 = vadd.f32 0.0, %v1322
    %1324 = vdwg.mxu0
    %1325 = vmatprep.subr.mxu0 %v702
    %1326 = vmatpush1.msra.mxu0 %v701
    %1327 = vmatprep.subr.mxu0 %v698
    %1328 = vmatpush1.msra.mxu0 %v697
    %1329 = vmatprep.subr.mxu0 %v694
    %1330 = vmatpush1.msra.mxu0 %v693
    %1331 = vmatprep.subr.mxu0 %v690
    %1332 = vmatpush1.msra.mxu0 %v689
    %1333 = vmatprep.subr.mxu0 %v686
    %1334 = vmatpush1.msra.mxu0 %v685
    %1335 = vmatprep.subr.mxu0 %v682
    %1336 = vmatpush1.msra.mxu0 %v681
    %1337 = vmatprep.subr.mxu0 %v678
    %1338 = vmatpush1.msra.mxu0 %v677
    %1339 = vmatprep.subr.mxu0 %v674
    %1340 = vmatpush1.msra.mxu0 %v673
    %1341 = vmatprep.subr.mxu0 %v670
    %1342 = vmatpush1.msra.mxu0 %v669
    %1343 = vmatprep.subr.mxu0 %v666
    %1344 = vmatpush1.msra.mxu0 %v665
    %1345 = vmatprep.subr.mxu0 %v662
    %1346 = vmatpush1.msra.mxu0 %v661
    %1347 = vmatprep.subr.mxu0 %v658
    %1348 = vmatpush1.msra.mxu0 %v657
    %1349 = vmatprep.subr.mxu0 %v654
    %1350 = vmatpush1.msra.mxu0 %v653
    %1351 = vmatprep.subr.mxu0 %v650
    %1352 = vmatpush1.msra.mxu0 %v649
    %1353 = vmatprep.subr.mxu0 %v646
    %1354 = vmatpush1.msra.mxu0 %v645
    %1355 = vmatprep.subr.mxu0 %v642
    %1356 = vmatpush1.msra.mxu0 %v641
    %1357 = vmatprep.subr.mxu0 0.0
    %1358 = vmatpush2.msra.mxu0 0.0
    %1359 = vmatprep.subr.mxu0 0.0
    %1360 = vmatpush2.msra.mxu0 0.0
    %1361 = vmatprep.subr.mxu0 0.0
    %1362 = vmatpush2.msra.mxu0 0.0
    %1363 = vmatprep.subr.mxu0 0.0
    %1364 = vmatpush2.msra.mxu0 0.0
    %1365 = vmatprep.subr.mxu0 0.0
    %1366 = vmatpush2.msra.mxu0 0.0
    %1367 = vmatprep.subr.mxu0 0.0
    %1368 = vmatpush2.msra.mxu0 0.0
    %1369 = vmatprep.subr.mxu0 0.0
    %1370 = vmatpush2.msra.mxu0 0.0
    %1371 = vmatprep.subr.mxu0 0.0
    %1372 = vmatpush2.msra.mxu0 0.0
    %1373 = vmatprep.subr.mxu0 0.0
    %1374 = vmatpush2.msra.mxu0 0.0
    %1375 = vmatprep.subr.mxu0 0.0
    %1376 = vmatpush2.msra.mxu0 0.0
    %1377 = vmatprep.subr.mxu0 0.0
    %1378 = vmatpush2.msra.mxu0 0.0
    %1379 = vmatprep.subr.mxu0 0.0
    %1380 = vmatpush2.msra.mxu0 0.0
    %1381 = vmatprep.subr.mxu0 0.0
    %1382 = vmatpush2.msra.mxu0 0.0
    %1383 = vmatprep.subr.mxu0 0.0
    %1384 = vmatpush2.msra.mxu0 0.0
    %1385 = vmatprep.subr.mxu0 0.0
    %1386 = vmatpush2.msra.mxu0 0.0
    %1387 = vmatprep.subr.mxu0 0.0
    %1388 = vmatpush2.msra.mxu0 0.0
    %1389 = vmatprep.mubr.f32.mxu0 0.0
    %1390 = vmatmul.mubr.f32.gmra.mxu0 %v1252
    %v1391 = vpop.f32.mrf.mxu0
    %v1392 = vadd.f32 0.0, %v1391
    %v1393 = vpop.f32.mrf.mxu0
    %v1394 = vadd.f32 0.0, %v1393
    %1395 = vdwg.mxu0
    %v1400 = vrot.slane %v1321, 5
    %v1401 = vrot.slane %v1323, 5
    %v1402 = vrot.slane %v1392, 5
    %v1403 = vrot.slane %v1394, 5
    %v1408 = vadd.f32 %v564, %v1400
    %v1409 = vadd.f32 %v566, %v1401
    %v1410 = vadd.f32 %v635, %v1402
    %v1411 = vadd.f32 %v637, %v1403
    %v1412 = vxor.u32 %v1408, 2147483648
    %v1413 = vmul.f32 %v1412, 1.442695
    %v1414 = vpow.pop %v1413
    %v1415 = vadd.f32 %v1414, 1.0
    %v1416 = vrcp.pop %v1415
    %v1417 = vmul.f32 1.0, %v1416
    %v1418 = vxor.u32 %v1409, 2147483648
    %v1419 = vmul.f32 %v1418, 1.442695
    %v1420 = vpow.pop %v1419
    %v1421 = vadd.f32 %v1420, 1.0
    %v1422 = vrcp.pop %v1421
    %v1423 = vmul.f32 1.0, %v1422
    %v1424 = vtanh.pop %v1410
    %v1425 = vxor.u32 %v1411, 2147483648
    %v1426 = vmul.f32 %v1425, 1.442695
    %v1427 = vpow.pop %v1426
    %v1428 = vadd.f32 %v1427, 1.0
    %v1429 = vrcp.pop %v1428
    %v1430 = vmul.f32 1.0, %v1429
    %v1432 = vrot.slane %v1247, 7
    %v1434 = vmul.f32 %v1423, %v1432
    %v1435 = vmul.f32 %v1417, %v1424
    %v1436 = vadd.f32 %v1434, %v1435
    %v1437 = vtanh.pop %v1436
    %v1438 = vmul.f32 %v1430, %v1437
    %1439 = vst [vmem:[#allocation2] sm:$0x8] %v1438
    %1440 = vst [vmem:[#allocation4 - $0x3] sm:$0x8] %v1438
    %1441 = vst [vmem:[#allocation6 - $0x3] sm:$0x8] %v1436
    %v1442 = vld [vmem:[%s12] sm:$0xff]
    %v1443 = vld [vmem:[%s12 + $0x8] sm:$0xff]
    %v1444 = vld [vmem:[%s12 + $0x10] sm:$0xff]
    %v1445 = vld [vmem:[%s12 + $0x18] sm:$0xff]
    %v1446 = vld [vmem:[%s12 + $0x20] sm:$0xff]
    %v1447 = vld [vmem:[%s12 + $0x28] sm:$0xff]
    %v1448 = vld [vmem:[%s12 + $0x30] sm:$0xff]
    %v1449 = vld [vmem:[%s12 + $0x38] sm:$0xff]
    %v1450 = vld [vmem:[%s12 + $0x40] sm:$0xff]
    %v1451 = vld [vmem:[%s12 + $0x48] sm:$0xff]
    %v1452 = vld [vmem:[%s12 + $0x50] sm:$0xff]
    %v1453 = vld [vmem:[%s12 + $0x58] sm:$0xff]
    %v1454 = vld [vmem:[%s12 + $0x60] sm:$0xff]
    %v1455 = vld [vmem:[%s12 + $0x68] sm:$0xff]
    %v1456 = vld [vmem:[%s12 + $0x70] sm:$0xff]
    %v1457 = vld [vmem:[%s12 + $0x78] sm:$0xff]
    %v1458 = vld [vmem:[%s13] sm:$0x1]
    %1459 = vmatprep.subr.mxu0 0.0
    %1460 = vmatpush1.msra.mxu0 %v1457
    %1461 = vmatprep.subr.mxu0 0.0
    %1462 = vmatpush1.msra.mxu0 %v1456
    %1463 = vmatprep.subr.mxu0 0.0
    %1464 = vmatpush1.msra.mxu0 %v1455
    %1465 = vmatprep.subr.mxu0 0.0
    %1466 = vmatpush1.msra.mxu0 %v1454
    %1467 = vmatprep.subr.mxu0 0.0
    %1468 = vmatpush1.msra.mxu0 %v1453
    %1469 = vmatprep.subr.mxu0 0.0
    %1470 = vmatpush1.msra.mxu0 %v1452
    %1471 = vmatprep.subr.mxu0 0.0
    %1472 = vmatpush1.msra.mxu0 %v1451
    %1473 = vmatprep.subr.mxu0 0.0
    %1474 = vmatpush1.msra.mxu0 %v1450
    %1475 = vmatprep.subr.mxu0 0.0
    %1476 = vmatpush1.msra.mxu0 %v1449
    %1477 = vmatprep.subr.mxu0 0.0
    %1478 = vmatpush1.msra.mxu0 %v1448
    %1479 = vmatprep.subr.mxu0 0.0
    %1480 = vmatpush1.msra.mxu0 %v1447
    %1481 = vmatprep.subr.mxu0 0.0
    %1482 = vmatpush1.msra.mxu0 %v1446
    %1483 = vmatprep.subr.mxu0 0.0
    %1484 = vmatpush1.msra.mxu0 %v1445
    %1485 = vmatprep.subr.mxu0 0.0
    %1486 = vmatpush1.msra.mxu0 %v1444
    %1487 = vmatprep.subr.mxu0 0.0
    %1488 = vmatpush1.msra.mxu0 %v1443
    %1489 = vmatprep.subr.mxu0 0.0
    %1490 = vmatpush1.msra.mxu0 %v1442
    %1491 = vmatprep.subr.mxu0 0.0
    %1492 = vmatpush2.msra.mxu0 0.0
    %1493 = vmatprep.subr.mxu0 0.0
    %1494 = vmatpush2.msra.mxu0 0.0
    %1495 = vmatprep.subr.mxu0 0.0
    %1496 = vmatpush2.msra.mxu0 0.0
    %1497 = vmatprep.subr.mxu0 0.0
    %1498 = vmatpush2.msra.mxu0 0.0
    %1499 = vmatprep.subr.mxu0 0.0
    %1500 = vmatpush2.msra.mxu0 0.0
    %1501 = vmatprep.subr.mxu0 0.0
    %1502 = vmatpush2.msra.mxu0 0.0
    %1503 = vmatprep.subr.mxu0 0.0
    %1504 = vmatpush2.msra.mxu0 0.0
    %1505 = vmatprep.subr.mxu0 0.0
    %1506 = vmatpush2.msra.mxu0 0.0
    %1507 = vmatprep.subr.mxu0 0.0
    %1508 = vmatpush2.msra.mxu0 0.0
    %1509 = vmatprep.subr.mxu0 0.0
    %1510 = vmatpush2.msra.mxu0 0.0
    %1511 = vmatprep.subr.mxu0 0.0
    %1512 = vmatpush2.msra.mxu0 0.0
    %1513 = vmatprep.subr.mxu0 0.0
    %1514 = vmatpush2.msra.mxu0 0.0
    %1515 = vmatprep.subr.mxu0 0.0
    %1516 = vmatpush2.msra.mxu0 0.0
    %1517 = vmatprep.subr.mxu0 0.0
    %1518 = vmatpush2.msra.mxu0 0.0
    %1519 = vmatprep.subr.mxu0 0.0
    %1520 = vmatpush2.msra.mxu0 0.0
    %1521 = vmatprep.subr.mxu0 0.0
    %1522 = vmatpush2.msra.mxu0 0.0
    %1523 = vmatprep.mubr.f32.mxu0 0.0
    %1524 = vmatmul.mubr.f32.gmra.mxu0 %v874
    %v1525 = vpop.f32.mrf.mxu0
    %v1526 = vadd.f32 %v1458, %v1525
    %v1527 = vpop.f32.mrf.mxu0
    %1528 = vdwg.mxu0
    %1529 = vst [vmem:[%s17] sm:$0x1] %v1526
    %v1530 = vlaneseq
    %v1531 = vand.u32 %v1530, 127
    %vm1532 = vcmp.lt.s32.totalorder %v1531, 3
    %v1533 = vmul.f32 %v1526, 0.7
    %v1534 = vsel %vm1532, %v1533, -1e+30
    %vm1535 = vcmask 1040384
    %v1536 = vsel %vm1535, %v1534, -inf
    %1537 = vmax.xlane.f32.xlu0 %v1536
    %v1538 = vpop.xlane.xlu0 %1537
    %v1539 = vsub.f32 %v1533, %v1538
    %v1540 = vmul.f32 %v1539, 1.442695
    %v1541 = vpow.pop %v1540
    %v1542 = vsel %vm1532, %v1541, 0.0
    %v1543 = vsel %vm1535, %v1542, 0.0
    %1544 = vadd.xlane.f32.xlu0 %v1543
    %v1545 = vpop.xlane.xlu0 %1544
    %v1546 = vrcp.pop %v1545
    %v1547 = vmul.f32 %v1542, %v1546
    %1548 = vst [vmem:[%s18] sm:$0x1] %v1547
    // Predicated region
    $region58: #{policy_forward.7} parent=1 // pred_check
      _
    $region59: #{policy_forward.7} parent=1 // pred_check_branch
      %1550 = sbr.rel (0) target = $region61
    $region60: #{policy_forward.7} parent=1 // pred_region
      %s1552 = ssub.s32 64, 64
      %1553 = vsyncadd [#allocation3], %s1552
      %s1555 = sshll.u32 [#allocation2], 4
      %s1556 = int_to_ptr.vmem [resolvable:$true] %s1555
      %1558 = dma.vmem_to_hbm [thread:$0]  %s1556, 64, %s14, [#allocation3]
    $region61: #{policy_forward.7} parent=1 // pred_fallthru
      _
    // Predicated region
    $region62: #{policy_forward.7} parent=1 // pred_check
      _
    $region63: #{policy_forward.7} parent=1 // pred_check_branch
      %1560 = sbr.rel (0) target = $region65
    $region64: #{policy_forward.7} parent=1 // pred_region
      %s1562 = ssub.s32 16, 16
      %1563 = vsyncadd [#allocation5], %s1562
      %s1565 = sshll.u32 [#allocation4], 4
      %s1566 = int_to_ptr.vmem [resolvable:$true] %s1565
      %1568 = dma.vmem_to_hbm [thread:$0]  %s1566, 16, %s15, [#allocation5]
    $region65: #{policy_forward.7} parent=1 // pred_fallthru
      _
    // Predicated region
    $region66: #{policy_forward.7} parent=1 // pred_check
      _
    $region67: #{policy_forward.7} parent=1 // pred_check_branch
      %1570 = sbr.rel (0) target = $region69
    $region68: #{policy_forward.7} parent=1 // pred_region
      %s1572 = ssub.s32 16, 16
      %1573 = vsyncadd [#allocation5], %s1572
      %s1575 = sshll.u32 [#allocation6], 4
      %s1576 = int_to_ptr.vmem [resolvable:$true] %s1575
      %1578 = dma.vmem_to_hbm [thread:$0]  %s1576, 16, %s16, [#allocation5]
    $region69: #{policy_forward.7} parent=1 // pred_fallthru
      _
    // Predicated region
    $region70: #{policy_forward.7} parent=1 // pred_check
      _
    $region71: #{policy_forward.7} parent=1 // pred_check_branch
      %1580 = sbr.rel (0) target = $region73
    $region72: #{policy_forward.7} parent=1 // pred_region
      _
    $region73: #{policy_forward.7} parent=1 // pred_fallthru
      _
    // Predicated region
    $region74: #{policy_forward.7} parent=1 // pred_check
      _
    $region75: #{policy_forward.7} parent=1 // pred_check_branch
      %1582 = sbr.rel (0) target = $region77
    $region76: #{policy_forward.7} parent=1 // pred_region
      _
    $region77: #{policy_forward.7} parent=1 // pred_fallthru
      _
    // Predicated region
    $region78: #{policy_forward.7} parent=1 // pred_check
      _
    $region79: #{policy_forward.7} parent=1 // pred_check_branch
      %1584 = sbr.rel (0) target = $region81
    $region80: #{policy_forward.7} parent=1 // pred_region
      %1585 = dma.done [#allocation3], 64
    $region81: #{policy_forward.7} parent=1 // pred_fallthru
      _
    // Predicated region
    $region82: #{policy_forward.7} parent=1 // pred_check
      _
    $region83: #{policy_forward.7} parent=1 // pred_check_branch
      %1587 = sbr.rel (0) target = $region85
    $region84: #{policy_forward.7} parent=1 // pred_region
      %1588 = dma.done [#allocation5], 16
    $region85: #{policy_forward.7} parent=1 // pred_fallthru
      _
    // Predicated region
    $region86: #{policy_forward.7} parent=1 // pred_check
      _
    $region87: #{policy_forward.7} parent=1 // pred_check_branch
      %1590 = sbr.rel (0) target = $region89
    $region88: #{policy_forward.7} parent=1 // pred_region
      %1591 = dma.done [#allocation5], 16
    $region89: #{policy_forward.7} parent=1 // pred_fallthru
      _
    // Predicated region
    $region90: #{policy_forward.7} parent=1 // pred_check
      _
    $region91: #{policy_forward.7} parent=1 // pred_check_branch
      %1593 = sbr.rel (0) target = $region93
    $region92: #{policy_forward.7} parent=1 // pred_region
      _
    $region93: #{policy_forward.7} parent=1 // pred_fallthru
      _
    // Predicated region
    $region94: #{policy_forward.7} parent=1 // pred_check
      _
    $region95: #{policy_forward.7} parent=1 // pred_check_branch
      %1595 = sbr.rel (0) target = $region97
    $region96: #{policy_forward.7} parent=1 // pred_region
      _
    $region97: #{policy_forward.7} parent=1 // pred_fallthru
      _
    %1596 = vsyncpa [#allocation3], 1
    %1597 = vsyncpa [#allocation5], 1

</llo_original>
